<compile_context>
chip_gen: v5e
topology: v5e:2x2
jax: 0.10.0
libtpu: 0.0.40
codegen_flags: <defaults>
</compile_context>

<pallas_src>
import functools
import math

import jax
import jax.numpy as jnp
from jax.experimental import pallas as pl
from jax.experimental.pallas import tpu as pltpu


# ----------------------------- Pallas kernel -------------------------------

def _layer_norm(x, g, b, eps):
    mean = jnp.mean(x, axis=-1, keepdims=True)
    xc = x - mean
    var = jnp.mean(xc * xc, axis=-1, keepdims=True)
    return xc * jax.lax.rsqrt(var + eps) * g + b


def _transformer_model_kernel(x_ref, *refs, num_layers, num_heads, scale, eps):
    """Full TransformerModel forward for one batch element, entirely in VMEM.

    refs = (emb_w, emb_b, [16 refs per layer]*num_layers, dec_w, dec_b, o_ref)
    """
    f32 = jnp.float32
    o_ref = refs[-1]
    params = refs[:-1]
    emb_w, emb_b = params[0], params[1]
    dec_w, dec_b = params[-2], params[-1]
    layer_refs = params[2:-2]

    mm = emb_w.dtype                      # bf16 matmul operands, f32 accumulation

    x = x_ref[0]                          # (S, Din) f32
    # Embedding (sqrt(input_dim) already folded into emb_w / emb_b).
    h = jnp.dot(x.astype(mm), emb_w[...], preferred_element_type=f32) + emb_b[...]

    for l in range(num_layers):
        (wq, bq, wk, bk, wv, bv, wo, bo, g1, be1,
         w1, b1, w2, b2, g2, be2) = layer_refs[16 * l:16 * (l + 1)]

        hb = h.astype(mm)

        # ---- multi-head self-attention (heads unrolled; per-head packed weights) ----
        attn = bo[...]                    # (1, H) f32 bias; broadcasts into accumulation
        for hi in range(num_heads):
            q = jnp.dot(hb, wq[hi], preferred_element_type=f32) + bq[hi]   # (S, hd)
            k = jnp.dot(hb, wk[hi], preferred_element_type=f32) + bk[hi]
            v = jnp.dot(hb, wv[hi], preferred_element_type=f32) + bv[hi]
            # scores = q @ k^T via dot_general (contract last dims; no k.T relayout)
            s = jax.lax.dot_general(q.astype(mm), k.astype(mm),
                                    (((1,), (1,)), ((), ())),
                                    preferred_element_type=f32) * scale     # (S, S)
            s = s - jnp.max(s, axis=-1, keepdims=True)
            p = jnp.exp(s)
            p = p * pl.reciprocal(jnp.sum(p, axis=-1, keepdims=True), approx=True)
            ctx = jnp.dot(p.astype(mm), v.astype(mm),
                          preferred_element_type=f32)                       # (S, hd)
            attn = attn + jnp.dot(ctx.astype(mm), wo[hi],
                                  preferred_element_type=f32)               # (S, H)

        x1 = _layer_norm(h + attn, g1[...], be1[...], eps)

        # ---- feed-forward (ReLU) ----
        ffh = jnp.dot(x1.astype(mm), w1[...], preferred_element_type=f32) + b1[...]
        ffh = jnp.maximum(ffh, 0.0)
        ff = jnp.dot(ffh.astype(mm), w2[...], preferred_element_type=f32) + b2[...]

        h = _layer_norm(x1 + ff, g2[...], be2[...], eps)

    # Decoder projection.
    o_ref[0] = jnp.dot(h.astype(mm), dec_w[...], preferred_element_type=f32) + dec_b[...]


# ------------------------------- wrapper ------------------------------------

def _replicated_spec(arr):
    zeros = (0,) * arr.ndim
    return pl.BlockSpec(arr.shape, lambda n, _z=zeros: _z)


def transformer_forward(src, params, *, num_heads, eps=1e-5):
    """src: (S, N, input_dim), sequence-first like PyTorch default."""
    S, N, Din = src.shape
    H = params["emb_w"].shape[1]
    num_layers = len(params["layers"])
    hd = H // num_heads
    scale = 1.0 / math.sqrt(hd)

    x = jnp.transpose(src, (1, 0, 2))                      # (N, S, Din)

    flat = [params["emb_w"], params["emb_b"]]
    for lp in params["layers"]:
        flat += [lp["wq"], lp["bq"], lp["wk"], lp["bk"], lp["wv"], lp["bv"],
                 lp["wo"], lp["bo"], lp["ln1_g"], lp["ln1_b"],
                 lp["lin1_w"], lp["lin1_b"], lp["lin2_w"], lp["lin2_b"],
                 lp["ln2_g"], lp["ln2_b"]]
    flat += [params["dec_w"], params["dec_b"]]

    flops = N * (2 * S * Din * H                                   # embedding
                 + num_layers * (4 * 2 * S * H * H                 # q,k,v,out proj
                                 + 2 * 2 * S * S * H               # scores + p@v
                                 + 2 * 2 * S * H * (4 * H))        # FFN
                 + 2 * S * H * Din)                                # decoder
    bytes_accessed = (2 * int(x.size) * 4
                      + sum(int(w.size) * int(w.dtype.itemsize) for w in flat))
    cost = pl.CostEstimate(flops=int(flops),
                           transcendentals=int(N * num_layers * num_heads * S * S),
                           bytes_accessed=int(bytes_accessed))

    kernel = functools.partial(_transformer_model_kernel,
                               num_layers=num_layers, num_heads=num_heads,
                               scale=scale, eps=eps)

    out = pl.pallas_call(
        kernel,
        out_shape=jax.ShapeDtypeStruct((N, S, Din), jnp.float32),
        grid=(N,),
        in_specs=[pl.BlockSpec((1, S, Din), lambda n: (n, 0, 0))]
                 + [_replicated_spec(w) for w in flat],
        out_specs=pl.BlockSpec((1, S, Din), lambda n: (n, 0, 0)),
        compiler_params=pltpu.CompilerParams(dimension_semantics=("parallel",)),
        cost_estimate=cost,
    )(x, *flat)

    return jnp.transpose(out, (1, 0, 2))                   # (S, N, Din)


# ------------------------------ parameters -----------------------------------

def init_params(key, input_dim, hidden_dim, num_layers):
    """f32 parameters, weights stored (in, out) = transpose of PyTorch (out, in)."""
    def dense(k, din, dout):
        w = jax.random.normal(k, (din, dout), jnp.float32) * 0.05
        b = jnp.zeros((1, dout), jnp.float32)
        return w, b

    keys = jax.random.split(key, 2 + num_layers)
    emb_w, emb_b = dense(keys[0], input_dim, hidden_dim)
    dec_w, dec_b = dense(keys[1], hidden_dim, input_dim)
    layers = []
    for l in range(num_layers):
        lk = jax.random.split(keys[2 + l], 4)
        in_w, in_b = dense(lk[0], hidden_dim, 3 * hidden_dim)     # [Wq|Wk|Wv] cols
        out_w, out_b = dense(lk[1], hidden_dim, hidden_dim)
        l1_w, l1_b = dense(lk[2], hidden_dim, 4 * hidden_dim)
        l2_w, l2_b = dense(lk[3], 4 * hidden_dim, hidden_dim)
        layers.append(dict(
            in_proj_w=in_w, in_proj_b=in_b,
            out_proj_w=out_w, out_proj_b=out_b,
            lin1_w=l1_w, lin1_b=l1_b,
            lin2_w=l2_w, lin2_b=l2_b,
            ln1_g=jnp.ones((1, hidden_dim), jnp.float32),
            ln1_b=jnp.zeros((1, hidden_dim), jnp.float32),
            ln2_g=jnp.ones((1, hidden_dim), jnp.float32),
            ln2_b=jnp.zeros((1, hidden_dim), jnp.float32),
        ))
    return dict(emb_w=emb_w, emb_b=emb_b, dec_w=dec_w, dec_b=dec_b, layers=layers)


def prepare_params(params, *, input_dim, num_heads, matmul_dtype=jnp.bfloat16):
    """Kernel-ready params: fold sqrt(input_dim) into the embedding, split the
    fused QKV / out-proj weights per head (so the kernel never needs head
    reshapes/transposes), and cast matmul weights to bf16 (biases/LN stay f32)."""
    H = params["emb_w"].shape[1]
    hd = H // num_heads
    emb_scale = math.sqrt(float(input_dim))

    def heads_in(w):        # (H, H) -> (nh, H, hd)
        return jnp.transpose(w.reshape(H, num_heads, hd), (1, 0, 2))

    def heads_in_b(b):      # (1, H) -> (nh, 1, hd)
        return jnp.transpose(b.reshape(1, num_heads, hd), (1, 0, 2))

    out = dict(
        emb_w=(params["emb_w"] * emb_scale).astype(matmul_dtype),
        emb_b=params["emb_b"] * emb_scale,
        dec_w=params["dec_w"].astype(matmul_dtype),
        dec_b=params["dec_b"],
        layers=[],
    )
    for lp in params["layers"]:
        wq = lp["in_proj_w"][:, 0 * H:1 * H]
        wk = lp["in_proj_w"][:, 1 * H:2 * H]
        wv = lp["in_proj_w"][:, 2 * H:3 * H]
        bq = lp["in_proj_b"][:, 0 * H:1 * H]
        bk = lp["in_proj_b"][:, 1 * H:2 * H]
        bv = lp["in_proj_b"][:, 2 * H:3 * H]
        out["layers"].append(dict(
            wq=heads_in(wq).astype(matmul_dtype), bq=heads_in_b(bq),
            wk=heads_in(wk).astype(matmul_dtype), bk=heads_in_b(bk),
            wv=heads_in(wv).astype(matmul_dtype), bv=heads_in_b(bv),
            wo=lp["out_proj_w"].reshape(num_heads, hd, H).astype(matmul_dtype),
            bo=lp["out_proj_b"],
            ln1_g=lp["ln1_g"], ln1_b=lp["ln1_b"],
            lin1_w=lp["lin1_w"].astype(matmul_dtype), lin1_b=lp["lin1_b"],
            lin2_w=lp["lin2_w"].astype(matmul_dtype), lin2_b=lp["lin2_b"],
            ln2_g=lp["ln2_g"], ln2_b=lp["ln2_b"],
        ))
    return out


# --------------------------- pure-JAX reference -------------------------------

def reference_forward(src, raw, *, num_heads, input_dim, eps=1e-5):
    """f32 reference matching PyTorch post-norm TransformerEncoder semantics."""
    def ln(x, g, b):
        mu = jnp.mean(x, axis=-1, keepdims=True)
        var = jnp.mean((x - mu) ** 2, axis=-1, keepdims=True)
        return (x - mu) * jax.lax.rsqrt(var + eps) * g + b

    x = src @ raw["emb_w"] + raw["emb_b"][0]
    x = x * math.sqrt(float(input_dim))
    S, N, H = x.shape
    hd = H // num_heads
    for lp in raw["layers"]:
        qkv = x @ lp["in_proj_w"] + lp["in_proj_b"][0]
        q, k, v = qkv[..., :H], qkv[..., H:2 * H], qkv[..., 2 * H:]
        q = q.reshape(S, N, num_heads, hd)
        k = k.reshape(S, N, num_heads, hd)
        v = v.reshape(S, N, num_heads, hd)
        s = jnp.einsum("qnhd,knhd->nhqk", q, k) / math.sqrt(hd)
        p = jax.nn.softmax(s, axis=-1)
        ctx = jnp.einsum("nhqk,knhd->qnhd", p, v).reshape(S, N, H)
        attn = ctx @ lp["out_proj_w"] + lp["out_proj_b"][0]
        x = ln(x + attn, lp["ln1_g"][0], lp["ln1_b"][0])
        ff = jnp.maximum(x @ lp["lin1_w"] + lp["lin1_b"][0], 0.0)
        ff = ff @ lp["lin2_w"] + lp["lin2_b"][0]
        x = ln(x + ff, lp["ln2_g"][0], lp["ln2_b"][0])
    return x @ raw["dec_w"] + raw["dec_b"][0]


# --------------------------------- main --------------------------------------

if __name__ == "__main__":
    # small config: input_dim=16, num_heads=4, hidden_dim=32, num_layers=2
    INPUT_DIM, NUM_HEADS, HIDDEN_DIM, NUM_LAYERS = 16, 4, 32, 2
    SEQ, BATCH = 8, 2

    root = jax.random.PRNGKey(0)
    k_params, k_input = jax.random.split(root)
    raw_params = init_params(k_params, INPUT_DIM, HIDDEN_DIM, NUM_LAYERS)
    params = prepare_params(raw_params, input_dim=INPUT_DIM, num_heads=NUM_HEADS)
    src = jax.random.normal(k_input, (SEQ, BATCH, INPUT_DIM), jnp.float32)

    fwd = jax.jit(functools.partial(transformer_forward, num_heads=NUM_HEADS))
    out = fwd(src, params)
    out = jax.block_until_ready(out)

    assert out.shape == (SEQ, BATCH, INPUT_DIM), out.shape
    assert bool(jnp.all(jnp.isfinite(out)))

    ref = reference_forward(src, raw_params, num_heads=NUM_HEADS, input_dim=INPUT_DIM)
    assert bool(jnp.allclose(out, ref, atol=5e-2, rtol=5e-2))  # bf16 matmul tolerance

    print("KERNEL_OK")
</pallas_src>

<mosaic_0001>
module attributes {stable_mosaic.version = 11 : i64} {
  func.func @_transformer_model_kernel(%arg0: i32, %arg1: memref<1x8x16xf32, #tpu.memory_space<vmem>>, %arg2: memref<16x32xbf16, #tpu.memory_space<vmem>>, %arg3: memref<1x32xf32, #tpu.memory_space<vmem>>, %arg4: memref<4x32x8xbf16, #tpu.memory_space<vmem>>, %arg5: memref<4x1x8xf32, #tpu.memory_space<vmem>>, %arg6: memref<4x32x8xbf16, #tpu.memory_space<vmem>>, %arg7: memref<4x1x8xf32, #tpu.memory_space<vmem>>, %arg8: memref<4x32x8xbf16, #tpu.memory_space<vmem>>, %arg9: memref<4x1x8xf32, #tpu.memory_space<vmem>>, %arg10: memref<4x8x32xbf16, #tpu.memory_space<vmem>>, %arg11: memref<1x32xf32, #tpu.memory_space<vmem>>, %arg12: memref<1x32xf32, #tpu.memory_space<vmem>>, %arg13: memref<1x32xf32, #tpu.memory_space<vmem>>, %arg14: memref<32x128xbf16, #tpu.memory_space<vmem>>, %arg15: memref<1x128xf32, #tpu.memory_space<vmem>>, %arg16: memref<128x32xbf16, #tpu.memory_space<vmem>>, %arg17: memref<1x32xf32, #tpu.memory_space<vmem>>, %arg18: memref<1x32xf32, #tpu.memory_space<vmem>>, %arg19: memref<1x32xf32, #tpu.memory_space<vmem>>, %arg20: memref<4x32x8xbf16, #tpu.memory_space<vmem>>, %arg21: memref<4x1x8xf32, #tpu.memory_space<vmem>>, %arg22: memref<4x32x8xbf16, #tpu.memory_space<vmem>>, %arg23: memref<4x1x8xf32, #tpu.memory_space<vmem>>, %arg24: memref<4x32x8xbf16, #tpu.memory_space<vmem>>, %arg25: memref<4x1x8xf32, #tpu.memory_space<vmem>>, %arg26: memref<4x8x32xbf16, #tpu.memory_space<vmem>>, %arg27: memref<1x32xf32, #tpu.memory_space<vmem>>, %arg28: memref<1x32xf32, #tpu.memory_space<vmem>>, %arg29: memref<1x32xf32, #tpu.memory_space<vmem>>, %arg30: memref<32x128xbf16, #tpu.memory_space<vmem>>, %arg31: memref<1x128xf32, #tpu.memory_space<vmem>>, %arg32: memref<128x32xbf16, #tpu.memory_space<vmem>>, %arg33: memref<1x32xf32, #tpu.memory_space<vmem>>, %arg34: memref<1x32xf32, #tpu.memory_space<vmem>>, %arg35: memref<1x32xf32, #tpu.memory_space<vmem>>, %arg36: memref<32x16xbf16, #tpu.memory_space<vmem>>, %arg37: memref<1x16xf32, #tpu.memory_space<vmem>>, %arg38: memref<1x8x16xf32, #tpu.memory_space<vmem>>) attributes {dimension_semantics = [#tpu.dimension_semantics<parallel>], iteration_bounds = array<i64: 2>, scalar_prefetch = 0 : i64, scratch_operands = 0 : i64, tpu.core_type = #tpu.core_type<tc>, window_params = [{transform_indices = @transform_0, window_bounds = array<i64: 1, 8, 16>}, {pipeline_mode = #tpu.pipeline_mode<synchronous>, transform_indices = @transform_1, window_bounds = array<i64: 16, 32>}, {pipeline_mode = #tpu.pipeline_mode<synchronous>, transform_indices = @transform_2, window_bounds = array<i64: 1, 32>}, {pipeline_mode = #tpu.pipeline_mode<synchronous>, transform_indices = @transform_3, window_bounds = array<i64: 4, 32, 8>}, {pipeline_mode = #tpu.pipeline_mode<synchronous>, transform_indices = @transform_4, window_bounds = array<i64: 4, 1, 8>}, {pipeline_mode = #tpu.pipeline_mode<synchronous>, transform_indices = @transform_5, window_bounds = array<i64: 4, 32, 8>}, {pipeline_mode = #tpu.pipeline_mode<synchronous>, transform_indices = @transform_6, window_bounds = array<i64: 4, 1, 8>}, {pipeline_mode = #tpu.pipeline_mode<synchronous>, transform_indices = @transform_7, window_bounds = array<i64: 4, 32, 8>}, {pipeline_mode = #tpu.pipeline_mode<synchronous>, transform_indices = @transform_8, window_bounds = array<i64: 4, 1, 8>}, {pipeline_mode = #tpu.pipeline_mode<synchronous>, transform_indices = @transform_9, window_bounds = array<i64: 4, 8, 32>}, {pipeline_mode = #tpu.pipeline_mode<synchronous>, transform_indices = @transform_10, window_bounds = array<i64: 1, 32>}, {pipeline_mode = #tpu.pipeline_mode<synchronous>, transform_indices = @transform_11, window_bounds = array<i64: 1, 32>}, {pipeline_mode = #tpu.pipeline_mode<synchronous>, transform_indices = @transform_12, window_bounds = array<i64: 1, 32>}, {pipeline_mode = #tpu.pipeline_mode<synchronous>, transform_indices = @transform_13, window_bounds = array<i64: 32, 128>}, {pipeline_mode = #tpu.pipeline_mode<synchronous>, transform_indices = @transform_14, window_bounds = array<i64: 1, 128>}, {pipeline_mode = #tpu.pipeline_mode<synchronous>, transform_indices = @transform_15, window_bounds = array<i64: 128, 32>}, {pipeline_mode = #tpu.pipeline_mode<synchronous>, transform_indices = @transform_16, window_bounds = array<i64: 1, 32>}, {pipeline_mode = #tpu.pipeline_mode<synchronous>, transform_indices = @transform_17, window_bounds = array<i64: 1, 32>}, {pipeline_mode = #tpu.pipeline_mode<synchronous>, transform_indices = @transform_18, window_bounds = array<i64: 1, 32>}, {pipeline_mode = #tpu.pipeline_mode<synchronous>, transform_indices = @transform_19, window_bounds = array<i64: 4, 32, 8>}, {pipeline_mode = #tpu.pipeline_mode<synchronous>, transform_indices = @transform_20, window_bounds = array<i64: 4, 1, 8>}, {pipeline_mode = #tpu.pipeline_mode<synchronous>, transform_indices = @transform_21, window_bounds = array<i64: 4, 32, 8>}, {pipeline_mode = #tpu.pipeline_mode<synchronous>, transform_indices = @transform_22, window_bounds = array<i64: 4, 1, 8>}, {pipeline_mode = #tpu.pipeline_mode<synchronous>, transform_indices = @transform_23, window_bounds = array<i64: 4, 32, 8>}, {pipeline_mode = #tpu.pipeline_mode<synchronous>, transform_indices = @transform_24, window_bounds = array<i64: 4, 1, 8>}, {pipeline_mode = #tpu.pipeline_mode<synchronous>, transform_indices = @transform_25, window_bounds = array<i64: 4, 8, 32>}, {pipeline_mode = #tpu.pipeline_mode<synchronous>, transform_indices = @transform_26, window_bounds = array<i64: 1, 32>}, {pipeline_mode = #tpu.pipeline_mode<synchronous>, transform_indices = @transform_27, window_bounds = array<i64: 1, 32>}, {pipeline_mode = #tpu.pipeline_mode<synchronous>, transform_indices = @transform_28, window_bounds = array<i64: 1, 32>}, {pipeline_mode = #tpu.pipeline_mode<synchronous>, transform_indices = @transform_29, window_bounds = array<i64: 32, 128>}, {pipeline_mode = #tpu.pipeline_mode<synchronous>, transform_indices = @transform_30, window_bounds = array<i64: 1, 128>}, {pipeline_mode = #tpu.pipeline_mode<synchronous>, transform_indices = @transform_31, window_bounds = array<i64: 128, 32>}, {pipeline_mode = #tpu.pipeline_mode<synchronous>, transform_indices = @transform_32, window_bounds = array<i64: 1, 32>}, {pipeline_mode = #tpu.pipeline_mode<synchronous>, transform_indices = @transform_33, window_bounds = array<i64: 1, 32>}, {pipeline_mode = #tpu.pipeline_mode<synchronous>, transform_indices = @transform_34, window_bounds = array<i64: 1, 32>}, {pipeline_mode = #tpu.pipeline_mode<synchronous>, transform_indices = @transform_35, window_bounds = array<i64: 32, 16>}, {pipeline_mode = #tpu.pipeline_mode<synchronous>, transform_indices = @transform_36, window_bounds = array<i64: 1, 16>}, {transform_indices = @transform_37, window_bounds = array<i64: 1, 8, 16>}]} {
    %c0 = arith.constant 0 : index
    %c0_0 = arith.constant 0 : index
    %c0_1 = arith.constant 0 : index
    %0 = vector.load %arg1[%c0, %c0_0, %c0_1] : memref<1x8x16xf32, #tpu.memory_space<vmem>>, vector<1x8x16xf32>
    %1 = vector.shape_cast %0 : vector<1x8x16xf32> to vector<8x16xf32>
    %2 = arith.truncf %1 : vector<8x16xf32> to vector<8x16xbf16>
    %c0_2 = arith.constant 0 : index
    %c0_3 = arith.constant 0 : index
    %3 = vector.load %arg2[%c0_2, %c0_3] : memref<16x32xbf16, #tpu.memory_space<vmem>>, vector<16x32xbf16>
    %cst = arith.constant dense<0.000000e+00> : vector<8x32xf32>
    %4 = tpu.matmul %2, %3, %cst {dimension_numbers = #tpu.dot_dimension_numbers<[1], [0], [0], [1], [0, 0, 1, 1], [], []>} : vector<8x16xbf16>, vector<16x32xbf16>, vector<8x32xf32> -> vector<8x32xf32>
    %c0_4 = arith.constant 0 : index
    %c0_5 = arith.constant 0 : index
    %5 = vector.load %arg3[%c0_4, %c0_5] : memref<1x32xf32, #tpu.memory_space<vmem>>, vector<1x32xf32>
    %6 = vector.broadcast %5 : vector<1x32xf32> to vector<8x32xf32>
    %7 = arith.addf %4, %6 : vector<8x32xf32>
    %8 = arith.truncf %7 : vector<8x32xf32> to vector<8x32xbf16>
    %c0_6 = arith.constant 0 : index
    %c0_7 = arith.constant 0 : index
    %9 = vector.load %arg11[%c0_6, %c0_7] : memref<1x32xf32, #tpu.memory_space<vmem>>, vector<1x32xf32>
    %c0_8 = arith.constant 0 : index
    %c0_9 = arith.constant 0 : index
    %c0_10 = arith.constant 0 : index
    %10 = vector.load %arg4[%c0_8, %c0_9, %c0_10] : memref<4x32x8xbf16, #tpu.memory_space<vmem>>, vector<1x32x8xbf16>
    %11 = vector.shape_cast %10 : vector<1x32x8xbf16> to vector<32x8xbf16>
    %cst_11 = arith.constant dense<0.000000e+00> : vector<8x8xf32>
    %12 = tpu.matmul %8, %11, %cst_11 {dimension_numbers = #tpu.dot_dimension_numbers<[1], [0], [0], [1], [0, 0, 1, 1], [], []>} : vector<8x32xbf16>, vector<32x8xbf16>, vector<8x8xf32> -> vector<8x8xf32>
    %c0_12 = arith.constant 0 : index
    %c0_13 = arith.constant 0 : index
    %c0_14 = arith.constant 0 : index
    %13 = vector.load %arg5[%c0_12, %c0_13, %c0_14] : memref<4x1x8xf32, #tpu.memory_space<vmem>>, vector<1x1x8xf32>
    %14 = vector.shape_cast %13 : vector<1x1x8xf32> to vector<1x8xf32>
    %15 = vector.broadcast %14 : vector<1x8xf32> to vector<8x8xf32>
    %16 = arith.addf %12, %15 : vector<8x8xf32>
    %c0_15 = arith.constant 0 : index
    %c0_16 = arith.constant 0 : index
    %c0_17 = arith.constant 0 : index
    %17 = vector.load %arg6[%c0_15, %c0_16, %c0_17] : memref<4x32x8xbf16, #tpu.memory_space<vmem>>, vector<1x32x8xbf16>
    %18 = vector.shape_cast %17 : vector<1x32x8xbf16> to vector<32x8xbf16>
    %cst_18 = arith.constant dense<0.000000e+00> : vector<8x8xf32>
    %19 = tpu.matmul %8, %18, %cst_18 {dimension_numbers = #tpu.dot_dimension_numbers<[1], [0], [0], [1], [0, 0, 1, 1], [], []>} : vector<8x32xbf16>, vector<32x8xbf16>, vector<8x8xf32> -> vector<8x8xf32>
    %c0_19 = arith.constant 0 : index
    %c0_20 = arith.constant 0 : index
    %c0_21 = arith.constant 0 : index
    %20 = vector.load %arg7[%c0_19, %c0_20, %c0_21] : memref<4x1x8xf32, #tpu.memory_space<vmem>>, vector<1x1x8xf32>
    %21 = vector.shape_cast %20 : vector<1x1x8xf32> to vector<1x8xf32>
    %22 = vector.broadcast %21 : vector<1x8xf32> to vector<8x8xf32>
    %23 = arith.addf %19, %22 : vector<8x8xf32>
    %c0_22 = arith.constant 0 : index
    %c0_23 = arith.constant 0 : index
    %c0_24 = arith.constant 0 : index
    %24 = vector.load %arg8[%c0_22, %c0_23, %c0_24] : memref<4x32x8xbf16, #tpu.memory_space<vmem>>, vector<1x32x8xbf16>
    %25 = vector.shape_cast %24 : vector<1x32x8xbf16> to vector<32x8xbf16>
    %cst_25 = arith.constant dense<0.000000e+00> : vector<8x8xf32>
    %26 = tpu.matmul %8, %25, %cst_25 {dimension_numbers = #tpu.dot_dimension_numbers<[1], [0], [0], [1], [0, 0, 1, 1], [], []>} : vector<8x32xbf16>, vector<32x8xbf16>, vector<8x8xf32> -> vector<8x8xf32>
    %c0_26 = arith.constant 0 : index
    %c0_27 = arith.constant 0 : index
    %c0_28 = arith.constant 0 : index
    %27 = vector.load %arg9[%c0_26, %c0_27, %c0_28] : memref<4x1x8xf32, #tpu.memory_space<vmem>>, vector<1x1x8xf32>
    %28 = vector.shape_cast %27 : vector<1x1x8xf32> to vector<1x8xf32>
    %29 = vector.broadcast %28 : vector<1x8xf32> to vector<8x8xf32>
    %30 = arith.addf %26, %29 : vector<8x8xf32>
    %31 = arith.truncf %16 : vector<8x8xf32> to vector<8x8xbf16>
    %32 = arith.truncf %23 : vector<8x8xf32> to vector<8x8xbf16>
    %cst_29 = arith.constant dense<0.000000e+00> : vector<8x8xf32>
    %33 = tpu.matmul %31, %32, %cst_29 {dimension_numbers = #tpu.dot_dimension_numbers<[1], [1], [0], [0], [0, 0, 1, 0], [], []>} : vector<8x8xbf16>, vector<8x8xbf16>, vector<8x8xf32> -> vector<8x8xf32>
    %cst_30 = arith.constant 0.353553385 : f32
    %34 = vector.broadcast %cst_30 : f32 to vector<8x8xf32>
    %35 = arith.mulf %33, %34 : vector<8x8xf32>
    %cst_31 = arith.constant dense<0xFF800000> : vector<8xf32>
    %36 = vector.multi_reduction <maximumf>, %35, %cst_31 [1] : vector<8x8xf32> to vector<8xf32>
    %37 = vector.shape_cast %36 : vector<8xf32> to vector<8x1xf32>
    %38 = vector.broadcast %37 : vector<8x1xf32> to vector<8x8xf32>
    %39 = arith.subf %35, %38 : vector<8x8xf32>
    %40 = math.exp %39 : vector<8x8xf32>
    %cst_32 = arith.constant dense<0.000000e+00> : vector<8xf32>
    %41 = vector.multi_reduction <add>, %40, %cst_32 [1] : vector<8x8xf32> to vector<8xf32>
    %42 = vector.shape_cast %41 : vector<8xf32> to vector<8x1xf32>
    %43 = tpu.reciprocal %42 {approx = true} : vector<8x1xf32> -> vector<8x1xf32>
    %44 = vector.broadcast %43 : vector<8x1xf32> to vector<8x8xf32>
    %45 = arith.mulf %40, %44 : vector<8x8xf32>
    %46 = arith.truncf %45 : vector<8x8xf32> to vector<8x8xbf16>
    %47 = arith.truncf %30 : vector<8x8xf32> to vector<8x8xbf16>
    %cst_33 = arith.constant dense<0.000000e+00> : vector<8x8xf32>
    %48 = tpu.matmul %46, %47, %cst_33 {dimension_numbers = #tpu.dot_dimension_numbers<[1], [0], [0], [1], [0, 0, 1, 1], [], []>} : vector<8x8xbf16>, vector<8x8xbf16>, vector<8x8xf32> -> vector<8x8xf32>
    %49 = arith.truncf %48 : vector<8x8xf32> to vector<8x8xbf16>
    %c0_34 = arith.constant 0 : index
    %c0_35 = arith.constant 0 : index
    %c0_36 = arith.constant 0 : index
    %50 = vector.load %arg10[%c0_34, %c0_35, %c0_36] : memref<4x8x32xbf16, #tpu.memory_space<vmem>>, vector<1x8x32xbf16>
    %51 = vector.shape_cast %50 : vector<1x8x32xbf16> to vector<8x32xbf16>
    %cst_37 = arith.constant dense<0.000000e+00> : vector<8x32xf32>
    %52 = tpu.matmul %49, %51, %cst_37 {dimension_numbers = #tpu.dot_dimension_numbers<[1], [0], [0], [1], [0, 0, 1, 1], [], []>} : vector<8x8xbf16>, vector<8x32xbf16>, vector<8x32xf32> -> vector<8x32xf32>
    %53 = vector.broadcast %9 : vector<1x32xf32> to vector<8x32xf32>
    %54 = arith.addf %53, %52 : vector<8x32xf32>
    %c1 = arith.constant 1 : index
    %c0_38 = arith.constant 0 : index
    %c0_39 = arith.constant 0 : index
    %55 = vector.load %arg4[%c1, %c0_38, %c0_39] : memref<4x32x8xbf16, #tpu.memory_space<vmem>>, vector<1x32x8xbf16>
    %56 = vector.shape_cast %55 : vector<1x32x8xbf16> to vector<32x8xbf16>
    %cst_40 = arith.constant dense<0.000000e+00> : vector<8x8xf32>
    %57 = tpu.matmul %8, %56, %cst_40 {dimension_numbers = #tpu.dot_dimension_numbers<[1], [0], [0], [1], [0, 0, 1, 1], [], []>} : vector<8x32xbf16>, vector<32x8xbf16>, vector<8x8xf32> -> vector<8x8xf32>
    %c1_41 = arith.constant 1 : index
    %c0_42 = arith.constant 0 : index
    %c0_43 = arith.constant 0 : index
    %58 = vector.load %arg5[%c1_41, %c0_42, %c0_43] : memref<4x1x8xf32, #tpu.memory_space<vmem>>, vector<1x1x8xf32>
    %59 = vector.shape_cast %58 : vector<1x1x8xf32> to vector<1x8xf32>
    %60 = vector.broadcast %59 : vector<1x8xf32> to vector<8x8xf32>
    %61 = arith.addf %57, %60 : vector<8x8xf32>
    %c1_44 = arith.constant 1 : index
    %c0_45 = arith.constant 0 : index
    %c0_46 = arith.constant 0 : index
    %62 = vector.load %arg6[%c1_44, %c0_45, %c0_46] : memref<4x32x8xbf16, #tpu.memory_space<vmem>>, vector<1x32x8xbf16>
    %63 = vector.shape_cast %62 : vector<1x32x8xbf16> to vector<32x8xbf16>
    %cst_47 = arith.constant dense<0.000000e+00> : vector<8x8xf32>
    %64 = tpu.matmul %8, %63, %cst_47 {dimension_numbers = #tpu.dot_dimension_numbers<[1], [0], [0], [1], [0, 0, 1, 1], [], []>} : vector<8x32xbf16>, vector<32x8xbf16>, vector<8x8xf32> -> vector<8x8xf32>
    %c1_48 = arith.constant 1 : index
    %c0_49 = arith.constant 0 : index
    %c0_50 = arith.constant 0 : index
    %65 = vector.load %arg7[%c1_48, %c0_49, %c0_50] : memref<4x1x8xf32, #tpu.memory_space<vmem>>, vector<1x1x8xf32>
    %66 = vector.shape_cast %65 : vector<1x1x8xf32> to vector<1x8xf32>
    %67 = vector.broadcast %66 : vector<1x8xf32> to vector<8x8xf32>
    %68 = arith.addf %64, %67 : vector<8x8xf32>
    %c1_51 = arith.constant 1 : index
    %c0_52 = arith.constant 0 : index
    %c0_53 = arith.constant 0 : index
    %69 = vector.load %arg8[%c1_51, %c0_52, %c0_53] : memref<4x32x8xbf16, #tpu.memory_space<vmem>>, vector<1x32x8xbf16>
    %70 = vector.shape_cast %69 : vector<1x32x8xbf16> to vector<32x8xbf16>
    %cst_54 = arith.constant dense<0.000000e+00> : vector<8x8xf32>
    %71 = tpu.matmul %8, %70, %cst_54 {dimension_numbers = #tpu.dot_dimension_numbers<[1], [0], [0], [1], [0, 0, 1, 1], [], []>} : vector<8x32xbf16>, vector<32x8xbf16>, vector<8x8xf32> -> vector<8x8xf32>
    %c1_55 = arith.constant 1 : index
    %c0_56 = arith.constant 0 : index
    %c0_57 = arith.constant 0 : index
    %72 = vector.load %arg9[%c1_55, %c0_56, %c0_57] : memref<4x1x8xf32, #tpu.memory_space<vmem>>, vector<1x1x8xf32>
    %73 = vector.shape_cast %72 : vector<1x1x8xf32> to vector<1x8xf32>
    %74 = vector.broadcast %73 : vector<1x8xf32> to vector<8x8xf32>
    %75 = arith.addf %71, %74 : vector<8x8xf32>
    %76 = arith.truncf %61 : vector<8x8xf32> to vector<8x8xbf16>
    %77 = arith.truncf %68 : vector<8x8xf32> to vector<8x8xbf16>
    %cst_58 = arith.constant dense<0.000000e+00> : vector<8x8xf32>
    %78 = tpu.matmul %76, %77, %cst_58 {dimension_numbers = #tpu.dot_dimension_numbers<[1], [1], [0], [0], [0, 0, 1, 0], [], []>} : vector<8x8xbf16>, vector<8x8xbf16>, vector<8x8xf32> -> vector<8x8xf32>
    %cst_59 = arith.constant 0.353553385 : f32
    %79 = vector.broadcast %cst_59 : f32 to vector<8x8xf32>
    %80 = arith.mulf %78, %79 : vector<8x8xf32>
    %cst_60 = arith.constant dense<0xFF800000> : vector<8xf32>
    %81 = vector.multi_reduction <maximumf>, %80, %cst_60 [1] : vector<8x8xf32> to vector<8xf32>
    %82 = vector.shape_cast %81 : vector<8xf32> to vector<8x1xf32>
    %83 = vector.broadcast %82 : vector<8x1xf32> to vector<8x8xf32>
    %84 = arith.subf %80, %83 : vector<8x8xf32>
    %85 = math.exp %84 : vector<8x8xf32>
    %cst_61 = arith.constant dense<0.000000e+00> : vector<8xf32>
    %86 = vector.multi_reduction <add>, %85, %cst_61 [1] : vector<8x8xf32> to vector<8xf32>
    %87 = vector.shape_cast %86 : vector<8xf32> to vector<8x1xf32>
    %88 = tpu.reciprocal %87 {approx = true} : vector<8x1xf32> -> vector<8x1xf32>
    %89 = vector.broadcast %88 : vector<8x1xf32> to vector<8x8xf32>
    %90 = arith.mulf %85, %89 : vector<8x8xf32>
    %91 = arith.truncf %90 : vector<8x8xf32> to vector<8x8xbf16>
    %92 = arith.truncf %75 : vector<8x8xf32> to vector<8x8xbf16>
    %cst_62 = arith.constant dense<0.000000e+00> : vector<8x8xf32>
    %93 = tpu.matmul %91, %92, %cst_62 {dimension_numbers = #tpu.dot_dimension_numbers<[1], [0], [0], [1], [0, 0, 1, 1], [], []>} : vector<8x8xbf16>, vector<8x8xbf16>, vector<8x8xf32> -> vector<8x8xf32>
    %94 = arith.truncf %93 : vector<8x8xf32> to vector<8x8xbf16>
    %c1_63 = arith.constant 1 : index
    %c0_64 = arith.constant 0 : index
    %c0_65 = arith.constant 0 : index
    %95 = vector.load %arg10[%c1_63, %c0_64, %c0_65] : memref<4x8x32xbf16, #tpu.memory_space<vmem>>, vector<1x8x32xbf16>
    %96 = vector.shape_cast %95 : vector<1x8x32xbf16> to vector<8x32xbf16>
    %cst_66 = arith.constant dense<0.000000e+00> : vector<8x32xf32>
    %97 = tpu.matmul %94, %96, %cst_66 {dimension_numbers = #tpu.dot_dimension_numbers<[1], [0], [0], [1], [0, 0, 1, 1], [], []>} : vector<8x8xbf16>, vector<8x32xbf16>, vector<8x32xf32> -> vector<8x32xf32>
    %98 = arith.addf %54, %97 : vector<8x32xf32>
    %c2 = arith.constant 2 : index
    %c0_67 = arith.constant 0 : index
    %c0_68 = arith.constant 0 : index
    %99 = vector.load %arg4[%c2, %c0_67, %c0_68] : memref<4x32x8xbf16, #tpu.memory_space<vmem>>, vector<1x32x8xbf16>
    %100 = vector.shape_cast %99 : vector<1x32x8xbf16> to vector<32x8xbf16>
    %cst_69 = arith.constant dense<0.000000e+00> : vector<8x8xf32>
    %101 = tpu.matmul %8, %100, %cst_69 {dimension_numbers = #tpu.dot_dimension_numbers<[1], [0], [0], [1], [0, 0, 1, 1], [], []>} : vector<8x32xbf16>, vector<32x8xbf16>, vector<8x8xf32> -> vector<8x8xf32>
    %c2_70 = arith.constant 2 : index
    %c0_71 = arith.constant 0 : index
    %c0_72 = arith.constant 0 : index
    %102 = vector.load %arg5[%c2_70, %c0_71, %c0_72] : memref<4x1x8xf32, #tpu.memory_space<vmem>>, vector<1x1x8xf32>
    %103 = vector.shape_cast %102 : vector<1x1x8xf32> to vector<1x8xf32>
    %104 = vector.broadcast %103 : vector<1x8xf32> to vector<8x8xf32>
    %105 = arith.addf %101, %104 : vector<8x8xf32>
    %c2_73 = arith.constant 2 : index
    %c0_74 = arith.constant 0 : index
    %c0_75 = arith.constant 0 : index
    %106 = vector.load %arg6[%c2_73, %c0_74, %c0_75] : memref<4x32x8xbf16, #tpu.memory_space<vmem>>, vector<1x32x8xbf16>
    %107 = vector.shape_cast %106 : vector<1x32x8xbf16> to vector<32x8xbf16>
    %cst_76 = arith.constant dense<0.000000e+00> : vector<8x8xf32>
    %108 = tpu.matmul %8, %107, %cst_76 {dimension_numbers = #tpu.dot_dimension_numbers<[1], [0], [0], [1], [0, 0, 1, 1], [], []>} : vector<8x32xbf16>, vector<32x8xbf16>, vector<8x8xf32> -> vector<8x8xf32>
    %c2_77 = arith.constant 2 : index
    %c0_78 = arith.constant 0 : index
    %c0_79 = arith.constant 0 : index
    %109 = vector.load %arg7[%c2_77, %c0_78, %c0_79] : memref<4x1x8xf32, #tpu.memory_space<vmem>>, vector<1x1x8xf32>
    %110 = vector.shape_cast %109 : vector<1x1x8xf32> to vector<1x8xf32>
    %111 = vector.broadcast %110 : vector<1x8xf32> to vector<8x8xf32>
    %112 = arith.addf %108, %111 : vector<8x8xf32>
    %c2_80 = arith.constant 2 : index
    %c0_81 = arith.constant 0 : index
    %c0_82 = arith.constant 0 : index
    %113 = vector.load %arg8[%c2_80, %c0_81, %c0_82] : memref<4x32x8xbf16, #tpu.memory_space<vmem>>, vector<1x32x8xbf16>
    %114 = vector.shape_cast %113 : vector<1x32x8xbf16> to vector<32x8xbf16>
    %cst_83 = arith.constant dense<0.000000e+00> : vector<8x8xf32>
    %115 = tpu.matmul %8, %114, %cst_83 {dimension_numbers = #tpu.dot_dimension_numbers<[1], [0], [0], [1], [0, 0, 1, 1], [], []>} : vector<8x32xbf16>, vector<32x8xbf16>, vector<8x8xf32> -> vector<8x8xf32>
    %c2_84 = arith.constant 2 : index
    %c0_85 = arith.constant 0 : index
    %c0_86 = arith.constant 0 : index
    %116 = vector.load %arg9[%c2_84, %c0_85, %c0_86] : memref<4x1x8xf32, #tpu.memory_space<vmem>>, vector<1x1x8xf32>
    %117 = vector.shape_cast %116 : vector<1x1x8xf32> to vector<1x8xf32>
    %118 = vector.broadcast %117 : vector<1x8xf32> to vector<8x8xf32>
    %119 = arith.addf %115, %118 : vector<8x8xf32>
    %120 = arith.truncf %105 : vector<8x8xf32> to vector<8x8xbf16>
    %121 = arith.truncf %112 : vector<8x8xf32> to vector<8x8xbf16>
    %cst_87 = arith.constant dense<0.000000e+00> : vector<8x8xf32>
    %122 = tpu.matmul %120, %121, %cst_87 {dimension_numbers = #tpu.dot_dimension_numbers<[1], [1], [0], [0], [0, 0, 1, 0], [], []>} : vector<8x8xbf16>, vector<8x8xbf16>, vector<8x8xf32> -> vector<8x8xf32>
    %cst_88 = arith.constant 0.353553385 : f32
    %123 = vector.broadcast %cst_88 : f32 to vector<8x8xf32>
    %124 = arith.mulf %122, %123 : vector<8x8xf32>
    %cst_89 = arith.constant dense<0xFF800000> : vector<8xf32>
    %125 = vector.multi_reduction <maximumf>, %124, %cst_89 [1] : vector<8x8xf32> to vector<8xf32>
    %126 = vector.shape_cast %125 : vector<8xf32> to vector<8x1xf32>
    %127 = vector.broadcast %126 : vector<8x1xf32> to vector<8x8xf32>
    %128 = arith.subf %124, %127 : vector<8x8xf32>
    %129 = math.exp %128 : vector<8x8xf32>
    %cst_90 = arith.constant dense<0.000000e+00> : vector<8xf32>
    %130 = vector.multi_reduction <add>, %129, %cst_90 [1] : vector<8x8xf32> to vector<8xf32>
    %131 = vector.shape_cast %130 : vector<8xf32> to vector<8x1xf32>
    %132 = tpu.reciprocal %131 {approx = true} : vector<8x1xf32> -> vector<8x1xf32>
    %133 = vector.broadcast %132 : vector<8x1xf32> to vector<8x8xf32>
    %134 = arith.mulf %129, %133 : vector<8x8xf32>
    %135 = arith.truncf %134 : vector<8x8xf32> to vector<8x8xbf16>
    %136 = arith.truncf %119 : vector<8x8xf32> to vector<8x8xbf16>
    %cst_91 = arith.constant dense<0.000000e+00> : vector<8x8xf32>
    %137 = tpu.matmul %135, %136, %cst_91 {dimension_numbers = #tpu.dot_dimension_numbers<[1], [0], [0], [1], [0, 0, 1, 1], [], []>} : vector<8x8xbf16>, vector<8x8xbf16>, vector<8x8xf32> -> vector<8x8xf32>
    %138 = arith.truncf %137 : vector<8x8xf32> to vector<8x8xbf16>
    %c2_92 = arith.constant 2 : index
    %c0_93 = arith.constant 0 : index
    %c0_94 = arith.constant 0 : index
    %139 = vector.load %arg10[%c2_92, %c0_93, %c0_94] : memref<4x8x32xbf16, #tpu.memory_space<vmem>>, vector<1x8x32xbf16>
    %140 = vector.shape_cast %139 : vector<1x8x32xbf16> to vector<8x32xbf16>
    %cst_95 = arith.constant dense<0.000000e+00> : vector<8x32xf32>
    %141 = tpu.matmul %138, %140, %cst_95 {dimension_numbers = #tpu.dot_dimension_numbers<[1], [0], [0], [1], [0, 0, 1, 1], [], []>} : vector<8x8xbf16>, vector<8x32xbf16>, vector<8x32xf32> -> vector<8x32xf32>
    %142 = arith.addf %98, %141 : vector<8x32xf32>
    %c3 = arith.constant 3 : index
    %c0_96 = arith.constant 0 : index
    %c0_97 = arith.constant 0 : index
    %143 = vector.load %arg4[%c3, %c0_96, %c0_97] : memref<4x32x8xbf16, #tpu.memory_space<vmem>>, vector<1x32x8xbf16>
    %144 = vector.shape_cast %143 : vector<1x32x8xbf16> to vector<32x8xbf16>
    %cst_98 = arith.constant dense<0.000000e+00> : vector<8x8xf32>
    %145 = tpu.matmul %8, %144, %cst_98 {dimension_numbers = #tpu.dot_dimension_numbers<[1], [0], [0], [1], [0, 0, 1, 1], [], []>} : vector<8x32xbf16>, vector<32x8xbf16>, vector<8x8xf32> -> vector<8x8xf32>
    %c3_99 = arith.constant 3 : index
    %c0_100 = arith.constant 0 : index
    %c0_101 = arith.constant 0 : index
    %146 = vector.load %arg5[%c3_99, %c0_100, %c0_101] : memref<4x1x8xf32, #tpu.memory_space<vmem>>, vector<1x1x8xf32>
    %147 = vector.shape_cast %146 : vector<1x1x8xf32> to vector<1x8xf32>
    %148 = vector.broadcast %147 : vector<1x8xf32> to vector<8x8xf32>
    %149 = arith.addf %145, %148 : vector<8x8xf32>
    %c3_102 = arith.constant 3 : index
    %c0_103 = arith.constant 0 : index
    %c0_104 = arith.constant 0 : index
    %150 = vector.load %arg6[%c3_102, %c0_103, %c0_104] : memref<4x32x8xbf16, #tpu.memory_space<vmem>>, vector<1x32x8xbf16>
    %151 = vector.shape_cast %150 : vector<1x32x8xbf16> to vector<32x8xbf16>
    %cst_105 = arith.constant dense<0.000000e+00> : vector<8x8xf32>
    %152 = tpu.matmul %8, %151, %cst_105 {dimension_numbers = #tpu.dot_dimension_numbers<[1], [0], [0], [1], [0, 0, 1, 1], [], []>} : vector<8x32xbf16>, vector<32x8xbf16>, vector<8x8xf32> -> vector<8x8xf32>
    %c3_106 = arith.constant 3 : index
    %c0_107 = arith.constant 0 : index
    %c0_108 = arith.constant 0 : index
    %153 = vector.load %arg7[%c3_106, %c0_107, %c0_108] : memref<4x1x8xf32, #tpu.memory_space<vmem>>, vector<1x1x8xf32>
    %154 = vector.shape_cast %153 : vector<1x1x8xf32> to vector<1x8xf32>
    %155 = vector.broadcast %154 : vector<1x8xf32> to vector<8x8xf32>
    %156 = arith.addf %152, %155 : vector<8x8xf32>
    %c3_109 = arith.constant 3 : index
    %c0_110 = arith.constant 0 : index
    %c0_111 = arith.constant 0 : index
    %157 = vector.load %arg8[%c3_109, %c0_110, %c0_111] : memref<4x32x8xbf16, #tpu.memory_space<vmem>>, vector<1x32x8xbf16>
    %158 = vector.shape_cast %157 : vector<1x32x8xbf16> to vector<32x8xbf16>
    %cst_112 = arith.constant dense<0.000000e+00> : vector<8x8xf32>
    %159 = tpu.matmul %8, %158, %cst_112 {dimension_numbers = #tpu.dot_dimension_numbers<[1], [0], [0], [1], [0, 0, 1, 1], [], []>} : vector<8x32xbf16>, vector<32x8xbf16>, vector<8x8xf32> -> vector<8x8xf32>
    %c3_113 = arith.constant 3 : index
    %c0_114 = arith.constant 0 : index
    %c0_115 = arith.constant 0 : index
    %160 = vector.load %arg9[%c3_113, %c0_114, %c0_115] : memref<4x1x8xf32, #tpu.memory_space<vmem>>, vector<1x1x8xf32>
    %161 = vector.shape_cast %160 : vector<1x1x8xf32> to vector<1x8xf32>
    %162 = vector.broadcast %161 : vector<1x8xf32> to vector<8x8xf32>
    %163 = arith.addf %159, %162 : vector<8x8xf32>
    %164 = arith.truncf %149 : vector<8x8xf32> to vector<8x8xbf16>
    %165 = arith.truncf %156 : vector<8x8xf32> to vector<8x8xbf16>
    %cst_116 = arith.constant dense<0.000000e+00> : vector<8x8xf32>
    %166 = tpu.matmul %164, %165, %cst_116 {dimension_numbers = #tpu.dot_dimension_numbers<[1], [1], [0], [0], [0, 0, 1, 0], [], []>} : vector<8x8xbf16>, vector<8x8xbf16>, vector<8x8xf32> -> vector<8x8xf32>
    %cst_117 = arith.constant 0.353553385 : f32
    %167 = vector.broadcast %cst_117 : f32 to vector<8x8xf32>
    %168 = arith.mulf %166, %167 : vector<8x8xf32>
    %cst_118 = arith.constant dense<0xFF800000> : vector<8xf32>
    %169 = vector.multi_reduction <maximumf>, %168, %cst_118 [1] : vector<8x8xf32> to vector<8xf32>
    %170 = vector.shape_cast %169 : vector<8xf32> to vector<8x1xf32>
    %171 = vector.broadcast %170 : vector<8x1xf32> to vector<8x8xf32>
    %172 = arith.subf %168, %171 : vector<8x8xf32>
    %173 = math.exp %172 : vector<8x8xf32>
    %cst_119 = arith.constant dense<0.000000e+00> : vector<8xf32>
    %174 = vector.multi_reduction <add>, %173, %cst_119 [1] : vector<8x8xf32> to vector<8xf32>
    %175 = vector.shape_cast %174 : vector<8xf32> to vector<8x1xf32>
    %176 = tpu.reciprocal %175 {approx = true} : vector<8x1xf32> -> vector<8x1xf32>
    %177 = vector.broadcast %176 : vector<8x1xf32> to vector<8x8xf32>
    %178 = arith.mulf %173, %177 : vector<8x8xf32>
    %179 = arith.truncf %178 : vector<8x8xf32> to vector<8x8xbf16>
    %180 = arith.truncf %163 : vector<8x8xf32> to vector<8x8xbf16>
    %cst_120 = arith.constant dense<0.000000e+00> : vector<8x8xf32>
    %181 = tpu.matmul %179, %180, %cst_120 {dimension_numbers = #tpu.dot_dimension_numbers<[1], [0], [0], [1], [0, 0, 1, 1], [], []>} : vector<8x8xbf16>, vector<8x8xbf16>, vector<8x8xf32> -> vector<8x8xf32>
    %182 = arith.truncf %181 : vector<8x8xf32> to vector<8x8xbf16>
    %c3_121 = arith.constant 3 : index
    %c0_122 = arith.constant 0 : index
    %c0_123 = arith.constant 0 : index
    %183 = vector.load %arg10[%c3_121, %c0_122, %c0_123] : memref<4x8x32xbf16, #tpu.memory_space<vmem>>, vector<1x8x32xbf16>
    %184 = vector.shape_cast %183 : vector<1x8x32xbf16> to vector<8x32xbf16>
    %cst_124 = arith.constant dense<0.000000e+00> : vector<8x32xf32>
    %185 = tpu.matmul %182, %184, %cst_124 {dimension_numbers = #tpu.dot_dimension_numbers<[1], [0], [0], [1], [0, 0, 1, 1], [], []>} : vector<8x8xbf16>, vector<8x32xbf16>, vector<8x32xf32> -> vector<8x32xf32>
    %186 = arith.addf %142, %185 : vector<8x32xf32>
    %187 = arith.addf %7, %186 : vector<8x32xf32>
    %c0_125 = arith.constant 0 : index
    %c0_126 = arith.constant 0 : index
    %188 = vector.load %arg12[%c0_125, %c0_126] : memref<1x32xf32, #tpu.memory_space<vmem>>, vector<1x32xf32>
    %c0_127 = arith.constant 0 : index
    %c0_128 = arith.constant 0 : index
    %189 = vector.load %arg13[%c0_127, %c0_128] : memref<1x32xf32, #tpu.memory_space<vmem>>, vector<1x32xf32>
    %cst_129 = arith.constant dense<0.000000e+00> : vector<8xf32>
    %190 = vector.multi_reduction <add>, %187, %cst_129 [1] : vector<8x32xf32> to vector<8xf32>
    %191 = vector.shape_cast %190 : vector<8xf32> to vector<8x1xf32>
    %cst_130 = arith.constant 3.200000e+01 : f32
    %192 = vector.broadcast %cst_130 : f32 to vector<8x1xf32>
    %193 = arith.divf %191, %192 : vector<8x1xf32>
    %194 = vector.broadcast %193 : vector<8x1xf32> to vector<8x32xf32>
    %195 = arith.subf %187, %194 : vector<8x32xf32>
    %196 = arith.mulf %195, %195 : vector<8x32xf32>
    %cst_131 = arith.constant dense<0.000000e+00> : vector<8xf32>
    %197 = vector.multi_reduction <add>, %196, %cst_131 [1] : vector<8x32xf32> to vector<8xf32>
    %198 = vector.shape_cast %197 : vector<8xf32> to vector<8x1xf32>
    %cst_132 = arith.constant 3.200000e+01 : f32
    %199 = vector.broadcast %cst_132 : f32 to vector<8x1xf32>
    %200 = arith.divf %198, %199 : vector<8x1xf32>
    %cst_133 = arith.constant 9.99999974E-6 : f32
    %201 = vector.broadcast %cst_133 : f32 to vector<8x1xf32>
    %202 = arith.addf %200, %201 : vector<8x1xf32>
    %203 = math.rsqrt %202 : vector<8x1xf32>
    %204 = vector.broadcast %203 : vector<8x1xf32> to vector<8x32xf32>
    %205 = arith.mulf %195, %204 : vector<8x32xf32>
    %206 = vector.broadcast %188 : vector<1x32xf32> to vector<8x32xf32>
    %207 = arith.mulf %205, %206 : vector<8x32xf32>
    %208 = vector.broadcast %189 : vector<1x32xf32> to vector<8x32xf32>
    %209 = arith.addf %207, %208 : vector<8x32xf32>
    %210 = arith.truncf %209 : vector<8x32xf32> to vector<8x32xbf16>
    %c0_134 = arith.constant 0 : index
    %c0_135 = arith.constant 0 : index
    %211 = vector.load %arg14[%c0_134, %c0_135] : memref<32x128xbf16, #tpu.memory_space<vmem>>, vector<32x128xbf16>
    %cst_136 = arith.constant dense<0.000000e+00> : vector<8x128xf32>
    %212 = tpu.matmul %210, %211, %cst_136 {dimension_numbers = #tpu.dot_dimension_numbers<[1], [0], [0], [1], [0, 0, 1, 1], [], []>} : vector<8x32xbf16>, vector<32x128xbf16>, vector<8x128xf32> -> vector<8x128xf32>
    %c0_137 = arith.constant 0 : index
    %c0_138 = arith.constant 0 : index
    %213 = vector.load %arg15[%c0_137, %c0_138] : memref<1x128xf32, #tpu.memory_space<vmem>>, vector<1x128xf32>
    %214 = vector.broadcast %213 : vector<1x128xf32> to vector<8x128xf32>
    %215 = arith.addf %212, %214 : vector<8x128xf32>
    %cst_139 = arith.constant 0.000000e+00 : f32
    %216 = vector.broadcast %cst_139 : f32 to vector<8x128xf32>
    %217 = arith.maximumf %215, %216 : vector<8x128xf32>
    %218 = arith.truncf %217 : vector<8x128xf32> to vector<8x128xbf16>
    %c0_140 = arith.constant 0 : index
    %c0_141 = arith.constant 0 : index
    %219 = vector.load %arg16[%c0_140, %c0_141] : memref<128x32xbf16, #tpu.memory_space<vmem>>, vector<128x32xbf16>
    %cst_142 = arith.constant dense<0.000000e+00> : vector<8x32xf32>
    %220 = tpu.matmul %218, %219, %cst_142 {dimension_numbers = #tpu.dot_dimension_numbers<[1], [0], [0], [1], [0, 0, 1, 1], [], []>} : vector<8x128xbf16>, vector<128x32xbf16>, vector<8x32xf32> -> vector<8x32xf32>
    %c0_143 = arith.constant 0 : index
    %c0_144 = arith.constant 0 : index
    %221 = vector.load %arg17[%c0_143, %c0_144] : memref<1x32xf32, #tpu.memory_space<vmem>>, vector<1x32xf32>
    %222 = vector.broadcast %221 : vector<1x32xf32> to vector<8x32xf32>
    %223 = arith.addf %220, %222 : vector<8x32xf32>
    %224 = arith.addf %209, %223 : vector<8x32xf32>
    %c0_145 = arith.constant 0 : index
    %c0_146 = arith.constant 0 : index
    %225 = vector.load %arg18[%c0_145, %c0_146] : memref<1x32xf32, #tpu.memory_space<vmem>>, vector<1x32xf32>
    %c0_147 = arith.constant 0 : index
    %c0_148 = arith.constant 0 : index
    %226 = vector.load %arg19[%c0_147, %c0_148] : memref<1x32xf32, #tpu.memory_space<vmem>>, vector<1x32xf32>
    %cst_149 = arith.constant dense<0.000000e+00> : vector<8xf32>
    %227 = vector.multi_reduction <add>, %224, %cst_149 [1] : vector<8x32xf32> to vector<8xf32>
    %228 = vector.shape_cast %227 : vector<8xf32> to vector<8x1xf32>
    %cst_150 = arith.constant 3.200000e+01 : f32
    %229 = vector.broadcast %cst_150 : f32 to vector<8x1xf32>
    %230 = arith.divf %228, %229 : vector<8x1xf32>
    %231 = vector.broadcast %230 : vector<8x1xf32> to vector<8x32xf32>
    %232 = arith.subf %224, %231 : vector<8x32xf32>
    %233 = arith.mulf %232, %232 : vector<8x32xf32>
    %cst_151 = arith.constant dense<0.000000e+00> : vector<8xf32>
    %234 = vector.multi_reduction <add>, %233, %cst_151 [1] : vector<8x32xf32> to vector<8xf32>
    %235 = vector.shape_cast %234 : vector<8xf32> to vector<8x1xf32>
    %cst_152 = arith.constant 3.200000e+01 : f32
    %236 = vector.broadcast %cst_152 : f32 to vector<8x1xf32>
    %237 = arith.divf %235, %236 : vector<8x1xf32>
    %cst_153 = arith.constant 9.99999974E-6 : f32
    %238 = vector.broadcast %cst_153 : f32 to vector<8x1xf32>
    %239 = arith.addf %237, %238 : vector<8x1xf32>
    %240 = math.rsqrt %239 : vector<8x1xf32>
    %241 = vector.broadcast %240 : vector<8x1xf32> to vector<8x32xf32>
    %242 = arith.mulf %232, %241 : vector<8x32xf32>
    %243 = vector.broadcast %225 : vector<1x32xf32> to vector<8x32xf32>
    %244 = arith.mulf %242, %243 : vector<8x32xf32>
    %245 = vector.broadcast %226 : vector<1x32xf32> to vector<8x32xf32>
    %246 = arith.addf %244, %245 : vector<8x32xf32>
    %247 = arith.truncf %246 : vector<8x32xf32> to vector<8x32xbf16>
    %c0_154 = arith.constant 0 : index
    %c0_155 = arith.constant 0 : index
    %248 = vector.load %arg27[%c0_154, %c0_155] : memref<1x32xf32, #tpu.memory_space<vmem>>, vector<1x32xf32>
    %c0_156 = arith.constant 0 : index
    %c0_157 = arith.constant 0 : index
    %c0_158 = arith.constant 0 : index
    %249 = vector.load %arg20[%c0_156, %c0_157, %c0_158] : memref<4x32x8xbf16, #tpu.memory_space<vmem>>, vector<1x32x8xbf16>
    %250 = vector.shape_cast %249 : vector<1x32x8xbf16> to vector<32x8xbf16>
    %cst_159 = arith.constant dense<0.000000e+00> : vector<8x8xf32>
    %251 = tpu.matmul %247, %250, %cst_159 {dimension_numbers = #tpu.dot_dimension_numbers<[1], [0], [0], [1], [0, 0, 1, 1], [], []>} : vector<8x32xbf16>, vector<32x8xbf16>, vector<8x8xf32> -> vector<8x8xf32>
    %c0_160 = arith.constant 0 : index
    %c0_161 = arith.constant 0 : index
    %c0_162 = arith.constant 0 : index
    %252 = vector.load %arg21[%c0_160, %c0_161, %c0_162] : memref<4x1x8xf32, #tpu.memory_space<vmem>>, vector<1x1x8xf32>
    %253 = vector.shape_cast %252 : vector<1x1x8xf32> to vector<1x8xf32>
    %254 = vector.broadcast %253 : vector<1x8xf32> to vector<8x8xf32>
    %255 = arith.addf %251, %254 : vector<8x8xf32>
    %c0_163 = arith.constant 0 : index
    %c0_164 = arith.constant 0 : index
    %c0_165 = arith.constant 0 : index
    %256 = vector.load %arg22[%c0_163, %c0_164, %c0_165] : memref<4x32x8xbf16, #tpu.memory_space<vmem>>, vector<1x32x8xbf16>
    %257 = vector.shape_cast %256 : vector<1x32x8xbf16> to vector<32x8xbf16>
    %cst_166 = arith.constant dense<0.000000e+00> : vector<8x8xf32>
    %258 = tpu.matmul %247, %257, %cst_166 {dimension_numbers = #tpu.dot_dimension_numbers<[1], [0], [0], [1], [0, 0, 1, 1], [], []>} : vector<8x32xbf16>, vector<32x8xbf16>, vector<8x8xf32> -> vector<8x8xf32>
    %c0_167 = arith.constant 0 : index
    %c0_168 = arith.constant 0 : index
    %c0_169 = arith.constant 0 : index
    %259 = vector.load %arg23[%c0_167, %c0_168, %c0_169] : memref<4x1x8xf32, #tpu.memory_space<vmem>>, vector<1x1x8xf32>
    %260 = vector.shape_cast %259 : vector<1x1x8xf32> to vector<1x8xf32>
    %261 = vector.broadcast %260 : vector<1x8xf32> to vector<8x8xf32>
    %262 = arith.addf %258, %261 : vector<8x8xf32>
    %c0_170 = arith.constant 0 : index
    %c0_171 = arith.constant 0 : index
    %c0_172 = arith.constant 0 : index
    %263 = vector.load %arg24[%c0_170, %c0_171, %c0_172] : memref<4x32x8xbf16, #tpu.memory_space<vmem>>, vector<1x32x8xbf16>
    %264 = vector.shape_cast %263 : vector<1x32x8xbf16> to vector<32x8xbf16>
    %cst_173 = arith.constant dense<0.000000e+00> : vector<8x8xf32>
    %265 = tpu.matmul %247, %264, %cst_173 {dimension_numbers = #tpu.dot_dimension_numbers<[1], [0], [0], [1], [0, 0, 1, 1], [], []>} : vector<8x32xbf16>, vector<32x8xbf16>, vector<8x8xf32> -> vector<8x8xf32>
    %c0_174 = arith.constant 0 : index
    %c0_175 = arith.constant 0 : index
    %c0_176 = arith.constant 0 : index
    %266 = vector.load %arg25[%c0_174, %c0_175, %c0_176] : memref<4x1x8xf32, #tpu.memory_space<vmem>>, vector<1x1x8xf32>
    %267 = vector.shape_cast %266 : vector<1x1x8xf32> to vector<1x8xf32>
    %268 = vector.broadcast %267 : vector<1x8xf32> to vector<8x8xf32>
    %269 = arith.addf %265, %268 : vector<8x8xf32>
    %270 = arith.truncf %255 : vector<8x8xf32> to vector<8x8xbf16>
    %271 = arith.truncf %262 : vector<8x8xf32> to vector<8x8xbf16>
    %cst_177 = arith.constant dense<0.000000e+00> : vector<8x8xf32>
    %272 = tpu.matmul %270, %271, %cst_177 {dimension_numbers = #tpu.dot_dimension_numbers<[1], [1], [0], [0], [0, 0, 1, 0], [], []>} : vector<8x8xbf16>, vector<8x8xbf16>, vector<8x8xf32> -> vector<8x8xf32>
    %cst_178 = arith.constant 0.353553385 : f32
    %273 = vector.broadcast %cst_178 : f32 to vector<8x8xf32>
    %274 = arith.mulf %272, %273 : vector<8x8xf32>
    %cst_179 = arith.constant dense<0xFF800000> : vector<8xf32>
    %275 = vector.multi_reduction <maximumf>, %274, %cst_179 [1] : vector<8x8xf32> to vector<8xf32>
    %276 = vector.shape_cast %275 : vector<8xf32> to vector<8x1xf32>
    %277 = vector.broadcast %276 : vector<8x1xf32> to vector<8x8xf32>
    %278 = arith.subf %274, %277 : vector<8x8xf32>
    %279 = math.exp %278 : vector<8x8xf32>
    %cst_180 = arith.constant dense<0.000000e+00> : vector<8xf32>
    %280 = vector.multi_reduction <add>, %279, %cst_180 [1] : vector<8x8xf32> to vector<8xf32>
    %281 = vector.shape_cast %280 : vector<8xf32> to vector<8x1xf32>
    %282 = tpu.reciprocal %281 {approx = true} : vector<8x1xf32> -> vector<8x1xf32>
    %283 = vector.broadcast %282 : vector<8x1xf32> to vector<8x8xf32>
    %284 = arith.mulf %279, %283 : vector<8x8xf32>
    %285 = arith.truncf %284 : vector<8x8xf32> to vector<8x8xbf16>
    %286 = arith.truncf %269 : vector<8x8xf32> to vector<8x8xbf16>
    %cst_181 = arith.constant dense<0.000000e+00> : vector<8x8xf32>
    %287 = tpu.matmul %285, %286, %cst_181 {dimension_numbers = #tpu.dot_dimension_numbers<[1], [0], [0], [1], [0, 0, 1, 1], [], []>} : vector<8x8xbf16>, vector<8x8xbf16>, vector<8x8xf32> -> vector<8x8xf32>
    %288 = arith.truncf %287 : vector<8x8xf32> to vector<8x8xbf16>
    %c0_182 = arith.constant 0 : index
    %c0_183 = arith.constant 0 : index
    %c0_184 = arith.constant 0 : index
    %289 = vector.load %arg26[%c0_182, %c0_183, %c0_184] : memref<4x8x32xbf16, #tpu.memory_space<vmem>>, vector<1x8x32xbf16>
    %290 = vector.shape_cast %289 : vector<1x8x32xbf16> to vector<8x32xbf16>
    %cst_185 = arith.constant dense<0.000000e+00> : vector<8x32xf32>
    %291 = tpu.matmul %288, %290, %cst_185 {dimension_numbers = #tpu.dot_dimension_numbers<[1], [0], [0], [1], [0, 0, 1, 1], [], []>} : vector<8x8xbf16>, vector<8x32xbf16>, vector<8x32xf32> -> vector<8x32xf32>
    %292 = vector.broadcast %248 : vector<1x32xf32> to vector<8x32xf32>
    %293 = arith.addf %292, %291 : vector<8x32xf32>
    %c1_186 = arith.constant 1 : index
    %c0_187 = arith.constant 0 : index
    %c0_188 = arith.constant 0 : index
    %294 = vector.load %arg20[%c1_186, %c0_187, %c0_188] : memref<4x32x8xbf16, #tpu.memory_space<vmem>>, vector<1x32x8xbf16>
    %295 = vector.shape_cast %294 : vector<1x32x8xbf16> to vector<32x8xbf16>
    %cst_189 = arith.constant dense<0.000000e+00> : vector<8x8xf32>
    %296 = tpu.matmul %247, %295, %cst_189 {dimension_numbers = #tpu.dot_dimension_numbers<[1], [0], [0], [1], [0, 0, 1, 1], [], []>} : vector<8x32xbf16>, vector<32x8xbf16>, vector<8x8xf32> -> vector<8x8xf32>
    %c1_190 = arith.constant 1 : index
    %c0_191 = arith.constant 0 : index
    %c0_192 = arith.constant 0 : index
    %297 = vector.load %arg21[%c1_190, %c0_191, %c0_192] : memref<4x1x8xf32, #tpu.memory_space<vmem>>, vector<1x1x8xf32>
    %298 = vector.shape_cast %297 : vector<1x1x8xf32> to vector<1x8xf32>
    %299 = vector.broadcast %298 : vector<1x8xf32> to vector<8x8xf32>
    %300 = arith.addf %296, %299 : vector<8x8xf32>
    %c1_193 = arith.constant 1 : index
    %c0_194 = arith.constant 0 : index
    %c0_195 = arith.constant 0 : index
    %301 = vector.load %arg22[%c1_193, %c0_194, %c0_195] : memref<4x32x8xbf16, #tpu.memory_space<vmem>>, vector<1x32x8xbf16>
    %302 = vector.shape_cast %301 : vector<1x32x8xbf16> to vector<32x8xbf16>
    %cst_196 = arith.constant dense<0.000000e+00> : vector<8x8xf32>
    %303 = tpu.matmul %247, %302, %cst_196 {dimension_numbers = #tpu.dot_dimension_numbers<[1], [0], [0], [1], [0, 0, 1, 1], [], []>} : vector<8x32xbf16>, vector<32x8xbf16>, vector<8x8xf32> -> vector<8x8xf32>
    %c1_197 = arith.constant 1 : index
    %c0_198 = arith.constant 0 : index
    %c0_199 = arith.constant 0 : index
    %304 = vector.load %arg23[%c1_197, %c0_198, %c0_199] : memref<4x1x8xf32, #tpu.memory_space<vmem>>, vector<1x1x8xf32>
    %305 = vector.shape_cast %304 : vector<1x1x8xf32> to vector<1x8xf32>
    %306 = vector.broadcast %305 : vector<1x8xf32> to vector<8x8xf32>
    %307 = arith.addf %303, %306 : vector<8x8xf32>
    %c1_200 = arith.constant 1 : index
    %c0_201 = arith.constant 0 : index
    %c0_202 = arith.constant 0 : index
    %308 = vector.load %arg24[%c1_200, %c0_201, %c0_202] : memref<4x32x8xbf16, #tpu.memory_space<vmem>>, vector<1x32x8xbf16>
    %309 = vector.shape_cast %308 : vector<1x32x8xbf16> to vector<32x8xbf16>
    %cst_203 = arith.constant dense<0.000000e+00> : vector<8x8xf32>
    %310 = tpu.matmul %247, %309, %cst_203 {dimension_numbers = #tpu.dot_dimension_numbers<[1], [0], [0], [1], [0, 0, 1, 1], [], []>} : vector<8x32xbf16>, vector<32x8xbf16>, vector<8x8xf32> -> vector<8x8xf32>
    %c1_204 = arith.constant 1 : index
    %c0_205 = arith.constant 0 : index
    %c0_206 = arith.constant 0 : index
    %311 = vector.load %arg25[%c1_204, %c0_205, %c0_206] : memref<4x1x8xf32, #tpu.memory_space<vmem>>, vector<1x1x8xf32>
    %312 = vector.shape_cast %311 : vector<1x1x8xf32> to vector<1x8xf32>
    %313 = vector.broadcast %312 : vector<1x8xf32> to vector<8x8xf32>
    %314 = arith.addf %310, %313 : vector<8x8xf32>
    %315 = arith.truncf %300 : vector<8x8xf32> to vector<8x8xbf16>
    %316 = arith.truncf %307 : vector<8x8xf32> to vector<8x8xbf16>
    %cst_207 = arith.constant dense<0.000000e+00> : vector<8x8xf32>
    %317 = tpu.matmul %315, %316, %cst_207 {dimension_numbers = #tpu.dot_dimension_numbers<[1], [1], [0], [0], [0, 0, 1, 0], [], []>} : vector<8x8xbf16>, vector<8x8xbf16>, vector<8x8xf32> -> vector<8x8xf32>
    %cst_208 = arith.constant 0.353553385 : f32
    %318 = vector.broadcast %cst_208 : f32 to vector<8x8xf32>
    %319 = arith.mulf %317, %318 : vector<8x8xf32>
    %cst_209 = arith.constant dense<0xFF800000> : vector<8xf32>
    %320 = vector.multi_reduction <maximumf>, %319, %cst_209 [1] : vector<8x8xf32> to vector<8xf32>
    %321 = vector.shape_cast %320 : vector<8xf32> to vector<8x1xf32>
    %322 = vector.broadcast %321 : vector<8x1xf32> to vector<8x8xf32>
    %323 = arith.subf %319, %322 : vector<8x8xf32>
    %324 = math.exp %323 : vector<8x8xf32>
    %cst_210 = arith.constant dense<0.000000e+00> : vector<8xf32>
    %325 = vector.multi_reduction <add>, %324, %cst_210 [1] : vector<8x8xf32> to vector<8xf32>
    %326 = vector.shape_cast %325 : vector<8xf32> to vector<8x1xf32>
    %327 = tpu.reciprocal %326 {approx = true} : vector<8x1xf32> -> vector<8x1xf32>
    %328 = vector.broadcast %327 : vector<8x1xf32> to vector<8x8xf32>
    %329 = arith.mulf %324, %328 : vector<8x8xf32>
    %330 = arith.truncf %329 : vector<8x8xf32> to vector<8x8xbf16>
    %331 = arith.truncf %314 : vector<8x8xf32> to vector<8x8xbf16>
    %cst_211 = arith.constant dense<0.000000e+00> : vector<8x8xf32>
    %332 = tpu.matmul %330, %331, %cst_211 {dimension_numbers = #tpu.dot_dimension_numbers<[1], [0], [0], [1], [0, 0, 1, 1], [], []>} : vector<8x8xbf16>, vector<8x8xbf16>, vector<8x8xf32> -> vector<8x8xf32>
    %333 = arith.truncf %332 : vector<8x8xf32> to vector<8x8xbf16>
    %c1_212 = arith.constant 1 : index
    %c0_213 = arith.constant 0 : index
    %c0_214 = arith.constant 0 : index
    %334 = vector.load %arg26[%c1_212, %c0_213, %c0_214] : memref<4x8x32xbf16, #tpu.memory_space<vmem>>, vector<1x8x32xbf16>
    %335 = vector.shape_cast %334 : vector<1x8x32xbf16> to vector<8x32xbf16>
    %cst_215 = arith.constant dense<0.000000e+00> : vector<8x32xf32>
    %336 = tpu.matmul %333, %335, %cst_215 {dimension_numbers = #tpu.dot_dimension_numbers<[1], [0], [0], [1], [0, 0, 1, 1], [], []>} : vector<8x8xbf16>, vector<8x32xbf16>, vector<8x32xf32> -> vector<8x32xf32>
    %337 = arith.addf %293, %336 : vector<8x32xf32>
    %c2_216 = arith.constant 2 : index
    %c0_217 = arith.constant 0 : index
    %c0_218 = arith.constant 0 : index
    %338 = vector.load %arg20[%c2_216, %c0_217, %c0_218] : memref<4x32x8xbf16, #tpu.memory_space<vmem>>, vector<1x32x8xbf16>
    %339 = vector.shape_cast %338 : vector<1x32x8xbf16> to vector<32x8xbf16>
    %cst_219 = arith.constant dense<0.000000e+00> : vector<8x8xf32>
    %340 = tpu.matmul %247, %339, %cst_219 {dimension_numbers = #tpu.dot_dimension_numbers<[1], [0], [0], [1], [0, 0, 1, 1], [], []>} : vector<8x32xbf16>, vector<32x8xbf16>, vector<8x8xf32> -> vector<8x8xf32>
    %c2_220 = arith.constant 2 : index
    %c0_221 = arith.constant 0 : index
    %c0_222 = arith.constant 0 : index
    %341 = vector.load %arg21[%c2_220, %c0_221, %c0_222] : memref<4x1x8xf32, #tpu.memory_space<vmem>>, vector<1x1x8xf32>
    %342 = vector.shape_cast %341 : vector<1x1x8xf32> to vector<1x8xf32>
    %343 = vector.broadcast %342 : vector<1x8xf32> to vector<8x8xf32>
    %344 = arith.addf %340, %343 : vector<8x8xf32>
    %c2_223 = arith.constant 2 : index
    %c0_224 = arith.constant 0 : index
    %c0_225 = arith.constant 0 : index
    %345 = vector.load %arg22[%c2_223, %c0_224, %c0_225] : memref<4x32x8xbf16, #tpu.memory_space<vmem>>, vector<1x32x8xbf16>
    %346 = vector.shape_cast %345 : vector<1x32x8xbf16> to vector<32x8xbf16>
    %cst_226 = arith.constant dense<0.000000e+00> : vector<8x8xf32>
    %347 = tpu.matmul %247, %346, %cst_226 {dimension_numbers = #tpu.dot_dimension_numbers<[1], [0], [0], [1], [0, 0, 1, 1], [], []>} : vector<8x32xbf16>, vector<32x8xbf16>, vector<8x8xf32> -> vector<8x8xf32>
    %c2_227 = arith.constant 2 : index
    %c0_228 = arith.constant 0 : index
    %c0_229 = arith.constant 0 : index
    %348 = vector.load %arg23[%c2_227, %c0_228, %c0_229] : memref<4x1x8xf32, #tpu.memory_space<vmem>>, vector<1x1x8xf32>
    %349 = vector.shape_cast %348 : vector<1x1x8xf32> to vector<1x8xf32>
    %350 = vector.broadcast %349 : vector<1x8xf32> to vector<8x8xf32>
    %351 = arith.addf %347, %350 : vector<8x8xf32>
    %c2_230 = arith.constant 2 : index
    %c0_231 = arith.constant 0 : index
    %c0_232 = arith.constant 0 : index
    %352 = vector.load %arg24[%c2_230, %c0_231, %c0_232] : memref<4x32x8xbf16, #tpu.memory_space<vmem>>, vector<1x32x8xbf16>
    %353 = vector.shape_cast %352 : vector<1x32x8xbf16> to vector<32x8xbf16>
    %cst_233 = arith.constant dense<0.000000e+00> : vector<8x8xf32>
    %354 = tpu.matmul %247, %353, %cst_233 {dimension_numbers = #tpu.dot_dimension_numbers<[1], [0], [0], [1], [0, 0, 1, 1], [], []>} : vector<8x32xbf16>, vector<32x8xbf16>, vector<8x8xf32> -> vector<8x8xf32>
    %c2_234 = arith.constant 2 : index
    %c0_235 = arith.constant 0 : index
    %c0_236 = arith.constant 0 : index
    %355 = vector.load %arg25[%c2_234, %c0_235, %c0_236] : memref<4x1x8xf32, #tpu.memory_space<vmem>>, vector<1x1x8xf32>
    %356 = vector.shape_cast %355 : vector<1x1x8xf32> to vector<1x8xf32>
    %357 = vector.broadcast %356 : vector<1x8xf32> to vector<8x8xf32>
    %358 = arith.addf %354, %357 : vector<8x8xf32>
    %359 = arith.truncf %344 : vector<8x8xf32> to vector<8x8xbf16>
    %360 = arith.truncf %351 : vector<8x8xf32> to vector<8x8xbf16>
    %cst_237 = arith.constant dense<0.000000e+00> : vector<8x8xf32>
    %361 = tpu.matmul %359, %360, %cst_237 {dimension_numbers = #tpu.dot_dimension_numbers<[1], [1], [0], [0], [0, 0, 1, 0], [], []>} : vector<8x8xbf16>, vector<8x8xbf16>, vector<8x8xf32> -> vector<8x8xf32>
    %cst_238 = arith.constant 0.353553385 : f32
    %362 = vector.broadcast %cst_238 : f32 to vector<8x8xf32>
    %363 = arith.mulf %361, %362 : vector<8x8xf32>
    %cst_239 = arith.constant dense<0xFF800000> : vector<8xf32>
    %364 = vector.multi_reduction <maximumf>, %363, %cst_239 [1] : vector<8x8xf32> to vector<8xf32>
    %365 = vector.shape_cast %364 : vector<8xf32> to vector<8x1xf32>
    %366 = vector.broadcast %365 : vector<8x1xf32> to vector<8x8xf32>
    %367 = arith.subf %363, %366 : vector<8x8xf32>
    %368 = math.exp %367 : vector<8x8xf32>
    %cst_240 = arith.constant dense<0.000000e+00> : vector<8xf32>
    %369 = vector.multi_reduction <add>, %368, %cst_240 [1] : vector<8x8xf32> to vector<8xf32>
    %370 = vector.shape_cast %369 : vector<8xf32> to vector<8x1xf32>
    %371 = tpu.reciprocal %370 {approx = true} : vector<8x1xf32> -> vector<8x1xf32>
    %372 = vector.broadcast %371 : vector<8x1xf32> to vector<8x8xf32>
    %373 = arith.mulf %368, %372 : vector<8x8xf32>
    %374 = arith.truncf %373 : vector<8x8xf32> to vector<8x8xbf16>
    %375 = arith.truncf %358 : vector<8x8xf32> to vector<8x8xbf16>
    %cst_241 = arith.constant dense<0.000000e+00> : vector<8x8xf32>
    %376 = tpu.matmul %374, %375, %cst_241 {dimension_numbers = #tpu.dot_dimension_numbers<[1], [0], [0], [1], [0, 0, 1, 1], [], []>} : vector<8x8xbf16>, vector<8x8xbf16>, vector<8x8xf32> -> vector<8x8xf32>
    %377 = arith.truncf %376 : vector<8x8xf32> to vector<8x8xbf16>
    %c2_242 = arith.constant 2 : index
    %c0_243 = arith.constant 0 : index
    %c0_244 = arith.constant 0 : index
    %378 = vector.load %arg26[%c2_242, %c0_243, %c0_244] : memref<4x8x32xbf16, #tpu.memory_space<vmem>>, vector<1x8x32xbf16>
    %379 = vector.shape_cast %378 : vector<1x8x32xbf16> to vector<8x32xbf16>
    %cst_245 = arith.constant dense<0.000000e+00> : vector<8x32xf32>
    %380 = tpu.matmul %377, %379, %cst_245 {dimension_numbers = #tpu.dot_dimension_numbers<[1], [0], [0], [1], [0, 0, 1, 1], [], []>} : vector<8x8xbf16>, vector<8x32xbf16>, vector<8x32xf32> -> vector<8x32xf32>
    %381 = arith.addf %337, %380 : vector<8x32xf32>
    %c3_246 = arith.constant 3 : index
    %c0_247 = arith.constant 0 : index
    %c0_248 = arith.constant 0 : index
    %382 = vector.load %arg20[%c3_246, %c0_247, %c0_248] : memref<4x32x8xbf16, #tpu.memory_space<vmem>>, vector<1x32x8xbf16>
    %383 = vector.shape_cast %382 : vector<1x32x8xbf16> to vector<32x8xbf16>
    %cst_249 = arith.constant dense<0.000000e+00> : vector<8x8xf32>
    %384 = tpu.matmul %247, %383, %cst_249 {dimension_numbers = #tpu.dot_dimension_numbers<[1], [0], [0], [1], [0, 0, 1, 1], [], []>} : vector<8x32xbf16>, vector<32x8xbf16>, vector<8x8xf32> -> vector<8x8xf32>
    %c3_250 = arith.constant 3 : index
    %c0_251 = arith.constant 0 : index
    %c0_252 = arith.constant 0 : index
    %385 = vector.load %arg21[%c3_250, %c0_251, %c0_252] : memref<4x1x8xf32, #tpu.memory_space<vmem>>, vector<1x1x8xf32>
    %386 = vector.shape_cast %385 : vector<1x1x8xf32> to vector<1x8xf32>
    %387 = vector.broadcast %386 : vector<1x8xf32> to vector<8x8xf32>
    %388 = arith.addf %384, %387 : vector<8x8xf32>
    %c3_253 = arith.constant 3 : index
    %c0_254 = arith.constant 0 : index
    %c0_255 = arith.constant 0 : index
    %389 = vector.load %arg22[%c3_253, %c0_254, %c0_255] : memref<4x32x8xbf16, #tpu.memory_space<vmem>>, vector<1x32x8xbf16>
    %390 = vector.shape_cast %389 : vector<1x32x8xbf16> to vector<32x8xbf16>
    %cst_256 = arith.constant dense<0.000000e+00> : vector<8x8xf32>
    %391 = tpu.matmul %247, %390, %cst_256 {dimension_numbers = #tpu.dot_dimension_numbers<[1], [0], [0], [1], [0, 0, 1, 1], [], []>} : vector<8x32xbf16>, vector<32x8xbf16>, vector<8x8xf32> -> vector<8x8xf32>
    %c3_257 = arith.constant 3 : index
    %c0_258 = arith.constant 0 : index
    %c0_259 = arith.constant 0 : index
    %392 = vector.load %arg23[%c3_257, %c0_258, %c0_259] : memref<4x1x8xf32, #tpu.memory_space<vmem>>, vector<1x1x8xf32>
    %393 = vector.shape_cast %392 : vector<1x1x8xf32> to vector<1x8xf32>
    %394 = vector.broadcast %393 : vector<1x8xf32> to vector<8x8xf32>
    %395 = arith.addf %391, %394 : vector<8x8xf32>
    %c3_260 = arith.constant 3 : index
    %c0_261 = arith.constant 0 : index
    %c0_262 = arith.constant 0 : index
    %396 = vector.load %arg24[%c3_260, %c0_261, %c0_262] : memref<4x32x8xbf16, #tpu.memory_space<vmem>>, vector<1x32x8xbf16>
    %397 = vector.shape_cast %396 : vector<1x32x8xbf16> to vector<32x8xbf16>
    %cst_263 = arith.constant dense<0.000000e+00> : vector<8x8xf32>
    %398 = tpu.matmul %247, %397, %cst_263 {dimension_numbers = #tpu.dot_dimension_numbers<[1], [0], [0], [1], [0, 0, 1, 1], [], []>} : vector<8x32xbf16>, vector<32x8xbf16>, vector<8x8xf32> -> vector<8x8xf32>
    %c3_264 = arith.constant 3 : index
    %c0_265 = arith.constant 0 : index
    %c0_266 = arith.constant 0 : index
    %399 = vector.load %arg25[%c3_264, %c0_265, %c0_266] : memref<4x1x8xf32, #tpu.memory_space<vmem>>, vector<1x1x8xf32>
    %400 = vector.shape_cast %399 : vector<1x1x8xf32> to vector<1x8xf32>
    %401 = vector.broadcast %400 : vector<1x8xf32> to vector<8x8xf32>
    %402 = arith.addf %398, %401 : vector<8x8xf32>
    %403 = arith.truncf %388 : vector<8x8xf32> to vector<8x8xbf16>
    %404 = arith.truncf %395 : vector<8x8xf32> to vector<8x8xbf16>
    %cst_267 = arith.constant dense<0.000000e+00> : vector<8x8xf32>
    %405 = tpu.matmul %403, %404, %cst_267 {dimension_numbers = #tpu.dot_dimension_numbers<[1], [1], [0], [0], [0, 0, 1, 0], [], []>} : vector<8x8xbf16>, vector<8x8xbf16>, vector<8x8xf32> -> vector<8x8xf32>
    %cst_268 = arith.constant 0.353553385 : f32
    %406 = vector.broadcast %cst_268 : f32 to vector<8x8xf32>
    %407 = arith.mulf %405, %406 : vector<8x8xf32>
    %cst_269 = arith.constant dense<0xFF800000> : vector<8xf32>
    %408 = vector.multi_reduction <maximumf>, %407, %cst_269 [1] : vector<8x8xf32> to vector<8xf32>
    %409 = vector.shape_cast %408 : vector<8xf32> to vector<8x1xf32>
    %410 = vector.broadcast %409 : vector<8x1xf32> to vector<8x8xf32>
    %411 = arith.subf %407, %410 : vector<8x8xf32>
    %412 = math.exp %411 : vector<8x8xf32>
    %cst_270 = arith.constant dense<0.000000e+00> : vector<8xf32>
    %413 = vector.multi_reduction <add>, %412, %cst_270 [1] : vector<8x8xf32> to vector<8xf32>
    %414 = vector.shape_cast %413 : vector<8xf32> to vector<8x1xf32>
    %415 = tpu.reciprocal %414 {approx = true} : vector<8x1xf32> -> vector<8x1xf32>
    %416 = vector.broadcast %415 : vector<8x1xf32> to vector<8x8xf32>
    %417 = arith.mulf %412, %416 : vector<8x8xf32>
    %418 = arith.truncf %417 : vector<8x8xf32> to vector<8x8xbf16>
    %419 = arith.truncf %402 : vector<8x8xf32> to vector<8x8xbf16>
    %cst_271 = arith.constant dense<0.000000e+00> : vector<8x8xf32>
    %420 = tpu.matmul %418, %419, %cst_271 {dimension_numbers = #tpu.dot_dimension_numbers<[1], [0], [0], [1], [0, 0, 1, 1], [], []>} : vector<8x8xbf16>, vector<8x8xbf16>, vector<8x8xf32> -> vector<8x8xf32>
    %421 = arith.truncf %420 : vector<8x8xf32> to vector<8x8xbf16>
    %c3_272 = arith.constant 3 : index
    %c0_273 = arith.constant 0 : index
    %c0_274 = arith.constant 0 : index
    %422 = vector.load %arg26[%c3_272, %c0_273, %c0_274] : memref<4x8x32xbf16, #tpu.memory_space<vmem>>, vector<1x8x32xbf16>
    %423 = vector.shape_cast %422 : vector<1x8x32xbf16> to vector<8x32xbf16>
    %cst_275 = arith.constant dense<0.000000e+00> : vector<8x32xf32>
    %424 = tpu.matmul %421, %423, %cst_275 {dimension_numbers = #tpu.dot_dimension_numbers<[1], [0], [0], [1], [0, 0, 1, 1], [], []>} : vector<8x8xbf16>, vector<8x32xbf16>, vector<8x32xf32> -> vector<8x32xf32>
    %425 = arith.addf %381, %424 : vector<8x32xf32>
    %426 = arith.addf %246, %425 : vector<8x32xf32>
    %c0_276 = arith.constant 0 : index
    %c0_277 = arith.constant 0 : index
    %427 = vector.load %arg28[%c0_276, %c0_277] : memref<1x32xf32, #tpu.memory_space<vmem>>, vector<1x32xf32>
    %c0_278 = arith.constant 0 : index
    %c0_279 = arith.constant 0 : index
    %428 = vector.load %arg29[%c0_278, %c0_279] : memref<1x32xf32, #tpu.memory_space<vmem>>, vector<1x32xf32>
    %cst_280 = arith.constant dense<0.000000e+00> : vector<8xf32>
    %429 = vector.multi_reduction <add>, %426, %cst_280 [1] : vector<8x32xf32> to vector<8xf32>
    %430 = vector.shape_cast %429 : vector<8xf32> to vector<8x1xf32>
    %cst_281 = arith.constant 3.200000e+01 : f32
    %431 = vector.broadcast %cst_281 : f32 to vector<8x1xf32>
    %432 = arith.divf %430, %431 : vector<8x1xf32>
    %433 = vector.broadcast %432 : vector<8x1xf32> to vector<8x32xf32>
    %434 = arith.subf %426, %433 : vector<8x32xf32>
    %435 = arith.mulf %434, %434 : vector<8x32xf32>
    %cst_282 = arith.constant dense<0.000000e+00> : vector<8xf32>
    %436 = vector.multi_reduction <add>, %435, %cst_282 [1] : vector<8x32xf32> to vector<8xf32>
    %437 = vector.shape_cast %436 : vector<8xf32> to vector<8x1xf32>
    %cst_283 = arith.constant 3.200000e+01 : f32
    %438 = vector.broadcast %cst_283 : f32 to vector<8x1xf32>
    %439 = arith.divf %437, %438 : vector<8x1xf32>
    %cst_284 = arith.constant 9.99999974E-6 : f32
    %440 = vector.broadcast %cst_284 : f32 to vector<8x1xf32>
    %441 = arith.addf %439, %440 : vector<8x1xf32>
    %442 = math.rsqrt %441 : vector<8x1xf32>
    %443 = vector.broadcast %442 : vector<8x1xf32> to vector<8x32xf32>
    %444 = arith.mulf %434, %443 : vector<8x32xf32>
    %445 = vector.broadcast %427 : vector<1x32xf32> to vector<8x32xf32>
    %446 = arith.mulf %444, %445 : vector<8x32xf32>
    %447 = vector.broadcast %428 : vector<1x32xf32> to vector<8x32xf32>
    %448 = arith.addf %446, %447 : vector<8x32xf32>
    %449 = arith.truncf %448 : vector<8x32xf32> to vector<8x32xbf16>
    %c0_285 = arith.constant 0 : index
    %c0_286 = arith.constant 0 : index
    %450 = vector.load %arg30[%c0_285, %c0_286] : memref<32x128xbf16, #tpu.memory_space<vmem>>, vector<32x128xbf16>
    %cst_287 = arith.constant dense<0.000000e+00> : vector<8x128xf32>
    %451 = tpu.matmul %449, %450, %cst_287 {dimension_numbers = #tpu.dot_dimension_numbers<[1], [0], [0], [1], [0, 0, 1, 1], [], []>} : vector<8x32xbf16>, vector<32x128xbf16>, vector<8x128xf32> -> vector<8x128xf32>
    %c0_288 = arith.constant 0 : index
    %c0_289 = arith.constant 0 : index
    %452 = vector.load %arg31[%c0_288, %c0_289] : memref<1x128xf32, #tpu.memory_space<vmem>>, vector<1x128xf32>
    %453 = vector.broadcast %452 : vector<1x128xf32> to vector<8x128xf32>
    %454 = arith.addf %451, %453 : vector<8x128xf32>
    %cst_290 = arith.constant 0.000000e+00 : f32
    %455 = vector.broadcast %cst_290 : f32 to vector<8x128xf32>
    %456 = arith.maximumf %454, %455 : vector<8x128xf32>
    %457 = arith.truncf %456 : vector<8x128xf32> to vector<8x128xbf16>
    %c0_291 = arith.constant 0 : index
    %c0_292 = arith.constant 0 : index
    %458 = vector.load %arg32[%c0_291, %c0_292] : memref<128x32xbf16, #tpu.memory_space<vmem>>, vector<128x32xbf16>
    %cst_293 = arith.constant dense<0.000000e+00> : vector<8x32xf32>
    %459 = tpu.matmul %457, %458, %cst_293 {dimension_numbers = #tpu.dot_dimension_numbers<[1], [0], [0], [1], [0, 0, 1, 1], [], []>} : vector<8x128xbf16>, vector<128x32xbf16>, vector<8x32xf32> -> vector<8x32xf32>
    %c0_294 = arith.constant 0 : index
    %c0_295 = arith.constant 0 : index
    %460 = vector.load %arg33[%c0_294, %c0_295] : memref<1x32xf32, #tpu.memory_space<vmem>>, vector<1x32xf32>
    %461 = vector.broadcast %460 : vector<1x32xf32> to vector<8x32xf32>
    %462 = arith.addf %459, %461 : vector<8x32xf32>
    %463 = arith.addf %448, %462 : vector<8x32xf32>
    %c0_296 = arith.constant 0 : index
    %c0_297 = arith.constant 0 : index
    %464 = vector.load %arg34[%c0_296, %c0_297] : memref<1x32xf32, #tpu.memory_space<vmem>>, vector<1x32xf32>
    %c0_298 = arith.constant 0 : index
    %c0_299 = arith.constant 0 : index
    %465 = vector.load %arg35[%c0_298, %c0_299] : memref<1x32xf32, #tpu.memory_space<vmem>>, vector<1x32xf32>
    %cst_300 = arith.constant dense<0.000000e+00> : vector<8xf32>
    %466 = vector.multi_reduction <add>, %463, %cst_300 [1] : vector<8x32xf32> to vector<8xf32>
    %467 = vector.shape_cast %466 : vector<8xf32> to vector<8x1xf32>
    %cst_301 = arith.constant 3.200000e+01 : f32
    %468 = vector.broadcast %cst_301 : f32 to vector<8x1xf32>
    %469 = arith.divf %467, %468 : vector<8x1xf32>
    %470 = vector.broadcast %469 : vector<8x1xf32> to vector<8x32xf32>
    %471 = arith.subf %463, %470 : vector<8x32xf32>
    %472 = arith.mulf %471, %471 : vector<8x32xf32>
    %cst_302 = arith.constant dense<0.000000e+00> : vector<8xf32>
    %473 = vector.multi_reduction <add>, %472, %cst_302 [1] : vector<8x32xf32> to vector<8xf32>
    %474 = vector.shape_cast %473 : vector<8xf32> to vector<8x1xf32>
    %cst_303 = arith.constant 3.200000e+01 : f32
    %475 = vector.broadcast %cst_303 : f32 to vector<8x1xf32>
    %476 = arith.divf %474, %475 : vector<8x1xf32>
    %cst_304 = arith.constant 9.99999974E-6 : f32
    %477 = vector.broadcast %cst_304 : f32 to vector<8x1xf32>
    %478 = arith.addf %476, %477 : vector<8x1xf32>
    %479 = math.rsqrt %478 : vector<8x1xf32>
    %480 = vector.broadcast %479 : vector<8x1xf32> to vector<8x32xf32>
    %481 = arith.mulf %471, %480 : vector<8x32xf32>
    %482 = vector.broadcast %464 : vector<1x32xf32> to vector<8x32xf32>
    %483 = arith.mulf %481, %482 : vector<8x32xf32>
    %484 = vector.broadcast %465 : vector<1x32xf32> to vector<8x32xf32>
    %485 = arith.addf %483, %484 : vector<8x32xf32>
    %486 = arith.truncf %485 : vector<8x32xf32> to vector<8x32xbf16>
    %c0_305 = arith.constant 0 : index
    %c0_306 = arith.constant 0 : index
    %487 = vector.load %arg36[%c0_305, %c0_306] : memref<32x16xbf16, #tpu.memory_space<vmem>>, vector<32x16xbf16>
    %cst_307 = arith.constant dense<0.000000e+00> : vector<8x16xf32>
    %488 = tpu.matmul %486, %487, %cst_307 {dimension_numbers = #tpu.dot_dimension_numbers<[1], [0], [0], [1], [0, 0, 1, 1], [], []>} : vector<8x32xbf16>, vector<32x16xbf16>, vector<8x16xf32> -> vector<8x16xf32>
    %c0_308 = arith.constant 0 : index
    %c0_309 = arith.constant 0 : index
    %489 = vector.load %arg37[%c0_308, %c0_309] : memref<1x16xf32, #tpu.memory_space<vmem>>, vector<1x16xf32>
    %490 = vector.broadcast %489 : vector<1x16xf32> to vector<8x16xf32>
    %491 = arith.addf %488, %490 : vector<8x16xf32>
    %c0_310 = arith.constant 0 : index
    %c0_311 = arith.constant 0 : index
    %c0_312 = arith.constant 0 : index
    %492 = vector.load %arg38[%c0_310, %c0_311, %c0_312] : memref<1x8x16xf32, #tpu.memory_space<vmem>>, vector<1x8x16xf32>
    %493 = vector.shape_cast %492 : vector<1x8x16xf32> to vector<8x16xf32>
    %494 = vector.shape_cast %491 : vector<8x16xf32> to vector<1x8x16xf32>
    tpu.vector_store %arg38[%c0_310, %c0_311, %c0_312], %494 {strides = array<i32>} : memref<1x8x16xf32, #tpu.memory_space<vmem>>, vector<1x8x16xf32>,
    return
  }
  func.func @transform_0(%arg0: i32) -> (i32, i32, i32) {
    %c0_i32 = arith.constant 0 : i32
    %c0_i32_0 = arith.constant 0 : i32
    %c0_i32_1 = arith.constant 0 : i32
    return %arg0, %c0_i32, %c0_i32_0 : i32, i32, i32
  }
  func.func @transform_1(%arg0: i32) -> (i32, i32) {
    %c0_i32 = arith.constant 0 : i32
    %c0_i32_0 = arith.constant 0 : i32
    %c0_i32_1 = arith.constant 0 : i32
    return %c0_i32, %c0_i32_0 : i32, i32
  }
  func.func @transform_2(%arg0: i32) -> (i32, i32) {
    %c0_i32 = arith.constant 0 : i32
    %c0_i32_0 = arith.constant 0 : i32
    %c0_i32_1 = arith.constant 0 : i32
    return %c0_i32, %c0_i32_0 : i32, i32
  }
  func.func @transform_3(%arg0: i32) -> (i32, i32, i32) {
    %c0_i32 = arith.constant 0 : i32
    %c0_i32_0 = arith.constant 0 : i32
    %c0_i32_1 = arith.constant 0 : i32
    %c0_i32_2 = arith.constant 0 : i32
    return %c0_i32, %c0_i32_0, %c0_i32_1 : i32, i32, i32
  }
  func.func @transform_4(%arg0: i32) -> (i32, i32, i32) {
    %c0_i32 = arith.constant 0 : i32
    %c0_i32_0 = arith.constant 0 : i32
    %c0_i32_1 = arith.constant 0 : i32
    %c0_i32_2 = arith.constant 0 : i32
    return %c0_i32, %c0_i32_0, %c0_i32_1 : i32, i32, i32
  }
  func.func @transform_5(%arg0: i32) -> (i32, i32, i32) {
    %c0_i32 = arith.constant 0 : i32
    %c0_i32_0 = arith.constant 0 : i32
    %c0_i32_1 = arith.constant 0 : i32
    %c0_i32_2 = arith.constant 0 : i32
    return %c0_i32, %c0_i32_0, %c0_i32_1 : i32, i32, i32
  }
  func.func @transform_6(%arg0: i32) -> (i32, i32, i32) {
    %c0_i32 = arith.constant 0 : i32
    %c0_i32_0 = arith.constant 0 : i32
    %c0_i32_1 = arith.constant 0 : i32
    %c0_i32_2 = arith.constant 0 : i32
    return %c0_i32, %c0_i32_0, %c0_i32_1 : i32, i32, i32
  }
  func.func @transform_7(%arg0: i32) -> (i32, i32, i32) {
    %c0_i32 = arith.constant 0 : i32
    %c0_i32_0 = arith.constant 0 : i32
    %c0_i32_1 = arith.constant 0 : i32
    %c0_i32_2 = arith.constant 0 : i32
    return %c0_i32, %c0_i32_0, %c0_i32_1 : i32, i32, i32
  }
  func.func @transform_8(%arg0: i32) -> (i32, i32, i32) {
    %c0_i32 = arith.constant 0 : i32
    %c0_i32_0 = arith.constant 0 : i32
    %c0_i32_1 = arith.constant 0 : i32
    %c0_i32_2 = arith.constant 0 : i32
    return %c0_i32, %c0_i32_0, %c0_i32_1 : i32, i32, i32
  }
  func.func @transform_9(%arg0: i32) -> (i32, i32, i32) {
    %c0_i32 = arith.constant 0 : i32
    %c0_i32_0 = arith.constant 0 : i32
    %c0_i32_1 = arith.constant 0 : i32
    %c0_i32_2 = arith.constant 0 : i32
    return %c0_i32, %c0_i32_0, %c0_i32_1 : i32, i32, i32
  }
  func.func @transform_10(%arg0: i32) -> (i32, i32) {
    %c0_i32 = arith.constant 0 : i32
    %c0_i32_0 = arith.constant 0 : i32
    %c0_i32_1 = arith.constant 0 : i32
    return %c0_i32, %c0_i32_0 : i32, i32
  }
  func.func @transform_11(%arg0: i32) -> (i32, i32) {
    %c0_i32 = arith.constant 0 : i32
    %c0_i32_0 = arith.constant 0 : i32
    %c0_i32_1 = arith.constant 0 : i32
    return %c0_i32, %c0_i32_0 : i32, i32
  }
  func.func @transform_12(%arg0: i32) -> (i32, i32) {
    %c0_i32 = arith.constant 0 : i32
    %c0_i32_0 = arith.constant 0 : i32
    %c0_i32_1 = arith.constant 0 : i32
    return %c0_i32, %c0_i32_0 : i32, i32
  }
  func.func @transform_13(%arg0: i32) -> (i32, i32) {
    %c0_i32 = arith.constant 0 : i32
    %c0_i32_0 = arith.constant 0 : i32
    %c0_i32_1 = arith.constant 0 : i32
    return %c0_i32, %c0_i32_0 : i32, i32
  }
  func.func @transform_14(%arg0: i32) -> (i32, i32) {
    %c0_i32 = arith.constant 0 : i32
    %c0_i32_0 = arith.constant 0 : i32
    %c0_i32_1 = arith.constant 0 : i32
    return %c0_i32, %c0_i32_0 : i32, i32
  }
  func.func @transform_15(%arg0: i32) -> (i32, i32) {
    %c0_i32 = arith.constant 0 : i32
    %c0_i32_0 = arith.constant 0 : i32
    %c0_i32_1 = arith.constant 0 : i32
    return %c0_i32, %c0_i32_0 : i32, i32
  }
  func.func @transform_16(%arg0: i32) -> (i32, i32) {
    %c0_i32 = arith.constant 0 : i32
    %c0_i32_0 = arith.constant 0 : i32
    %c0_i32_1 = arith.constant 0 : i32
    return %c0_i32, %c0_i32_0 : i32, i32
  }
  func.func @transform_17(%arg0: i32) -> (i32, i32) {
    %c0_i32 = arith.constant 0 : i32
    %c0_i32_0 = arith.constant 0 : i32
    %c0_i32_1 = arith.constant 0 : i32
    return %c0_i32, %c0_i32_0 : i32, i32
  }
  func.func @transform_18(%arg0: i32) -> (i32, i32) {
    %c0_i32 = arith.constant 0 : i32
    %c0_i32_0 = arith.constant 0 : i32
    %c0_i32_1 = arith.constant 0 : i32
    return %c0_i32, %c0_i32_0 : i32, i32
  }
  func.func @transform_19(%arg0: i32) -> (i32, i32, i32) {
    %c0_i32 = arith.constant 0 : i32
    %c0_i32_0 = arith.constant 0 : i32
    %c0_i32_1 = arith.constant 0 : i32
    %c0_i32_2 = arith.constant 0 : i32
    return %c0_i32, %c0_i32_0, %c0_i32_1 : i32, i32, i32
  }
  func.func @transform_20(%arg0: i32) -> (i32, i32, i32) {
    %c0_i32 = arith.constant 0 : i32
    %c0_i32_0 = arith.constant 0 : i32
    %c0_i32_1 = arith.constant 0 : i32
    %c0_i32_2 = arith.constant 0 : i32
    return %c0_i32, %c0_i32_0, %c0_i32_1 : i32, i32, i32
  }
  func.func @transform_21(%arg0: i32) -> (i32, i32, i32) {
    %c0_i32 = arith.constant 0 : i32
    %c0_i32_0 = arith.constant 0 : i32
    %c0_i32_1 = arith.constant 0 : i32
    %c0_i32_2 = arith.constant 0 : i32
    return %c0_i32, %c0_i32_0, %c0_i32_1 : i32, i32, i32
  }
  func.func @transform_22(%arg0: i32) -> (i32, i32, i32) {
    %c0_i32 = arith.constant 0 : i32
    %c0_i32_0 = arith.constant 0 : i32
    %c0_i32_1 = arith.constant 0 : i32
    %c0_i32_2 = arith.constant 0 : i32
    return %c0_i32, %c0_i32_0, %c0_i32_1 : i32, i32, i32
  }
  func.func @transform_23(%arg0: i32) -> (i32, i32, i32) {
    %c0_i32 = arith.constant 0 : i32
    %c0_i32_0 = arith.constant 0 : i32
    %c0_i32_1 = arith.constant 0 : i32
    %c0_i32_2 = arith.constant 0 : i32
    return %c0_i32, %c0_i32_0, %c0_i32_1 : i32, i32, i32
  }
  func.func @transform_24(%arg0: i32) -> (i32, i32, i32) {
    %c0_i32 = arith.constant 0 : i32
    %c0_i32_0 = arith.constant 0 : i32
    %c0_i32_1 = arith.constant 0 : i32
    %c0_i32_2 = arith.constant 0 : i32
    return %c0_i32, %c0_i32_0, %c0_i32_1 : i32, i32, i32
  }
  func.func @transform_25(%arg0: i32) -> (i32, i32, i32) {
    %c0_i32 = arith.constant 0 : i32
    %c0_i32_0 = arith.constant 0 : i32
    %c0_i32_1 = arith.constant 0 : i32
    %c0_i32_2 = arith.constant 0 : i32
    return %c0_i32, %c0_i32_0, %c0_i32_1 : i32, i32, i32
  }
  func.func @transform_26(%arg0: i32) -> (i32, i32) {
    %c0_i32 = arith.constant 0 : i32
    %c0_i32_0 = arith.constant 0 : i32
    %c0_i32_1 = arith.constant 0 : i32
    return %c0_i32, %c0_i32_0 : i32, i32
  }
  func.func @transform_27(%arg0: i32) -> (i32, i32) {
    %c0_i32 = arith.constant 0 : i32
    %c0_i32_0 = arith.constant 0 : i32
    %c0_i32_1 = arith.constant 0 : i32
    return %c0_i32, %c0_i32_0 : i32, i32
  }
  func.func @transform_28(%arg0: i32) -> (i32, i32) {
    %c0_i32 = arith.constant 0 : i32
    %c0_i32_0 = arith.constant 0 : i32
    %c0_i32_1 = arith.constant 0 : i32
    return %c0_i32, %c0_i32_0 : i32, i32
  }
  func.func @transform_29(%arg0: i32) -> (i32, i32) {
    %c0_i32 = arith.constant 0 : i32
    %c0_i32_0 = arith.constant 0 : i32
    %c0_i32_1 = arith.constant 0 : i32
    return %c0_i32, %c0_i32_0 : i32, i32
  }
  func.func @transform_30(%arg0: i32) -> (i32, i32) {
    %c0_i32 = arith.constant 0 : i32
    %c0_i32_0 = arith.constant 0 : i32
    %c0_i32_1 = arith.constant 0 : i32
    return %c0_i32, %c0_i32_0 : i32, i32
  }
  func.func @transform_31(%arg0: i32) -> (i32, i32) {
    %c0_i32 = arith.constant 0 : i32
    %c0_i32_0 = arith.constant 0 : i32
    %c0_i32_1 = arith.constant 0 : i32
    return %c0_i32, %c0_i32_0 : i32, i32
  }
  func.func @transform_32(%arg0: i32) -> (i32, i32) {
    %c0_i32 = arith.constant 0 : i32
    %c0_i32_0 = arith.constant 0 : i32
    %c0_i32_1 = arith.constant 0 : i32
    return %c0_i32, %c0_i32_0 : i32, i32
  }
  func.func @transform_33(%arg0: i32) -> (i32, i32) {
    %c0_i32 = arith.constant 0 : i32
    %c0_i32_0 = arith.constant 0 : i32
    %c0_i32_1 = arith.constant 0 : i32
    return %c0_i32, %c0_i32_0 : i32, i32
  }
  func.func @transform_34(%arg0: i32) -> (i32, i32) {
    %c0_i32 = arith.constant 0 : i32
    %c0_i32_0 = arith.constant 0 : i32
    %c0_i32_1 = arith.constant 0 : i32
    return %c0_i32, %c0_i32_0 : i32, i32
  }
  func.func @transform_35(%arg0: i32) -> (i32, i32) {
    %c0_i32 = arith.constant 0 : i32
    %c0_i32_0 = arith.constant 0 : i32
    %c0_i32_1 = arith.constant 0 : i32
    return %c0_i32, %c0_i32_0 : i32, i32
  }
  func.func @transform_36(%arg0: i32) -> (i32, i32) {
    %c0_i32 = arith.constant 0 : i32
    %c0_i32_0 = arith.constant 0 : i32
    %c0_i32_1 = arith.constant 0 : i32
    return %c0_i32, %c0_i32_0 : i32, i32
  }
  func.func @transform_37(%arg0: i32) -> (i32, i32, i32) {
    %c0_i32 = arith.constant 0 : i32
    %c0_i32_0 = arith.constant 0 : i32
    %c0_i32_1 = arith.constant 0 : i32
    return %arg0, %c0_i32, %c0_i32_0 : i32, i32, i32
  }
}

</mosaic_0001>

<llo_original>
// kernel: transformer_forward.1
$region0: #{transformer_forward.1}
  #allocation0 [shape = 'u32[]', space=smem, size = 0x4, offset = 0x4, fixed_abs, tag = 'smem constant byte address 0x4 - core index']
  #allocation1 [shape = 'u32[72,128]{1,0:T(1,128)}', space=vmem, size = 0x9000, scoped, tag = 'internal scratch']
  %s0 = inlined_call_operand.smem [shape: u32[38], index: -1, kind: input, shape index: {}]
  %s1 = sld [smem:[%s0]]
  %s2 = scalar_lea.smem %s0, 1
  %s3 = sld [smem:[%s2]]
  %s4 = scalar_lea.smem %s0, 2
  %s5 = sld [smem:[%s4]]
  %s6 = scalar_lea.smem %s0, 3
  %s7 = sld [smem:[%s6]]
  %s8 = scalar_lea.smem %s0, 4
  %s9 = sld [smem:[%s8]]
  %s10 = scalar_lea.smem %s0, 5
  %s11 = sld [smem:[%s10]]
  %s12 = scalar_lea.smem %s0, 6
  %s13 = sld [smem:[%s12]]
  %s14 = scalar_lea.smem %s0, 7
  %s15 = sld [smem:[%s14]]
  %s16 = scalar_lea.smem %s0, 8
  %s17 = sld [smem:[%s16]]
  %s18 = scalar_lea.smem %s0, 9
  %s19 = sld [smem:[%s18]]
  %s20 = scalar_lea.smem %s0, 10
  %s21 = sld [smem:[%s20]]
  %s22 = scalar_lea.smem %s0, 11
  %s23 = sld [smem:[%s22]]
  %s24 = scalar_lea.smem %s0, 12
  %s25 = sld [smem:[%s24]]
  %s26 = scalar_lea.smem %s0, 13
  %s27 = sld [smem:[%s26]]
  %s28 = scalar_lea.smem %s0, 14
  %s29 = sld [smem:[%s28]]
  %s30 = scalar_lea.smem %s0, 15
  %s31 = sld [smem:[%s30]]
  %s32 = scalar_lea.smem %s0, 16
  %s33 = sld [smem:[%s32]]
  %s34 = scalar_lea.smem %s0, 17
  %s35 = sld [smem:[%s34]]
  %s36 = scalar_lea.smem %s0, 18
  %s37 = sld [smem:[%s36]]
  %s38 = scalar_lea.smem %s0, 19
  %s39 = sld [smem:[%s38]]
  %s40 = scalar_lea.smem %s0, 20
  %s41 = sld [smem:[%s40]]
  %s42 = scalar_lea.smem %s0, 21
  %s43 = sld [smem:[%s42]]
  %s44 = scalar_lea.smem %s0, 22
  %s45 = sld [smem:[%s44]]
  %s46 = scalar_lea.smem %s0, 23
  %s47 = sld [smem:[%s46]]
  %s48 = scalar_lea.smem %s0, 24
  %s49 = sld [smem:[%s48]]
  %s50 = scalar_lea.smem %s0, 25
  %s51 = sld [smem:[%s50]]
  %s52 = scalar_lea.smem %s0, 26
  %s53 = sld [smem:[%s52]]
  %s54 = scalar_lea.smem %s0, 27
  %s55 = sld [smem:[%s54]]
  %s56 = scalar_lea.smem %s0, 28
  %s57 = sld [smem:[%s56]]
  %s58 = scalar_lea.smem %s0, 29
  %s59 = sld [smem:[%s58]]
  %s60 = scalar_lea.smem %s0, 30
  %s61 = sld [smem:[%s60]]
  %s62 = scalar_lea.smem %s0, 31
  %s63 = sld [smem:[%s62]]
  %s64 = scalar_lea.smem %s0, 32
  %s65 = sld [smem:[%s64]]
  %s66 = scalar_lea.smem %s0, 33
  %s67 = sld [smem:[%s66]]
  %s68 = scalar_lea.smem %s0, 34
  %s69 = sld [smem:[%s68]]
  %s70 = scalar_lea.smem %s0, 35
  %s71 = sld [smem:[%s70]]
  %s72 = scalar_lea.smem %s0, 36
  %s73 = sld [smem:[%s72]]
  %s74 = scalar_lea.smem %s0, 37
  %s75 = sld [smem:[%s74]]
  %s76 = sld [smem:[#allocation0]]
  $region181: #{transformer_forward.1} parent=0
    _
  %s78 = ssub.s32 1, %s76
  %s79 = scalar_select 0, %s78, %s76
  loop: start=0, step=1, limit=4
  $region2: #{transformer_forward.1} parent=0 // loop_pre_header
    _
  $region3: #{transformer_forward.1} parent=0 // loop_header
    %s81 = sphi 0, %s85
    %p82 = scmp.ge.s32.totalorder %s81, 4
    %s91 = sphi 0, %s93
    %s94 = sphi 0, %s91
    %s95 = sphi 0, %s94
    %s111 = sphi 0, %s95
    %s115 = sphi 0, %s115
    %s117 = sphi 0, %s115
    %s118 = sphi 0, %s117
    %s132 = sphi 0, %s118
    %s136 = sphi 0, %s136
    %s138 = sphi 0, %s136
    %s139 = sphi 0, %s138
    %s153 = sphi 0, %s139
    %s157 = sphi 0, %s157
    %s159 = sphi 0, %s157
    %s160 = sphi 0, %s159
    %s174 = sphi 0, %s160
    %s178 = sphi 0, %s178
    %s180 = sphi 0, %s178
    %s181 = sphi 0, %s180
    %s195 = sphi 0, %s181
    %s199 = sphi 0, %s199
    %s201 = sphi 0, %s199
    %s202 = sphi 0, %s201
    %s216 = sphi 0, %s202
    %s220 = sphi 0, %s220
    %s222 = sphi 0, %s220
    %s223 = sphi 0, %s222
    %s237 = sphi 0, %s223
    %s241 = sphi 0, %s241
    %s243 = sphi 0, %s241
    %s244 = sphi 0, %s243
    %s258 = sphi 0, %s244
    %s262 = sphi 0, %s262
    %s264 = sphi 0, %s262
    %s265 = sphi 0, %s264
    %s279 = sphi 0, %s265
    %s283 = sphi 0, %s283
    %s285 = sphi 0, %s283
    %s286 = sphi 0, %s285
    %s300 = sphi 0, %s286
    %s304 = sphi 0, %s304
    %s306 = sphi 0, %s304
    %s307 = sphi 0, %s306
    %s321 = sphi 0, %s307
    %s325 = sphi 0, %s325
    %s327 = sphi 0, %s325
    %s328 = sphi 0, %s327
    %s342 = sphi 0, %s328
    %s346 = sphi 0, %s346
    %s348 = sphi 0, %s346
    %s349 = sphi 0, %s348
    %s363 = sphi 0, %s349
    %s367 = sphi 0, %s367
    %s369 = sphi 0, %s367
    %s370 = sphi 0, %s369
    %s384 = sphi 0, %s370
    %s388 = sphi 0, %s388
    %s390 = sphi 0, %s388
    %s391 = sphi 0, %s390
    %s405 = sphi 0, %s391
    %s409 = sphi 0, %s409
    %s411 = sphi 0, %s409
    %s412 = sphi 0, %s411
    %s426 = sphi 0, %s412
    %s430 = sphi 0, %s430
    %s432 = sphi 0, %s430
    %s433 = sphi 0, %s432
    %s447 = sphi 0, %s433
    %s451 = sphi 0, %s451
    %s453 = sphi 0, %s451
    %s454 = sphi 0, %s453
    %s468 = sphi 0, %s454
    %s472 = sphi 0, %s472
    %s474 = sphi 0, %s472
    %s475 = sphi 0, %s474
    %s489 = sphi 0, %s475
    %s493 = sphi 0, %s493
    %s495 = sphi 0, %s493
    %s496 = sphi 0, %s495
    %s510 = sphi 0, %s496
    %s514 = sphi 0, %s514
    %s516 = sphi 0, %s514
    %s517 = sphi 0, %s516
    %s531 = sphi 0, %s517
    %s535 = sphi 0, %s535
    %s537 = sphi 0, %s535
    %s538 = sphi 0, %s537
    %s552 = sphi 0, %s538
    %s556 = sphi 0, %s556
    %s558 = sphi 0, %s556
    %s559 = sphi 0, %s558
    %s573 = sphi 0, %s559
    %s577 = sphi 0, %s577
    %s579 = sphi 0, %s577
    %s580 = sphi 0, %s579
    %s594 = sphi 0, %s580
    %s598 = sphi 0, %s598
    %s600 = sphi 0, %s598
    %s601 = sphi 0, %s600
    %s615 = sphi 0, %s601
    %s619 = sphi 0, %s619
    %s621 = sphi 0, %s619
    %s622 = sphi 0, %s621
    %s636 = sphi 0, %s622
    %s640 = sphi 0, %s640
    %s642 = sphi 0, %s640
    %s643 = sphi 0, %s642
    %s657 = sphi 0, %s643
    %s661 = sphi 0, %s661
    %s663 = sphi 0, %s661
    %s664 = sphi 0, %s663
    %s678 = sphi 0, %s664
    %s682 = sphi 0, %s682
    %s684 = sphi 0, %s682
    %s685 = sphi 0, %s684
    %s699 = sphi 0, %s685
    %s703 = sphi 0, %s703
    %s705 = sphi 0, %s703
    %s706 = sphi 0, %s705
    %s720 = sphi 0, %s706
    %s724 = sphi 0, %s724
    %s726 = sphi 0, %s724
    %s727 = sphi 0, %s726
    %s741 = sphi 0, %s727
    %s745 = sphi 0, %s745
    %s747 = sphi 0, %s745
    %s748 = sphi 0, %s747
    %s762 = sphi 0, %s748
    %s766 = sphi 0, %s766
    %s768 = sphi 0, %s766
    %s769 = sphi 0, %s768
    %s783 = sphi 0, %s769
    %s787 = sphi 0, %s787
    %s789 = sphi 0, %s787
    %s790 = sphi 0, %s789
    %s804 = sphi 0, %s790
    %s808 = sphi 0, %s808
    %s810 = sphi 0, %s808
    %s811 = sphi 0, %s810
    %s825 = sphi 0, %s811
    %s829 = sphi 0, %s829
    %s831 = sphi 0, %s829
    %s832 = sphi 0, %s831
    %s846 = sphi 0, %s832
    %s850 = sphi 0, %s850
    %s852 = sphi 0, %s850
    %s853 = sphi 0, %s852
    %s867 = sphi 0, %s853
    %s873 = sphi 0, %s875
    %s876 = sphi 0, %s873
    %s877 = sphi 0, %s876
    %s893 = sphi 0, %s877
  $region4: #{transformer_forward.1} parent=0 // loop_header_branch
    %84 = sbr.rel (%p82) target = $region8
  $region5: #{transformer_forward.1} parent=0 // loop_body
    %s86 = ssub.s32 %s81, 1
    %s87 = ssub.s32 %s81, 2
    %s88 = sadd.s32 %s81, 1
    %s89 = ssub.s32 %s81, %s88
    %p90 = scmp.eq.s32.totalorder %s89, 0
    %s92 = sadd.s32 %s91, 1
    %s93 = scalar_select %p90, %s91, %s92
    %p96 = pneg %p90
    %p97 = scmp.eq.s32.totalorder %s81, 1
    %p98 = por %p96, %p97
    %p99 = scmp.ne.s32.totalorder %s91, %s94
    %p100 = scmp.eq.s32.totalorder %s81, 0
    %p101 = por %p99, %p100
    %p102 = scmp.ne.s32.totalorder %s91, %s94
    %p103 = scmp.eq.s32.totalorder %s86, 1
    %p104 = por %p102, %p103
    %p105 = scmp.ne.s32.totalorder %s94, %s95
    %p106 = scmp.eq.s32.totalorder %s86, 0
    %p107 = por %p105, %p106
    %p108 = scmp.ne.s32.totalorder %s94, %s95
    %p109 = scmp.eq.s32.totalorder %s87, 1
    %p110 = por %p108, %p109
    %p112 = scmp.ne.s32.totalorder %s95, %s111
    %p113 = scmp.eq.s32.totalorder %s87, 0
    %p114 = por %p112, %p113
    %s116 = sadd.s32 %s115, 1
    %p119 = scmp.eq.s32.totalorder %s81, 1
    %p120 = scmp.ne.s32.totalorder %s115, %s117
    %p121 = scmp.eq.s32.totalorder %s81, 0
    %p122 = por %p120, %p121
    %p123 = scmp.ne.s32.totalorder %s115, %s117
    %p124 = scmp.eq.s32.totalorder %s86, 1
    %p125 = por %p123, %p124
    %p126 = scmp.ne.s32.totalorder %s117, %s118
    %p127 = scmp.eq.s32.totalorder %s86, 0
    %p128 = por %p126, %p127
    %p129 = scmp.ne.s32.totalorder %s117, %s118
    %p130 = scmp.eq.s32.totalorder %s87, 1
    %p131 = por %p129, %p130
    %p133 = scmp.ne.s32.totalorder %s118, %s132
    %p134 = scmp.eq.s32.totalorder %s87, 0
    %p135 = por %p133, %p134
    %s137 = sadd.s32 %s136, 1
    %p140 = scmp.eq.s32.totalorder %s81, 1
    %p141 = scmp.ne.s32.totalorder %s136, %s138
    %p142 = scmp.eq.s32.totalorder %s81, 0
    %p143 = por %p141, %p142
    %p144 = scmp.ne.s32.totalorder %s136, %s138
    %p145 = scmp.eq.s32.totalorder %s86, 1
    %p146 = por %p144, %p145
    %p147 = scmp.ne.s32.totalorder %s138, %s139
    %p148 = scmp.eq.s32.totalorder %s86, 0
    %p149 = por %p147, %p148
    %p150 = scmp.ne.s32.totalorder %s138, %s139
    %p151 = scmp.eq.s32.totalorder %s87, 1
    %p152 = por %p150, %p151
    %p154 = scmp.ne.s32.totalorder %s139, %s153
    %p155 = scmp.eq.s32.totalorder %s87, 0
    %p156 = por %p154, %p155
    %s158 = sadd.s32 %s157, 1
    %p161 = scmp.eq.s32.totalorder %s81, 1
    %p162 = scmp.ne.s32.totalorder %s157, %s159
    %p163 = scmp.eq.s32.totalorder %s81, 0
    %p164 = por %p162, %p163
    %p165 = scmp.ne.s32.totalorder %s157, %s159
    %p166 = scmp.eq.s32.totalorder %s86, 1
    %p167 = por %p165, %p166
    %p168 = scmp.ne.s32.totalorder %s159, %s160
    %p169 = scmp.eq.s32.totalorder %s86, 0
    %p170 = por %p168, %p169
    %p171 = scmp.ne.s32.totalorder %s159, %s160
    %p172 = scmp.eq.s32.totalorder %s87, 1
    %p173 = por %p171, %p172
    %p175 = scmp.ne.s32.totalorder %s160, %s174
    %p176 = scmp.eq.s32.totalorder %s87, 0
    %p177 = por %p175, %p176
    %s179 = sadd.s32 %s178, 1
    %p182 = scmp.eq.s32.totalorder %s81, 1
    %p183 = scmp.ne.s32.totalorder %s178, %s180
    %p184 = scmp.eq.s32.totalorder %s81, 0
    %p185 = por %p183, %p184
    %p186 = scmp.ne.s32.totalorder %s178, %s180
    %p187 = scmp.eq.s32.totalorder %s86, 1
    %p188 = por %p186, %p187
    %p189 = scmp.ne.s32.totalorder %s180, %s181
    %p190 = scmp.eq.s32.totalorder %s86, 0
    %p191 = por %p189, %p190
    %p192 = scmp.ne.s32.totalorder %s180, %s181
    %p193 = scmp.eq.s32.totalorder %s87, 1
    %p194 = por %p192, %p193
    %p196 = scmp.ne.s32.totalorder %s181, %s195
    %p197 = scmp.eq.s32.totalorder %s87, 0
    %p198 = por %p196, %p197
    %s200 = sadd.s32 %s199, 1
    %p203 = scmp.eq.s32.totalorder %s81, 1
    %p204 = scmp.ne.s32.totalorder %s199, %s201
    %p205 = scmp.eq.s32.totalorder %s81, 0
    %p206 = por %p204, %p205
    %p207 = scmp.ne.s32.totalorder %s199, %s201
    %p208 = scmp.eq.s32.totalorder %s86, 1
    %p209 = por %p207, %p208
    %p210 = scmp.ne.s32.totalorder %s201, %s202
    %p211 = scmp.eq.s32.totalorder %s86, 0
    %p212 = por %p210, %p211
    %p213 = scmp.ne.s32.totalorder %s201, %s202
    %p214 = scmp.eq.s32.totalorder %s87, 1
    %p215 = por %p213, %p214
    %p217 = scmp.ne.s32.totalorder %s202, %s216
    %p218 = scmp.eq.s32.totalorder %s87, 0
    %p219 = por %p217, %p218
    %s221 = sadd.s32 %s220, 1
    %p224 = scmp.eq.s32.totalorder %s81, 1
    %p225 = scmp.ne.s32.totalorder %s220, %s222
    %p226 = scmp.eq.s32.totalorder %s81, 0
    %p227 = por %p225, %p226
    %p228 = scmp.ne.s32.totalorder %s220, %s222
    %p229 = scmp.eq.s32.totalorder %s86, 1
    %p230 = por %p228, %p229
    %p231 = scmp.ne.s32.totalorder %s222, %s223
    %p232 = scmp.eq.s32.totalorder %s86, 0
    %p233 = por %p231, %p232
    %p234 = scmp.ne.s32.totalorder %s222, %s223
    %p235 = scmp.eq.s32.totalorder %s87, 1
    %p236 = por %p234, %p235
    %p238 = scmp.ne.s32.totalorder %s223, %s237
    %p239 = scmp.eq.s32.totalorder %s87, 0
    %p240 = por %p238, %p239
    %s242 = sadd.s32 %s241, 1
    %p245 = scmp.eq.s32.totalorder %s81, 1
    %p246 = scmp.ne.s32.totalorder %s241, %s243
    %p247 = scmp.eq.s32.totalorder %s81, 0
    %p248 = por %p246, %p247
    %p249 = scmp.ne.s32.totalorder %s241, %s243
    %p250 = scmp.eq.s32.totalorder %s86, 1
    %p251 = por %p249, %p250
    %p252 = scmp.ne.s32.totalorder %s243, %s244
    %p253 = scmp.eq.s32.totalorder %s86, 0
    %p254 = por %p252, %p253
    %p255 = scmp.ne.s32.totalorder %s243, %s244
    %p256 = scmp.eq.s32.totalorder %s87, 1
    %p257 = por %p255, %p256
    %p259 = scmp.ne.s32.totalorder %s244, %s258
    %p260 = scmp.eq.s32.totalorder %s87, 0
    %p261 = por %p259, %p260
    %s263 = sadd.s32 %s262, 1
    %p266 = scmp.eq.s32.totalorder %s81, 1
    %p267 = scmp.ne.s32.totalorder %s262, %s264
    %p268 = scmp.eq.s32.totalorder %s81, 0
    %p269 = por %p267, %p268
    %p270 = scmp.ne.s32.totalorder %s262, %s264
    %p271 = scmp.eq.s32.totalorder %s86, 1
    %p272 = por %p270, %p271
    %p273 = scmp.ne.s32.totalorder %s264, %s265
    %p274 = scmp.eq.s32.totalorder %s86, 0
    %p275 = por %p273, %p274
    %p276 = scmp.ne.s32.totalorder %s264, %s265
    %p277 = scmp.eq.s32.totalorder %s87, 1
    %p278 = por %p276, %p277
    %p280 = scmp.ne.s32.totalorder %s265, %s279
    %p281 = scmp.eq.s32.totalorder %s87, 0
    %p282 = por %p280, %p281
    %s284 = sadd.s32 %s283, 1
    %p287 = scmp.eq.s32.totalorder %s81, 1
    %p288 = scmp.ne.s32.totalorder %s283, %s285
    %p289 = scmp.eq.s32.totalorder %s81, 0
    %p290 = por %p288, %p289
    %p291 = scmp.ne.s32.totalorder %s283, %s285
    %p292 = scmp.eq.s32.totalorder %s86, 1
    %p293 = por %p291, %p292
    %p294 = scmp.ne.s32.totalorder %s285, %s286
    %p295 = scmp.eq.s32.totalorder %s86, 0
    %p296 = por %p294, %p295
    %p297 = scmp.ne.s32.totalorder %s285, %s286
    %p298 = scmp.eq.s32.totalorder %s87, 1
    %p299 = por %p297, %p298
    %p301 = scmp.ne.s32.totalorder %s286, %s300
    %p302 = scmp.eq.s32.totalorder %s87, 0
    %p303 = por %p301, %p302
    %s305 = sadd.s32 %s304, 1
    %p308 = scmp.eq.s32.totalorder %s81, 1
    %p309 = scmp.ne.s32.totalorder %s304, %s306
    %p310 = scmp.eq.s32.totalorder %s81, 0
    %p311 = por %p309, %p310
    %p312 = scmp.ne.s32.totalorder %s304, %s306
    %p313 = scmp.eq.s32.totalorder %s86, 1
    %p314 = por %p312, %p313
    %p315 = scmp.ne.s32.totalorder %s306, %s307
    %p316 = scmp.eq.s32.totalorder %s86, 0
    %p317 = por %p315, %p316
    %p318 = scmp.ne.s32.totalorder %s306, %s307
    %p319 = scmp.eq.s32.totalorder %s87, 1
    %p320 = por %p318, %p319
    %p322 = scmp.ne.s32.totalorder %s307, %s321
    %p323 = scmp.eq.s32.totalorder %s87, 0
    %p324 = por %p322, %p323
    %s326 = sadd.s32 %s325, 1
    %p329 = scmp.eq.s32.totalorder %s81, 1
    %p330 = scmp.ne.s32.totalorder %s325, %s327
    %p331 = scmp.eq.s32.totalorder %s81, 0
    %p332 = por %p330, %p331
    %p333 = scmp.ne.s32.totalorder %s325, %s327
    %p334 = scmp.eq.s32.totalorder %s86, 1
    %p335 = por %p333, %p334
    %p336 = scmp.ne.s32.totalorder %s327, %s328
    %p337 = scmp.eq.s32.totalorder %s86, 0
    %p338 = por %p336, %p337
    %p339 = scmp.ne.s32.totalorder %s327, %s328
    %p340 = scmp.eq.s32.totalorder %s87, 1
    %p341 = por %p339, %p340
    %p343 = scmp.ne.s32.totalorder %s328, %s342
    %p344 = scmp.eq.s32.totalorder %s87, 0
    %p345 = por %p343, %p344
    %s347 = sadd.s32 %s346, 1
    %p350 = scmp.eq.s32.totalorder %s81, 1
    %p351 = scmp.ne.s32.totalorder %s346, %s348
    %p352 = scmp.eq.s32.totalorder %s81, 0
    %p353 = por %p351, %p352
    %p354 = scmp.ne.s32.totalorder %s346, %s348
    %p355 = scmp.eq.s32.totalorder %s86, 1
    %p356 = por %p354, %p355
    %p357 = scmp.ne.s32.totalorder %s348, %s349
    %p358 = scmp.eq.s32.totalorder %s86, 0
    %p359 = por %p357, %p358
    %p360 = scmp.ne.s32.totalorder %s348, %s349
    %p361 = scmp.eq.s32.totalorder %s87, 1
    %p362 = por %p360, %p361
    %p364 = scmp.ne.s32.totalorder %s349, %s363
    %p365 = scmp.eq.s32.totalorder %s87, 0
    %p366 = por %p364, %p365
    %s368 = sadd.s32 %s367, 1
    %p371 = scmp.eq.s32.totalorder %s81, 1
    %p372 = scmp.ne.s32.totalorder %s367, %s369
    %p373 = scmp.eq.s32.totalorder %s81, 0
    %p374 = por %p372, %p373
    %p375 = scmp.ne.s32.totalorder %s367, %s369
    %p376 = scmp.eq.s32.totalorder %s86, 1
    %p377 = por %p375, %p376
    %p378 = scmp.ne.s32.totalorder %s369, %s370
    %p379 = scmp.eq.s32.totalorder %s86, 0
    %p380 = por %p378, %p379
    %p381 = scmp.ne.s32.totalorder %s369, %s370
    %p382 = scmp.eq.s32.totalorder %s87, 1
    %p383 = por %p381, %p382
    %p385 = scmp.ne.s32.totalorder %s370, %s384
    %p386 = scmp.eq.s32.totalorder %s87, 0
    %p387 = por %p385, %p386
    %s389 = sadd.s32 %s388, 1
    %p392 = scmp.eq.s32.totalorder %s81, 1
    %p393 = scmp.ne.s32.totalorder %s388, %s390
    %p394 = scmp.eq.s32.totalorder %s81, 0
    %p395 = por %p393, %p394
    %p396 = scmp.ne.s32.totalorder %s388, %s390
    %p397 = scmp.eq.s32.totalorder %s86, 1
    %p398 = por %p396, %p397
    %p399 = scmp.ne.s32.totalorder %s390, %s391
    %p400 = scmp.eq.s32.totalorder %s86, 0
    %p401 = por %p399, %p400
    %p402 = scmp.ne.s32.totalorder %s390, %s391
    %p403 = scmp.eq.s32.totalorder %s87, 1
    %p404 = por %p402, %p403
    %p406 = scmp.ne.s32.totalorder %s391, %s405
    %p407 = scmp.eq.s32.totalorder %s87, 0
    %p408 = por %p406, %p407
    %s410 = sadd.s32 %s409, 1
    %p413 = scmp.eq.s32.totalorder %s81, 1
    %p414 = scmp.ne.s32.totalorder %s409, %s411
    %p415 = scmp.eq.s32.totalorder %s81, 0
    %p416 = por %p414, %p415
    %p417 = scmp.ne.s32.totalorder %s409, %s411
    %p418 = scmp.eq.s32.totalorder %s86, 1
    %p419 = por %p417, %p418
    %p420 = scmp.ne.s32.totalorder %s411, %s412
    %p421 = scmp.eq.s32.totalorder %s86, 0
    %p422 = por %p420, %p421
    %p423 = scmp.ne.s32.totalorder %s411, %s412
    %p424 = scmp.eq.s32.totalorder %s87, 1
    %p425 = por %p423, %p424
    %p427 = scmp.ne.s32.totalorder %s412, %s426
    %p428 = scmp.eq.s32.totalorder %s87, 0
    %p429 = por %p427, %p428
    %s431 = sadd.s32 %s430, 1
    %p434 = scmp.eq.s32.totalorder %s81, 1
    %p435 = scmp.ne.s32.totalorder %s430, %s432
    %p436 = scmp.eq.s32.totalorder %s81, 0
    %p437 = por %p435, %p436
    %p438 = scmp.ne.s32.totalorder %s430, %s432
    %p439 = scmp.eq.s32.totalorder %s86, 1
    %p440 = por %p438, %p439
    %p441 = scmp.ne.s32.totalorder %s432, %s433
    %p442 = scmp.eq.s32.totalorder %s86, 0
    %p443 = por %p441, %p442
    %p444 = scmp.ne.s32.totalorder %s432, %s433
    %p445 = scmp.eq.s32.totalorder %s87, 1
    %p446 = por %p444, %p445
    %p448 = scmp.ne.s32.totalorder %s433, %s447
    %p449 = scmp.eq.s32.totalorder %s87, 0
    %p450 = por %p448, %p449
    %s452 = sadd.s32 %s451, 1
    %p455 = scmp.eq.s32.totalorder %s81, 1
    %p456 = scmp.ne.s32.totalorder %s451, %s453
    %p457 = scmp.eq.s32.totalorder %s81, 0
    %p458 = por %p456, %p457
    %p459 = scmp.ne.s32.totalorder %s451, %s453
    %p460 = scmp.eq.s32.totalorder %s86, 1
    %p461 = por %p459, %p460
    %p462 = scmp.ne.s32.totalorder %s453, %s454
    %p463 = scmp.eq.s32.totalorder %s86, 0
    %p464 = por %p462, %p463
    %p465 = scmp.ne.s32.totalorder %s453, %s454
    %p466 = scmp.eq.s32.totalorder %s87, 1
    %p467 = por %p465, %p466
    %p469 = scmp.ne.s32.totalorder %s454, %s468
    %p470 = scmp.eq.s32.totalorder %s87, 0
    %p471 = por %p469, %p470
    %s473 = sadd.s32 %s472, 1
    %p476 = scmp.eq.s32.totalorder %s81, 1
    %p477 = scmp.ne.s32.totalorder %s472, %s474
    %p478 = scmp.eq.s32.totalorder %s81, 0
    %p479 = por %p477, %p478
    %p480 = scmp.ne.s32.totalorder %s472, %s474
    %p481 = scmp.eq.s32.totalorder %s86, 1
    %p482 = por %p480, %p481
    %p483 = scmp.ne.s32.totalorder %s474, %s475
    %p484 = scmp.eq.s32.totalorder %s86, 0
    %p485 = por %p483, %p484
    %p486 = scmp.ne.s32.totalorder %s474, %s475
    %p487 = scmp.eq.s32.totalorder %s87, 1
    %p488 = por %p486, %p487
    %p490 = scmp.ne.s32.totalorder %s475, %s489
    %p491 = scmp.eq.s32.totalorder %s87, 0
    %p492 = por %p490, %p491
    %s494 = sadd.s32 %s493, 1
    %p497 = scmp.eq.s32.totalorder %s81, 1
    %p498 = scmp.ne.s32.totalorder %s493, %s495
    %p499 = scmp.eq.s32.totalorder %s81, 0
    %p500 = por %p498, %p499
    %p501 = scmp.ne.s32.totalorder %s493, %s495
    %p502 = scmp.eq.s32.totalorder %s86, 1
    %p503 = por %p501, %p502
    %p504 = scmp.ne.s32.totalorder %s495, %s496
    %p505 = scmp.eq.s32.totalorder %s86, 0
    %p506 = por %p504, %p505
    %p507 = scmp.ne.s32.totalorder %s495, %s496
    %p508 = scmp.eq.s32.totalorder %s87, 1
    %p509 = por %p507, %p508
    %p511 = scmp.ne.s32.totalorder %s496, %s510
    %p512 = scmp.eq.s32.totalorder %s87, 0
    %p513 = por %p511, %p512
    %s515 = sadd.s32 %s514, 1
    %p518 = scmp.eq.s32.totalorder %s81, 1
    %p519 = scmp.ne.s32.totalorder %s514, %s516
    %p520 = scmp.eq.s32.totalorder %s81, 0
    %p521 = por %p519, %p520
    %p522 = scmp.ne.s32.totalorder %s514, %s516
    %p523 = scmp.eq.s32.totalorder %s86, 1
    %p524 = por %p522, %p523
    %p525 = scmp.ne.s32.totalorder %s516, %s517
    %p526 = scmp.eq.s32.totalorder %s86, 0
    %p527 = por %p525, %p526
    %p528 = scmp.ne.s32.totalorder %s516, %s517
    %p529 = scmp.eq.s32.totalorder %s87, 1
    %p530 = por %p528, %p529
    %p532 = scmp.ne.s32.totalorder %s517, %s531
    %p533 = scmp.eq.s32.totalorder %s87, 0
    %p534 = por %p532, %p533
    %s536 = sadd.s32 %s535, 1
    %p539 = scmp.eq.s32.totalorder %s81, 1
    %p540 = scmp.ne.s32.totalorder %s535, %s537
    %p541 = scmp.eq.s32.totalorder %s81, 0
    %p542 = por %p540, %p541
    %p543 = scmp.ne.s32.totalorder %s535, %s537
    %p544 = scmp.eq.s32.totalorder %s86, 1
    %p545 = por %p543, %p544
    %p546 = scmp.ne.s32.totalorder %s537, %s538
    %p547 = scmp.eq.s32.totalorder %s86, 0
    %p548 = por %p546, %p547
    %p549 = scmp.ne.s32.totalorder %s537, %s538
    %p550 = scmp.eq.s32.totalorder %s87, 1
    %p551 = por %p549, %p550
    %p553 = scmp.ne.s32.totalorder %s538, %s552
    %p554 = scmp.eq.s32.totalorder %s87, 0
    %p555 = por %p553, %p554
    %s557 = sadd.s32 %s556, 1
    %p560 = scmp.eq.s32.totalorder %s81, 1
    %p561 = scmp.ne.s32.totalorder %s556, %s558
    %p562 = scmp.eq.s32.totalorder %s81, 0
    %p563 = por %p561, %p562
    %p564 = scmp.ne.s32.totalorder %s556, %s558
    %p565 = scmp.eq.s32.totalorder %s86, 1
    %p566 = por %p564, %p565
    %p567 = scmp.ne.s32.totalorder %s558, %s559
    %p568 = scmp.eq.s32.totalorder %s86, 0
    %p569 = por %p567, %p568
    %p570 = scmp.ne.s32.totalorder %s558, %s559
    %p571 = scmp.eq.s32.totalorder %s87, 1
    %p572 = por %p570, %p571
    %p574 = scmp.ne.s32.totalorder %s559, %s573
    %p575 = scmp.eq.s32.totalorder %s87, 0
    %p576 = por %p574, %p575
    %s578 = sadd.s32 %s577, 1
    %p581 = scmp.eq.s32.totalorder %s81, 1
    %p582 = scmp.ne.s32.totalorder %s577, %s579
    %p583 = scmp.eq.s32.totalorder %s81, 0
    %p584 = por %p582, %p583
    %p585 = scmp.ne.s32.totalorder %s577, %s579
    %p586 = scmp.eq.s32.totalorder %s86, 1
    %p587 = por %p585, %p586
    %p588 = scmp.ne.s32.totalorder %s579, %s580
    %p589 = scmp.eq.s32.totalorder %s86, 0
    %p590 = por %p588, %p589
    %p591 = scmp.ne.s32.totalorder %s579, %s580
    %p592 = scmp.eq.s32.totalorder %s87, 1
    %p593 = por %p591, %p592
    %p595 = scmp.ne.s32.totalorder %s580, %s594
    %p596 = scmp.eq.s32.totalorder %s87, 0
    %p597 = por %p595, %p596
    %s599 = sadd.s32 %s598, 1
    %p602 = scmp.eq.s32.totalorder %s81, 1
    %p603 = scmp.ne.s32.totalorder %s598, %s600
    %p604 = scmp.eq.s32.totalorder %s81, 0
    %p605 = por %p603, %p604
    %p606 = scmp.ne.s32.totalorder %s598, %s600
    %p607 = scmp.eq.s32.totalorder %s86, 1
    %p608 = por %p606, %p607
    %p609 = scmp.ne.s32.totalorder %s600, %s601
    %p610 = scmp.eq.s32.totalorder %s86, 0
    %p611 = por %p609, %p610
    %p612 = scmp.ne.s32.totalorder %s600, %s601
    %p613 = scmp.eq.s32.totalorder %s87, 1
    %p614 = por %p612, %p613
    %p616 = scmp.ne.s32.totalorder %s601, %s615
    %p617 = scmp.eq.s32.totalorder %s87, 0
    %p618 = por %p616, %p617
    %s620 = sadd.s32 %s619, 1
    %p623 = scmp.eq.s32.totalorder %s81, 1
    %p624 = scmp.ne.s32.totalorder %s619, %s621
    %p625 = scmp.eq.s32.totalorder %s81, 0
    %p626 = por %p624, %p625
    %p627 = scmp.ne.s32.totalorder %s619, %s621
    %p628 = scmp.eq.s32.totalorder %s86, 1
    %p629 = por %p627, %p628
    %p630 = scmp.ne.s32.totalorder %s621, %s622
    %p631 = scmp.eq.s32.totalorder %s86, 0
    %p632 = por %p630, %p631
    %p633 = scmp.ne.s32.totalorder %s621, %s622
    %p634 = scmp.eq.s32.totalorder %s87, 1
    %p635 = por %p633, %p634
    %p637 = scmp.ne.s32.totalorder %s622, %s636
    %p638 = scmp.eq.s32.totalorder %s87, 0
    %p639 = por %p637, %p638
    %s641 = sadd.s32 %s640, 1
    %p644 = scmp.eq.s32.totalorder %s81, 1
    %p645 = scmp.ne.s32.totalorder %s640, %s642
    %p646 = scmp.eq.s32.totalorder %s81, 0
    %p647 = por %p645, %p646
    %p648 = scmp.ne.s32.totalorder %s640, %s642
    %p649 = scmp.eq.s32.totalorder %s86, 1
    %p650 = por %p648, %p649
    %p651 = scmp.ne.s32.totalorder %s642, %s643
    %p652 = scmp.eq.s32.totalorder %s86, 0
    %p653 = por %p651, %p652
    %p654 = scmp.ne.s32.totalorder %s642, %s643
    %p655 = scmp.eq.s32.totalorder %s87, 1
    %p656 = por %p654, %p655
    %p658 = scmp.ne.s32.totalorder %s643, %s657
    %p659 = scmp.eq.s32.totalorder %s87, 0
    %p660 = por %p658, %p659
    %s662 = sadd.s32 %s661, 1
    %p665 = scmp.eq.s32.totalorder %s81, 1
    %p666 = scmp.ne.s32.totalorder %s661, %s663
    %p667 = scmp.eq.s32.totalorder %s81, 0
    %p668 = por %p666, %p667
    %p669 = scmp.ne.s32.totalorder %s661, %s663
    %p670 = scmp.eq.s32.totalorder %s86, 1
    %p671 = por %p669, %p670
    %p672 = scmp.ne.s32.totalorder %s663, %s664
    %p673 = scmp.eq.s32.totalorder %s86, 0
    %p674 = por %p672, %p673
    %p675 = scmp.ne.s32.totalorder %s663, %s664
    %p676 = scmp.eq.s32.totalorder %s87, 1
    %p677 = por %p675, %p676
    %p679 = scmp.ne.s32.totalorder %s664, %s678
    %p680 = scmp.eq.s32.totalorder %s87, 0
    %p681 = por %p679, %p680
    %s683 = sadd.s32 %s682, 1
    %p686 = scmp.eq.s32.totalorder %s81, 1
    %p687 = scmp.ne.s32.totalorder %s682, %s684
    %p688 = scmp.eq.s32.totalorder %s81, 0
    %p689 = por %p687, %p688
    %p690 = scmp.ne.s32.totalorder %s682, %s684
    %p691 = scmp.eq.s32.totalorder %s86, 1
    %p692 = por %p690, %p691
    %p693 = scmp.ne.s32.totalorder %s684, %s685
    %p694 = scmp.eq.s32.totalorder %s86, 0
    %p695 = por %p693, %p694
    %p696 = scmp.ne.s32.totalorder %s684, %s685
    %p697 = scmp.eq.s32.totalorder %s87, 1
    %p698 = por %p696, %p697
    %p700 = scmp.ne.s32.totalorder %s685, %s699
    %p701 = scmp.eq.s32.totalorder %s87, 0
    %p702 = por %p700, %p701
    %s704 = sadd.s32 %s703, 1
    %p707 = scmp.eq.s32.totalorder %s81, 1
    %p708 = scmp.ne.s32.totalorder %s703, %s705
    %p709 = scmp.eq.s32.totalorder %s81, 0
    %p710 = por %p708, %p709
    %p711 = scmp.ne.s32.totalorder %s703, %s705
    %p712 = scmp.eq.s32.totalorder %s86, 1
    %p713 = por %p711, %p712
    %p714 = scmp.ne.s32.totalorder %s705, %s706
    %p715 = scmp.eq.s32.totalorder %s86, 0
    %p716 = por %p714, %p715
    %p717 = scmp.ne.s32.totalorder %s705, %s706
    %p718 = scmp.eq.s32.totalorder %s87, 1
    %p719 = por %p717, %p718
    %p721 = scmp.ne.s32.totalorder %s706, %s720
    %p722 = scmp.eq.s32.totalorder %s87, 0
    %p723 = por %p721, %p722
    %s725 = sadd.s32 %s724, 1
    %p728 = scmp.eq.s32.totalorder %s81, 1
    %p729 = scmp.ne.s32.totalorder %s724, %s726
    %p730 = scmp.eq.s32.totalorder %s81, 0
    %p731 = por %p729, %p730
    %p732 = scmp.ne.s32.totalorder %s724, %s726
    %p733 = scmp.eq.s32.totalorder %s86, 1
    %p734 = por %p732, %p733
    %p735 = scmp.ne.s32.totalorder %s726, %s727
    %p736 = scmp.eq.s32.totalorder %s86, 0
    %p737 = por %p735, %p736
    %p738 = scmp.ne.s32.totalorder %s726, %s727
    %p739 = scmp.eq.s32.totalorder %s87, 1
    %p740 = por %p738, %p739
    %p742 = scmp.ne.s32.totalorder %s727, %s741
    %p743 = scmp.eq.s32.totalorder %s87, 0
    %p744 = por %p742, %p743
    %s746 = sadd.s32 %s745, 1
    %p749 = scmp.eq.s32.totalorder %s81, 1
    %p750 = scmp.ne.s32.totalorder %s745, %s747
    %p751 = scmp.eq.s32.totalorder %s81, 0
    %p752 = por %p750, %p751
    %p753 = scmp.ne.s32.totalorder %s745, %s747
    %p754 = scmp.eq.s32.totalorder %s86, 1
    %p755 = por %p753, %p754
    %p756 = scmp.ne.s32.totalorder %s747, %s748
    %p757 = scmp.eq.s32.totalorder %s86, 0
    %p758 = por %p756, %p757
    %p759 = scmp.ne.s32.totalorder %s747, %s748
    %p760 = scmp.eq.s32.totalorder %s87, 1
    %p761 = por %p759, %p760
    %p763 = scmp.ne.s32.totalorder %s748, %s762
    %p764 = scmp.eq.s32.totalorder %s87, 0
    %p765 = por %p763, %p764
    %s767 = sadd.s32 %s766, 1
    %p770 = scmp.eq.s32.totalorder %s81, 1
    %p771 = scmp.ne.s32.totalorder %s766, %s768
    %p772 = scmp.eq.s32.totalorder %s81, 0
    %p773 = por %p771, %p772
    %p774 = scmp.ne.s32.totalorder %s766, %s768
    %p775 = scmp.eq.s32.totalorder %s86, 1
    %p776 = por %p774, %p775
    %p777 = scmp.ne.s32.totalorder %s768, %s769
    %p778 = scmp.eq.s32.totalorder %s86, 0
    %p779 = por %p777, %p778
    %p780 = scmp.ne.s32.totalorder %s768, %s769
    %p781 = scmp.eq.s32.totalorder %s87, 1
    %p782 = por %p780, %p781
    %p784 = scmp.ne.s32.totalorder %s769, %s783
    %p785 = scmp.eq.s32.totalorder %s87, 0
    %p786 = por %p784, %p785
    %s788 = sadd.s32 %s787, 1
    %p791 = scmp.eq.s32.totalorder %s81, 1
    %p792 = scmp.ne.s32.totalorder %s787, %s789
    %p793 = scmp.eq.s32.totalorder %s81, 0
    %p794 = por %p792, %p793
    %p795 = scmp.ne.s32.totalorder %s787, %s789
    %p796 = scmp.eq.s32.totalorder %s86, 1
    %p797 = por %p795, %p796
    %p798 = scmp.ne.s32.totalorder %s789, %s790
    %p799 = scmp.eq.s32.totalorder %s86, 0
    %p800 = por %p798, %p799
    %p801 = scmp.ne.s32.totalorder %s789, %s790
    %p802 = scmp.eq.s32.totalorder %s87, 1
    %p803 = por %p801, %p802
    %p805 = scmp.ne.s32.totalorder %s790, %s804
    %p806 = scmp.eq.s32.totalorder %s87, 0
    %p807 = por %p805, %p806
    %s809 = sadd.s32 %s808, 1
    %p812 = scmp.eq.s32.totalorder %s81, 1
    %p813 = scmp.ne.s32.totalorder %s808, %s810
    %p814 = scmp.eq.s32.totalorder %s81, 0
    %p815 = por %p813, %p814
    %p816 = scmp.ne.s32.totalorder %s808, %s810
    %p817 = scmp.eq.s32.totalorder %s86, 1
    %p818 = por %p816, %p817
    %p819 = scmp.ne.s32.totalorder %s810, %s811
    %p820 = scmp.eq.s32.totalorder %s86, 0
    %p821 = por %p819, %p820
    %p822 = scmp.ne.s32.totalorder %s810, %s811
    %p823 = scmp.eq.s32.totalorder %s87, 1
    %p824 = por %p822, %p823
    %p826 = scmp.ne.s32.totalorder %s811, %s825
    %p827 = scmp.eq.s32.totalorder %s87, 0
    %p828 = por %p826, %p827
    %s830 = sadd.s32 %s829, 1
    %p833 = scmp.eq.s32.totalorder %s81, 1
    %p834 = scmp.ne.s32.totalorder %s829, %s831
    %p835 = scmp.eq.s32.totalorder %s81, 0
    %p836 = por %p834, %p835
    %p837 = scmp.ne.s32.totalorder %s829, %s831
    %p838 = scmp.eq.s32.totalorder %s86, 1
    %p839 = por %p837, %p838
    %p840 = scmp.ne.s32.totalorder %s831, %s832
    %p841 = scmp.eq.s32.totalorder %s86, 0
    %p842 = por %p840, %p841
    %p843 = scmp.ne.s32.totalorder %s831, %s832
    %p844 = scmp.eq.s32.totalorder %s87, 1
    %p845 = por %p843, %p844
    %p847 = scmp.ne.s32.totalorder %s832, %s846
    %p848 = scmp.eq.s32.totalorder %s87, 0
    %p849 = por %p847, %p848
    %s851 = sadd.s32 %s850, 1
    %p854 = scmp.eq.s32.totalorder %s81, 1
    %p855 = scmp.ne.s32.totalorder %s850, %s852
    %p856 = scmp.eq.s32.totalorder %s81, 0
    %p857 = por %p855, %p856
    %p858 = scmp.ne.s32.totalorder %s850, %s852
    %p859 = scmp.eq.s32.totalorder %s86, 1
    %p860 = por %p858, %p859
    %p861 = scmp.ne.s32.totalorder %s852, %s853
    %p862 = scmp.eq.s32.totalorder %s86, 0
    %p863 = por %p861, %p862
    %p864 = scmp.ne.s32.totalorder %s852, %s853
    %p865 = scmp.eq.s32.totalorder %s87, 1
    %p866 = por %p864, %p865
    %p868 = scmp.ne.s32.totalorder %s853, %s867
    %p869 = scmp.eq.s32.totalorder %s87, 0
    %p870 = por %p868, %p869
    %s871 = ssub.s32 %s81, %s88
    %p872 = scmp.eq.s32.totalorder %s871, 0
    %s874 = sadd.s32 %s873, 1
    %s875 = scalar_select %p872, %s873, %s874
    %p878 = pneg %p872
    %p879 = scmp.eq.s32.totalorder %s81, 1
    %p880 = por %p878, %p879
    %p881 = scmp.ne.s32.totalorder %s873, %s876
    %p882 = scmp.eq.s32.totalorder %s81, 0
    %p883 = por %p881, %p882
    %p884 = scmp.ne.s32.totalorder %s873, %s876
    %p885 = scmp.eq.s32.totalorder %s86, 1
    %p886 = por %p884, %p885
    %p887 = scmp.ne.s32.totalorder %s876, %s877
    %p888 = scmp.eq.s32.totalorder %s86, 0
    %p889 = por %p887, %p888
    %p890 = scmp.ne.s32.totalorder %s876, %s877
    %p891 = scmp.eq.s32.totalorder %s87, 1
    %p892 = por %p890, %p891
    %p894 = scmp.ne.s32.totalorder %s877, %s893
    %p895 = scmp.eq.s32.totalorder %s87, 0
    %p896 = por %p894, %p895
    %p897 = scmp.le.s32.totalorder 1, %s81
    %p898 = scmp.lt.s32.totalorder %s81, 3
    %p899 = pnand %p897, %p898
    %p900 = pneg %p899
    // Predicated region
    $region9: #{transformer_forward.1} parent=5 // pred_check
      _
    $region10: #{transformer_forward.1} parent=5 // pred_check_branch
      %902 = sbr.rel (%p899) target = $region12
    $region11: #{transformer_forward.1} parent=5 // pred_region
      %s903 = ssub.s32 %s81, 1
      // Predicated region
      $region13: #{transformer_forward.1} parent=11 // pred_check
        %p904 = pneg %p128
      $region14: #{transformer_forward.1} parent=11 // pred_check_branch
        %906 = sbr.rel (%p904) target = $region16
      $region15: #{transformer_forward.1} parent=11 // pred_region
        _
      $region16: #{transformer_forward.1} parent=11 // pred_fallthru
        _
      // Predicated region
      $region17: #{transformer_forward.1} parent=11 // pred_check
        %p907 = pneg %p149
      $region18: #{transformer_forward.1} parent=11 // pred_check_branch
        %909 = sbr.rel (%p907) target = $region20
      $region19: #{transformer_forward.1} parent=11 // pred_region
        _
      $region20: #{transformer_forward.1} parent=11 // pred_fallthru
        _
      // Predicated region
      $region21: #{transformer_forward.1} parent=11 // pred_check
        %p910 = pneg %p170
      $region22: #{transformer_forward.1} parent=11 // pred_check_branch
        %912 = sbr.rel (%p910) target = $region24
      $region23: #{transformer_forward.1} parent=11 // pred_region
        _
      $region24: #{transformer_forward.1} parent=11 // pred_fallthru
        _
      // Predicated region
      $region25: #{transformer_forward.1} parent=11 // pred_check
        %p913 = pneg %p191
      $region26: #{transformer_forward.1} parent=11 // pred_check_branch
        %915 = sbr.rel (%p913) target = $region28
      $region27: #{transformer_forward.1} parent=11 // pred_region
        _
      $region28: #{transformer_forward.1} parent=11 // pred_fallthru
        _
      // Predicated region
      $region29: #{transformer_forward.1} parent=11 // pred_check
        %p916 = pneg %p212
      $region30: #{transformer_forward.1} parent=11 // pred_check_branch
        %918 = sbr.rel (%p916) target = $region32
      $region31: #{transformer_forward.1} parent=11 // pred_region
        _
      $region32: #{transformer_forward.1} parent=11 // pred_fallthru
        _
      // Predicated region
      $region33: #{transformer_forward.1} parent=11 // pred_check
        %p919 = pneg %p233
      $region34: #{transformer_forward.1} parent=11 // pred_check_branch
        %921 = sbr.rel (%p919) target = $region36
      $region35: #{transformer_forward.1} parent=11 // pred_region
        _
      $region36: #{transformer_forward.1} parent=11 // pred_fallthru
        _
      // Predicated region
      $region37: #{transformer_forward.1} parent=11 // pred_check
        %p922 = pneg %p254
      $region38: #{transformer_forward.1} parent=11 // pred_check_branch
        %924 = sbr.rel (%p922) target = $region40
      $region39: #{transformer_forward.1} parent=11 // pred_region
        _
      $region40: #{transformer_forward.1} parent=11 // pred_fallthru
        _
      // Predicated region
      $region41: #{transformer_forward.1} parent=11 // pred_check
        %p925 = pneg %p275
      $region42: #{transformer_forward.1} parent=11 // pred_check_branch
        %927 = sbr.rel (%p925) target = $region44
      $region43: #{transformer_forward.1} parent=11 // pred_region
        _
      $region44: #{transformer_forward.1} parent=11 // pred_fallthru
        _
      // Predicated region
      $region45: #{transformer_forward.1} parent=11 // pred_check
        %p928 = pneg %p296
      $region46: #{transformer_forward.1} parent=11 // pred_check_branch
        %930 = sbr.rel (%p928) target = $region48
      $region47: #{transformer_forward.1} parent=11 // pred_region
        _
      $region48: #{transformer_forward.1} parent=11 // pred_fallthru
        _
      // Predicated region
      $region49: #{transformer_forward.1} parent=11 // pred_check
        %p931 = pneg %p317
      $region50: #{transformer_forward.1} parent=11 // pred_check_branch
        %933 = sbr.rel (%p931) target = $region52
      $region51: #{transformer_forward.1} parent=11 // pred_region
        _
      $region52: #{transformer_forward.1} parent=11 // pred_fallthru
        _
      // Predicated region
      $region53: #{transformer_forward.1} parent=11 // pred_check
        %p934 = pneg %p338
      $region54: #{transformer_forward.1} parent=11 // pred_check_branch
        %936 = sbr.rel (%p934) target = $region56
      $region55: #{transformer_forward.1} parent=11 // pred_region
        _
      $region56: #{transformer_forward.1} parent=11 // pred_fallthru
        _
      // Predicated region
      $region57: #{transformer_forward.1} parent=11 // pred_check
        %p937 = pneg %p359
      $region58: #{transformer_forward.1} parent=11 // pred_check_branch
        %939 = sbr.rel (%p937) target = $region60
      $region59: #{transformer_forward.1} parent=11 // pred_region
        _
      $region60: #{transformer_forward.1} parent=11 // pred_fallthru
        _
      // Predicated region
      $region61: #{transformer_forward.1} parent=11 // pred_check
        %p940 = pneg %p380
      $region62: #{transformer_forward.1} parent=11 // pred_check_branch
        %942 = sbr.rel (%p940) target = $region64
      $region63: #{transformer_forward.1} parent=11 // pred_region
        _
      $region64: #{transformer_forward.1} parent=11 // pred_fallthru
        _
      // Predicated region
      $region65: #{transformer_forward.1} parent=11 // pred_check
        %p943 = pneg %p401
      $region66: #{transformer_forward.1} parent=11 // pred_check_branch
        %945 = sbr.rel (%p943) target = $region68
      $region67: #{transformer_forward.1} parent=11 // pred_region
        _
      $region68: #{transformer_forward.1} parent=11 // pred_fallthru
        _
      // Predicated region
      $region69: #{transformer_forward.1} parent=11 // pred_check
        %p946 = pneg %p422
      $region70: #{transformer_forward.1} parent=11 // pred_check_branch
        %948 = sbr.rel (%p946) target = $region72
      $region71: #{transformer_forward.1} parent=11 // pred_region
        _
      $region72: #{transformer_forward.1} parent=11 // pred_fallthru
        _
      // Predicated region
      $region73: #{transformer_forward.1} parent=11 // pred_check
        %p949 = pneg %p443
      $region74: #{transformer_forward.1} parent=11 // pred_check_branch
        %951 = sbr.rel (%p949) target = $region76
      $region75: #{transformer_forward.1} parent=11 // pred_region
        _
      $region76: #{transformer_forward.1} parent=11 // pred_fallthru
        _
      // Predicated region
      $region77: #{transformer_forward.1} parent=11 // pred_check
        %p952 = pneg %p464
      $region78: #{transformer_forward.1} parent=11 // pred_check_branch
        %954 = sbr.rel (%p952) target = $region80
      $region79: #{transformer_forward.1} parent=11 // pred_region
        _
      $region80: #{transformer_forward.1} parent=11 // pred_fallthru
        _
      // Predicated region
      $region81: #{transformer_forward.1} parent=11 // pred_check
        %p955 = pneg %p485
      $region82: #{transformer_forward.1} parent=11 // pred_check_branch
        %957 = sbr.rel (%p955) target = $region84
      $region83: #{transformer_forward.1} parent=11 // pred_region
        _
      $region84: #{transformer_forward.1} parent=11 // pred_fallthru
        _
      // Predicated region
      $region85: #{transformer_forward.1} parent=11 // pred_check
        %p958 = pneg %p506
      $region86: #{transformer_forward.1} parent=11 // pred_check_branch
        %960 = sbr.rel (%p958) target = $region88
      $region87: #{transformer_forward.1} parent=11 // pred_region
        _
      $region88: #{transformer_forward.1} parent=11 // pred_fallthru
        _
      // Predicated region
      $region89: #{transformer_forward.1} parent=11 // pred_check
        %p961 = pneg %p527
      $region90: #{transformer_forward.1} parent=11 // pred_check_branch
        %963 = sbr.rel (%p961) target = $region92
      $region91: #{transformer_forward.1} parent=11 // pred_region
        _
      $region92: #{transformer_forward.1} parent=11 // pred_fallthru
        _
      // Predicated region
      $region93: #{transformer_forward.1} parent=11 // pred_check
        %p964 = pneg %p548
      $region94: #{transformer_forward.1} parent=11 // pred_check_branch
        %966 = sbr.rel (%p964) target = $region96
      $region95: #{transformer_forward.1} parent=11 // pred_region
        _
      $region96: #{transformer_forward.1} parent=11 // pred_fallthru
        _
      // Predicated region
      $region97: #{transformer_forward.1} parent=11 // pred_check
        %p967 = pneg %p569
      $region98: #{transformer_forward.1} parent=11 // pred_check_branch
        %969 = sbr.rel (%p967) target = $region100
      $region99: #{transformer_forward.1} parent=11 // pred_region
        _
      $region100: #{transformer_forward.1} parent=11 // pred_fallthru
        _
      // Predicated region
      $region101: #{transformer_forward.1} parent=11 // pred_check
        %p970 = pneg %p590
      $region102: #{transformer_forward.1} parent=11 // pred_check_branch
        %972 = sbr.rel (%p970) target = $region104
      $region103: #{transformer_forward.1} parent=11 // pred_region
        _
      $region104: #{transformer_forward.1} parent=11 // pred_fallthru
        _
      // Predicated region
      $region105: #{transformer_forward.1} parent=11 // pred_check
        %p973 = pneg %p611
      $region106: #{transformer_forward.1} parent=11 // pred_check_branch
        %975 = sbr.rel (%p973) target = $region108
      $region107: #{transformer_forward.1} parent=11 // pred_region
        _
      $region108: #{transformer_forward.1} parent=11 // pred_fallthru
        _
      // Predicated region
      $region109: #{transformer_forward.1} parent=11 // pred_check
        %p976 = pneg %p632
      $region110: #{transformer_forward.1} parent=11 // pred_check_branch
        %978 = sbr.rel (%p976) target = $region112
      $region111: #{transformer_forward.1} parent=11 // pred_region
        _
      $region112: #{transformer_forward.1} parent=11 // pred_fallthru
        _
      // Predicated region
      $region113: #{transformer_forward.1} parent=11 // pred_check
        %p979 = pneg %p653
      $region114: #{transformer_forward.1} parent=11 // pred_check_branch
        %981 = sbr.rel (%p979) target = $region116
      $region115: #{transformer_forward.1} parent=11 // pred_region
        _
      $region116: #{transformer_forward.1} parent=11 // pred_fallthru
        _
      // Predicated region
      $region117: #{transformer_forward.1} parent=11 // pred_check
        %p982 = pneg %p674
      $region118: #{transformer_forward.1} parent=11 // pred_check_branch
        %984 = sbr.rel (%p982) target = $region120
      $region119: #{transformer_forward.1} parent=11 // pred_region
        _
      $region120: #{transformer_forward.1} parent=11 // pred_fallthru
        _
      // Predicated region
      $region121: #{transformer_forward.1} parent=11 // pred_check
        %p985 = pneg %p695
      $region122: #{transformer_forward.1} parent=11 // pred_check_branch
        %987 = sbr.rel (%p985) target = $region124
      $region123: #{transformer_forward.1} parent=11 // pred_region
        _
      $region124: #{transformer_forward.1} parent=11 // pred_fallthru
        _
      // Predicated region
      $region125: #{transformer_forward.1} parent=11 // pred_check
        %p988 = pneg %p716
      $region126: #{transformer_forward.1} parent=11 // pred_check_branch
        %990 = sbr.rel (%p988) target = $region128
      $region127: #{transformer_forward.1} parent=11 // pred_region
        _
      $region128: #{transformer_forward.1} parent=11 // pred_fallthru
        _
      // Predicated region
      $region129: #{transformer_forward.1} parent=11 // pred_check
        %p991 = pneg %p737
      $region130: #{transformer_forward.1} parent=11 // pred_check_branch
        %993 = sbr.rel (%p991) target = $region132
      $region131: #{transformer_forward.1} parent=11 // pred_region
        _
      $region132: #{transformer_forward.1} parent=11 // pred_fallthru
        _
      // Predicated region
      $region133: #{transformer_forward.1} parent=11 // pred_check
        %p994 = pneg %p758
      $region134: #{transformer_forward.1} parent=11 // pred_check_branch
        %996 = sbr.rel (%p994) target = $region136
      $region135: #{transformer_forward.1} parent=11 // pred_region
        _
      $region136: #{transformer_forward.1} parent=11 // pred_fallthru
        _
      // Predicated region
      $region137: #{transformer_forward.1} parent=11 // pred_check
        %p997 = pneg %p779
      $region138: #{transformer_forward.1} parent=11 // pred_check_branch
        %999 = sbr.rel (%p997) target = $region140
      $region139: #{transformer_forward.1} parent=11 // pred_region
        _
      $region140: #{transformer_forward.1} parent=11 // pred_fallthru
        _
      // Predicated region
      $region141: #{transformer_forward.1} parent=11 // pred_check
        %p1000 = pneg %p800
      $region142: #{transformer_forward.1} parent=11 // pred_check_branch
        %1002 = sbr.rel (%p1000) target = $region144
      $region143: #{transformer_forward.1} parent=11 // pred_region
        _
      $region144: #{transformer_forward.1} parent=11 // pred_fallthru
        _
      // Predicated region
      $region145: #{transformer_forward.1} parent=11 // pred_check
        %p1003 = pneg %p821
      $region146: #{transformer_forward.1} parent=11 // pred_check_branch
        %1005 = sbr.rel (%p1003) target = $region148
      $region147: #{transformer_forward.1} parent=11 // pred_region
        _
      $region148: #{transformer_forward.1} parent=11 // pred_fallthru
        _
      // Predicated region
      $region149: #{transformer_forward.1} parent=11 // pred_check
        %p1006 = pneg %p842
      $region150: #{transformer_forward.1} parent=11 // pred_check_branch
        %1008 = sbr.rel (%p1006) target = $region152
      $region151: #{transformer_forward.1} parent=11 // pred_region
        _
      $region152: #{transformer_forward.1} parent=11 // pred_fallthru
        _
      // Predicated region
      $region153: #{transformer_forward.1} parent=11 // pred_check
        %p1009 = pneg %p863
      $region154: #{transformer_forward.1} parent=11 // pred_check_branch
        %1011 = sbr.rel (%p1009) target = $region156
      $region155: #{transformer_forward.1} parent=11 // pred_region
        _
      $region156: #{transformer_forward.1} parent=11 // pred_fallthru
        _
    $region12: #{transformer_forward.1} parent=5 // pred_fallthru
      _
    %p1012 = scmp.lt.s32.totalorder %s81, 2
    // Predicated region
    $region157: #{transformer_forward.1} parent=5 // pred_check
      %p1013 = pneg %p1012
    $region158: #{transformer_forward.1} parent=5 // pred_check_branch
      %1015 = sbr.rel (%p1013) target = $region160
    $region159: #{transformer_forward.1} parent=5 // pred_region
      // Predicated region
      $region161: #{transformer_forward.1} parent=159 // pred_check
        %p1016 = pneg %p101
      $region162: #{transformer_forward.1} parent=159 // pred_check_branch
        %1018 = sbr.rel (%p1016) target = $region164
      $region163: #{transformer_forward.1} parent=159 // pred_region
        %p1019 = scmp.lt.s32.totalorder %s81, 1
        %s1020 = scalar_select %p1019, %s81, 1
        %s1021 = smul.addr %s1020, 8
        %s1022 = scalar_lea.vmem %s1, %s1021
      $region164: #{transformer_forward.1} parent=159 // pred_fallthru
        _
    $region160: #{transformer_forward.1} parent=5 // pred_fallthru
      _
    %p1023 = scmp.le.s32.totalorder 1, %s81
    %p1024 = scmp.lt.s32.totalorder %s81, 3
    %p1025 = pnand %p1023, %p1024
    %p1026 = pneg %p1025
    // Predicated region
    $region165: #{transformer_forward.1} parent=5 // pred_check
      _
    $region166: #{transformer_forward.1} parent=5 // pred_check_branch
      %1028 = sbr.rel (%p1025) target = $region168
    $region167: #{transformer_forward.1} parent=5 // pred_region
      %s1029 = ssub.s32 %s81, 1
      %p1030 = scmp.lt.s32.totalorder %s86, 1
      %s1031 = scalar_select %p1030, %s86, 1
      %s1032 = smul.addr %s1031, 8
      %s1033 = scalar_lea.vmem %s1, %s1032
      %p1034 = pneg %p107
      %p1035 = pneg %p104
      %p1036 = pneg %p128
      %p1037 = pneg %p125
      %p1038 = pneg %p149
      %p1039 = pneg %p146
      %p1040 = pneg %p170
      %p1041 = pneg %p167
      %p1042 = pneg %p191
      %p1043 = pneg %p188
      %p1044 = pneg %p212
      %p1045 = pneg %p209
      %p1046 = pneg %p233
      %p1047 = pneg %p230
      %p1048 = pneg %p254
      %p1049 = pneg %p251
      %p1050 = pneg %p275
      %p1051 = pneg %p272
      %p1052 = pneg %p296
      %p1053 = pneg %p293
      %p1054 = pneg %p317
      %p1055 = pneg %p314
      %p1056 = pneg %p338
      %p1057 = pneg %p335
      %p1058 = pneg %p359
      %p1059 = pneg %p356
      %p1060 = pneg %p380
      %p1061 = pneg %p377
      %p1062 = pneg %p401
      %p1063 = pneg %p398
      %p1064 = pneg %p422
      %p1065 = pneg %p419
      %p1066 = pneg %p443
      %p1067 = pneg %p440
      %p1068 = pneg %p464
      %p1069 = pneg %p461
      %p1070 = pneg %p485
      %p1071 = pneg %p482
      %p1072 = pneg %p506
      %p1073 = pneg %p503
      %p1074 = pneg %p527
      %p1075 = pneg %p524
      %p1076 = pneg %p548
      %p1077 = pneg %p545
      %p1078 = pneg %p569
      %p1079 = pneg %p566
      %p1080 = pneg %p590
      %p1081 = pneg %p587
      %p1082 = pneg %p611
      %p1083 = pneg %p608
      %p1084 = pneg %p632
      %p1085 = pneg %p629
      %p1086 = pneg %p653
      %p1087 = pneg %p650
      %p1088 = pneg %p674
      %p1089 = pneg %p671
      %p1090 = pneg %p695
      %p1091 = pneg %p692
      %p1092 = pneg %p716
      %p1093 = pneg %p713
      %p1094 = pneg %p737
      %p1095 = pneg %p734
      %p1096 = pneg %p758
      %p1097 = pneg %p755
      %p1098 = pneg %p779
      %p1099 = pneg %p776
      %p1100 = pneg %p800
      %p1101 = pneg %p797
      %p1102 = pneg %p821
      %p1103 = pneg %p818
      %p1104 = pneg %p842
      %p1105 = pneg %p839
      %p1106 = pneg %p863
      %p1107 = pneg %p860
      %p1108 = pneg %p889
      %p1109 = pneg %p886
      %p1110 = scmp.lt.s32.totalorder %s86, 1
      %s1111 = scalar_select %p1110, %s86, 1
      %s1112 = smul.addr %s1111, 8
      %s1113 = scalar_lea.vmem %s75, %s1112
      %p1114 = scmp.lt.s32.totalorder %s86, 1
      %s1115 = scalar_select %p1114, %s86, 1
      %s1116 = smul.addr %s1115, 8
      %s1117 = scalar_lea.vmem %s1, %s1116
      %p1118 = scmp.lt.s32.totalorder %s86, 1
      %s1119 = scalar_select %p1118, %s86, 1
      %s1120 = smul.addr %s1119, 8
      %s1121 = scalar_lea.vmem %s75, %s1120
      %v1123 = vld [vmem:[%s1117] sm:$0xff]
      %v1124 = vpack.c.bf16 %v1123, %v1123
      %v1125 = vld [vmem:[%s3] sm:$0xf]
      %v1126 = vld [vmem:[%s3 + $0x4] sm:$0xf]
      %v1127 = vld [vmem:[%s5] sm:$0x1]
      %v1129 = vperm.slane %v1127, 0
      %v1133 = vunpack.c.l.b16 %v1125
      %v1134 = vunpack.c.l.b16 %v1126
      %v1135 = vpack.c.b16 %v1134, %v1133
      %vm1137 = vcmask 130048
      %v1139 = vsel %vm1137, %v1124, 0
      %1141 = vmatpush.bf16.msra.mxu0 0
      %1142 = vmatpush.bf16.msra.mxu0 0
      %1143 = vmatpush.bf16.msra.mxu0 0
      %1144 = vmatpush.bf16.msra.mxu0 0
      %1145 = vmatpush.bf16.msra.mxu0 0
      %1146 = vmatpush.bf16.msra.mxu0 0
      %1147 = vmatpush.bf16.msra.mxu0 0
      %1148 = vmatpush.bf16.msra.mxu0 %v1135
      %1149 = vmatmul.bf16.gmra.mxu0 %v1139
      %v1150 = vpop.f32.mrf.mxu0
      %v1151 = vadd.f32 %v1129, %v1150
      %v1152 = vpop.f32.mrf.mxu0
      %1153 = vdwg.mxu0
      %v1154 = vpack.c.bf16 %v1151, %v1151
      %v1155 = vld [vmem:[%s21] sm:$0x1]
      %v1156 = vld [vmem:[%s7] sm:$0xf]
      %v1157 = vld [vmem:[%s7 + $0x4] sm:$0xf]
      %v1158 = vld [vmem:[%s7 + $0x8] sm:$0xf]
      %v1159 = vld [vmem:[%s7 + $0xc] sm:$0xf]
      %v1160 = vld [vmem:[%s9] sm:$0x1]
      %v1162 = vperm.slane %v1160, 0
      %v1168 = vunpack.c.l.b16 %v1156
      %v1169 = vunpack.c.l.b16 %v1157
      %v1170 = vunpack.c.l.b16 %v1158
      %v1171 = vunpack.c.l.b16 %v1159
      %v1172 = vpack.c.b16 %v1169, %v1168
      %v1173 = vpack.c.b16 %v1171, %v1170
      %vm1176 = vcmask 261120
      %v1178 = vsel %vm1176, %v1154, 0
      %1180 = vmatpush.bf16.msra.mxu0 0
      %1181 = vmatpush.bf16.msra.mxu0 0
      %1182 = vmatpush.bf16.msra.mxu0 0
      %1183 = vmatpush.bf16.msra.mxu0 0
      %1184 = vmatpush.bf16.msra.mxu0 0
      %1185 = vmatpush.bf16.msra.mxu0 0
      %1186 = vmatpush.bf16.msra.mxu0 %v1173
      %1187 = vmatpush.bf16.msra.mxu0 %v1172
      %1188 = vmatmul.bf16.gmra.mxu0 %v1178
      %v1189 = vpop.f32.mrf.mxu0
      %v1190 = vadd.f32 %v1162, %v1189
      %v1191 = vpop.f32.mrf.mxu0
      %1192 = vdwg.mxu0
      %v1193 = vld [vmem:[%s11] sm:$0xf]
      %v1194 = vld [vmem:[%s11 + $0x4] sm:$0xf]
      %v1195 = vld [vmem:[%s11 + $0x8] sm:$0xf]
      %v1196 = vld [vmem:[%s11 + $0xc] sm:$0xf]
      %v1197 = vld [vmem:[%s13] sm:$0x1]
      %v1199 = vperm.slane %v1197, 0
      %v1205 = vunpack.c.l.b16 %v1193
      %v1206 = vunpack.c.l.b16 %v1194
      %v1207 = vunpack.c.l.b16 %v1195
      %v1208 = vunpack.c.l.b16 %v1196
      %v1209 = vpack.c.b16 %v1206, %v1205
      %v1210 = vpack.c.b16 %v1208, %v1207
      %1213 = vmatpush.bf16.msra.mxu0 0
      %1214 = vmatpush.bf16.msra.mxu0 0
      %1215 = vmatpush.bf16.msra.mxu0 0
      %1216 = vmatpush.bf16.msra.mxu0 0
      %1217 = vmatpush.bf16.msra.mxu0 0
      %1218 = vmatpush.bf16.msra.mxu0 0
      %1219 = vmatpush.bf16.msra.mxu0 %v1210
      %1220 = vmatpush.bf16.msra.mxu0 %v1209
      %1221 = vmatmul.bf16.gmra.mxu0 %v1178
      %v1222 = vpop.f32.mrf.mxu0
      %v1223 = vadd.f32 %v1199, %v1222
      %v1224 = vpop.f32.mrf.mxu0
      %1225 = vdwg.mxu0
      %v1226 = vld [vmem:[%s15] sm:$0xf]
      %v1227 = vld [vmem:[%s15 + $0x4] sm:$0xf]
      %v1228 = vld [vmem:[%s15 + $0x8] sm:$0xf]
      %v1229 = vld [vmem:[%s15 + $0xc] sm:$0xf]
      %v1230 = vld [vmem:[%s17] sm:$0x1]
      %v1232 = vperm.slane %v1230, 0
      %v1238 = vunpack.c.l.b16 %v1226
      %v1239 = vunpack.c.l.b16 %v1227
      %v1240 = vunpack.c.l.b16 %v1228
      %v1241 = vunpack.c.l.b16 %v1229
      %v1242 = vpack.c.b16 %v1239, %v1238
      %v1243 = vpack.c.b16 %v1241, %v1240
      %1246 = vmatpush.bf16.msra.mxu0 0
      %1247 = vmatpush.bf16.msra.mxu0 0
      %1248 = vmatpush.bf16.msra.mxu0 0
      %1249 = vmatpush.bf16.msra.mxu0 0
      %1250 = vmatpush.bf16.msra.mxu0 0
      %1251 = vmatpush.bf16.msra.mxu0 0
      %1252 = vmatpush.bf16.msra.mxu0 %v1243
      %1253 = vmatpush.bf16.msra.mxu0 %v1242
      %1254 = vmatmul.bf16.gmra.mxu0 %v1178
      %v1255 = vpop.f32.mrf.mxu0
      %v1256 = vadd.f32 %v1232, %v1255
      %v1257 = vpop.f32.mrf.mxu0
      %1258 = vdwg.mxu0
      %v1259 = vpack.c.bf16 %v1190, %v1190
      %v1260 = vpack.c.bf16 %v1223, %v1223
      %vm1261 = vcmask 64512
      %v1263 = vsel %vm1261, %v1259, 0
      %v1266 = vsel %vm1261, %v1260, 0
      %1268 = vmatpush.bf16.xpose.msra.mxu0 0
      %1269 = vmatpush.bf16.xpose.msra.mxu0 0
      %1270 = vmatpush.bf16.xpose.msra.mxu0 0
      %1271 = vmatpush.bf16.xpose.msra.mxu0 0
      %1272 = vmatpush.bf16.xpose.msra.mxu0 0
      %1273 = vmatpush.bf16.xpose.msra.mxu0 0
      %1274 = vmatpush.bf16.xpose.msra.mxu0 0
      %1275 = vmatpush.bf16.xpose.msra.mxu0 %v1266
      %1276 = vmatmul.bf16.gmra.mxu0 %v1263
      %v1277 = vpop.f32.mrf.mxu0
      %v1278 = vadd.f32 0.0, %v1277
      %v1279 = vpop.f32.mrf.mxu0
      %1280 = vdwg.mxu0
      %v1281 = vmul.f32 %v1278, 0.35355338
      %v1282 = vsel %vm1261, %v1281, -inf
      %1283 = vmax.xlane.f32.xlu0 %v1282
      %v1284 = vpop.xlane.xlu0 %1283
      %v1285 = vsub.f32 %v1281, %v1284
      %v1286 = vmul.f32 %v1285, 1.442695
      %v1287 = vpow.pop %v1286
      %v1288 = vsel %vm1261, %v1287, 0.0
      %1289 = vadd.xlane.f32.xlu0 %v1288
      %v1290 = vpop.xlane.xlu0 %1289
      %v1291 = vrcp.pop %v1290
      %v1292 = vmul.f32 %v1287, %v1291
      %v1293 = vpack.c.bf16 %v1292, %v1292
      %v1294 = vpack.c.bf16 %v1256, %v1256
      %v1296 = vsel %vm1261, %v1293, 0
      %vm1298 = vcmask 1043456
      %v1300 = vsel %vm1298, %v1294, 0
      %1302 = vmatpush.bf16.msra.mxu0 0
      %1303 = vmatpush.bf16.msra.mxu0 0
      %1304 = vmatpush.bf16.msra.mxu0 0
      %1305 = vmatpush.bf16.msra.mxu0 0
      %1306 = vmatpush.bf16.msra.mxu0 0
      %1307 = vmatpush.bf16.msra.mxu0 0
      %1308 = vmatpush.bf16.msra.mxu0 0
      %1309 = vmatpush.bf16.msra.mxu0 %v1300
      %1310 = vmatmul.bf16.gmra.mxu0 %v1296
      %v1311 = vpop.f32.mrf.mxu0
      %v1312 = vadd.f32 0.0, %v1311
      %v1313 = vpop.f32.mrf.mxu0
      %1314 = vdwg.mxu0
      %v1315 = vpack.c.bf16 %v1312, %v1312
      %v1316 = vld [vmem:[%s19] sm:$0xf]
      %v1318 = vsel %vm1261, %v1315, 0
      %v1321 = vsel %vm1298, %v1316, 0
      %1323 = vmatpush.bf16.msra.mxu0 0
      %1324 = vmatpush.bf16.msra.mxu0 0
      %1325 = vmatpush.bf16.msra.mxu0 0
      %1326 = vmatpush.bf16.msra.mxu0 0
      %1327 = vmatpush.bf16.msra.mxu0 0
      %1328 = vmatpush.bf16.msra.mxu0 0
      %1329 = vmatpush.bf16.msra.mxu0 0
      %1330 = vmatpush.bf16.msra.mxu0 %v1321
      %1331 = vmatmul.bf16.gmra.mxu0 %v1318
      %v1332 = vpop.f32.mrf.mxu0
      %v1333 = vadd.f32 0.0, %v1332
      %v1334 = vpop.f32.mrf.mxu0
      %1335 = vdwg.mxu0
      %v1337 = vperm.slane %v1155, 0
      %v1339 = vadd.f32 %v1337, %v1333
      %s1340 = scalar_lea.vmem %s7, 16
      %v1341 = vld [vmem:[%s1340] sm:$0xf]
      %v1342 = vld [vmem:[%s1340 + $0x4] sm:$0xf]
      %v1343 = vld [vmem:[%s1340 + $0x8] sm:$0xf]
      %v1344 = vld [vmem:[%s1340 + $0xc] sm:$0xf]
      %s1345 = scalar_lea.vmem %s9, 1
      %v1346 = vld [vmem:[%s1345] sm:$0x1]
      %v1348 = vperm.slane %v1346, 0
      %v1354 = vunpack.c.l.b16 %v1341
      %v1355 = vunpack.c.l.b16 %v1342
      %v1356 = vunpack.c.l.b16 %v1343
      %v1357 = vunpack.c.l.b16 %v1344
      %v1358 = vpack.c.b16 %v1355, %v1354
      %v1359 = vpack.c.b16 %v1357, %v1356
      %1362 = vmatpush.bf16.msra.mxu0 0
      %1363 = vmatpush.bf16.msra.mxu0 0
      %1364 = vmatpush.bf16.msra.mxu0 0
      %1365 = vmatpush.bf16.msra.mxu0 0
      %1366 = vmatpush.bf16.msra.mxu0 0
      %1367 = vmatpush.bf16.msra.mxu0 0
      %1368 = vmatpush.bf16.msra.mxu0 %v1359
      %1369 = vmatpush.bf16.msra.mxu0 %v1358
      %1370 = vmatmul.bf16.gmra.mxu0 %v1178
      %v1371 = vpop.f32.mrf.mxu0
      %v1372 = vadd.f32 %v1348, %v1371
      %v1373 = vpop.f32.mrf.mxu0
      %1374 = vdwg.mxu0
      %s1375 = scalar_lea.vmem %s11, 16
      %v1376 = vld [vmem:[%s1375] sm:$0xf]
      %v1377 = vld [vmem:[%s1375 + $0x4] sm:$0xf]
      %v1378 = vld [vmem:[%s1375 + $0x8] sm:$0xf]
      %v1379 = vld [vmem:[%s1375 + $0xc] sm:$0xf]
      %s1380 = scalar_lea.vmem %s13, 1
      %v1381 = vld [vmem:[%s1380] sm:$0x1]
      %v1383 = vperm.slane %v1381, 0
      %v1389 = vunpack.c.l.b16 %v1376
      %v1390 = vunpack.c.l.b16 %v1377
      %v1391 = vunpack.c.l.b16 %v1378
      %v1392 = vunpack.c.l.b16 %v1379
      %v1393 = vpack.c.b16 %v1390, %v1389
      %v1394 = vpack.c.b16 %v1392, %v1391
      %1397 = vmatpush.bf16.msra.mxu0 0
      %1398 = vmatpush.bf16.msra.mxu0 0
      %1399 = vmatpush.bf16.msra.mxu0 0
      %1400 = vmatpush.bf16.msra.mxu0 0
      %1401 = vmatpush.bf16.msra.mxu0 0
      %1402 = vmatpush.bf16.msra.mxu0 0
      %1403 = vmatpush.bf16.msra.mxu0 %v1394
      %1404 = vmatpush.bf16.msra.mxu0 %v1393
      %1405 = vmatmul.bf16.gmra.mxu0 %v1178
      %v1406 = vpop.f32.mrf.mxu0
      %v1407 = vadd.f32 %v1383, %v1406
      %v1408 = vpop.f32.mrf.mxu0
      %1409 = vdwg.mxu0
      %s1410 = scalar_lea.vmem %s15, 16
      %v1411 = vld [vmem:[%s1410] sm:$0xf]
      %v1412 = vld [vmem:[%s1410 + $0x4] sm:$0xf]
      %v1413 = vld [vmem:[%s1410 + $0x8] sm:$0xf]
      %v1414 = vld [vmem:[%s1410 + $0xc] sm:$0xf]
      %s1415 = scalar_lea.vmem %s17, 1
      %v1416 = vld [vmem:[%s1415] sm:$0x1]
      %v1418 = vperm.slane %v1416, 0
      %v1424 = vunpack.c.l.b16 %v1411
      %v1425 = vunpack.c.l.b16 %v1412
      %v1426 = vunpack.c.l.b16 %v1413
      %v1427 = vunpack.c.l.b16 %v1414
      %v1428 = vpack.c.b16 %v1425, %v1424
      %v1429 = vpack.c.b16 %v1427, %v1426
      %1432 = vmatpush.bf16.msra.mxu0 0
      %1433 = vmatpush.bf16.msra.mxu0 0
      %1434 = vmatpush.bf16.msra.mxu0 0
      %1435 = vmatpush.bf16.msra.mxu0 0
      %1436 = vmatpush.bf16.msra.mxu0 0
      %1437 = vmatpush.bf16.msra.mxu0 0
      %1438 = vmatpush.bf16.msra.mxu0 %v1429
      %1439 = vmatpush.bf16.msra.mxu0 %v1428
      %1440 = vmatmul.bf16.gmra.mxu0 %v1178
      %v1441 = vpop.f32.mrf.mxu0
      %v1442 = vadd.f32 %v1418, %v1441
      %v1443 = vpop.f32.mrf.mxu0
      %1444 = vdwg.mxu0
      %v1445 = vpack.c.bf16 %v1372, %v1372
      %v1446 = vpack.c.bf16 %v1407, %v1407
      %v1448 = vsel %vm1261, %v1445, 0
      %v1451 = vsel %vm1261, %v1446, 0
      %1453 = vmatpush.bf16.xpose.msra.mxu0 0
      %1454 = vmatpush.bf16.xpose.msra.mxu0 0
      %1455 = vmatpush.bf16.xpose.msra.mxu0 0
      %1456 = vmatpush.bf16.xpose.msra.mxu0 0
      %1457 = vmatpush.bf16.xpose.msra.mxu0 0
      %1458 = vmatpush.bf16.xpose.msra.mxu0 0
      %1459 = vmatpush.bf16.xpose.msra.mxu0 0
      %1460 = vmatpush.bf16.xpose.msra.mxu0 %v1451
      %1461 = vmatmul.bf16.gmra.mxu0 %v1448
      %v1462 = vpop.f32.mrf.mxu0
      %v1463 = vadd.f32 0.0, %v1462
      %v1464 = vpop.f32.mrf.mxu0
      %1465 = vdwg.mxu0
      %v1466 = vmul.f32 %v1463, 0.35355338
      %v1467 = vsel %vm1261, %v1466, -inf
      %1468 = vmax.xlane.f32.xlu0 %v1467
      %v1469 = vpop.xlane.xlu0 %1468
      %v1470 = vsub.f32 %v1466, %v1469
      %v1471 = vmul.f32 %v1470, 1.442695
      %v1472 = vpow.pop %v1471
      %v1473 = vsel %vm1261, %v1472, 0.0
      %1474 = vadd.xlane.f32.xlu0 %v1473
      %v1475 = vpop.xlane.xlu0 %1474
      %v1476 = vrcp.pop %v1475
      %v1477 = vmul.f32 %v1472, %v1476
      %v1478 = vpack.c.bf16 %v1477, %v1477
      %v1479 = vpack.c.bf16 %v1442, %v1442
      %v1481 = vsel %vm1261, %v1478, 0
      %v1484 = vsel %vm1298, %v1479, 0
      %1486 = vmatpush.bf16.msra.mxu0 0
      %1487 = vmatpush.bf16.msra.mxu0 0
      %1488 = vmatpush.bf16.msra.mxu0 0
      %1489 = vmatpush.bf16.msra.mxu0 0
      %1490 = vmatpush.bf16.msra.mxu0 0
      %1491 = vmatpush.bf16.msra.mxu0 0
      %1492 = vmatpush.bf16.msra.mxu0 0
      %1493 = vmatpush.bf16.msra.mxu0 %v1484
      %1494 = vmatmul.bf16.gmra.mxu0 %v1481
      %v1495 = vpop.f32.mrf.mxu0
      %v1496 = vadd.f32 0.0, %v1495
      %v1497 = vpop.f32.mrf.mxu0
      %1498 = vdwg.mxu0
      %v1499 = vpack.c.bf16 %v1496, %v1496
      %s1500 = scalar_lea.vmem %s19, 4
      %v1501 = vld [vmem:[%s1500] sm:$0xf]
      %v1503 = vsel %vm1261, %v1499, 0
      %v1506 = vsel %vm1298, %v1501, 0
      %1508 = vmatpush.bf16.msra.mxu0 0
      %1509 = vmatpush.bf16.msra.mxu0 0
      %1510 = vmatpush.bf16.msra.mxu0 0
      %1511 = vmatpush.bf16.msra.mxu0 0
      %1512 = vmatpush.bf16.msra.mxu0 0
      %1513 = vmatpush.bf16.msra.mxu0 0
      %1514 = vmatpush.bf16.msra.mxu0 0
      %1515 = vmatpush.bf16.msra.mxu0 %v1506
      %1516 = vmatmul.bf16.gmra.mxu0 %v1503
      %v1517 = vpop.f32.mrf.mxu0
      %v1518 = vadd.f32 0.0, %v1517
      %v1519 = vpop.f32.mrf.mxu0
      %1520 = vdwg.mxu0
      %v1521 = vadd.f32 %v1339, %v1518
      %s1522 = scalar_lea.vmem %s7, 32
      %v1523 = vld [vmem:[%s1522] sm:$0xf]
      %v1524 = vld [vmem:[%s1522 + $0x4] sm:$0xf]
      %v1525 = vld [vmem:[%s1522 + $0x8] sm:$0xf]
      %v1526 = vld [vmem:[%s1522 + $0xc] sm:$0xf]
      %s1527 = scalar_lea.vmem %s9, 2
      %v1528 = vld [vmem:[%s1527] sm:$0x1]
      %v1530 = vperm.slane %v1528, 0
      %v1536 = vunpack.c.l.b16 %v1523
      %v1537 = vunpack.c.l.b16 %v1524
      %v1538 = vunpack.c.l.b16 %v1525
      %v1539 = vunpack.c.l.b16 %v1526
      %v1540 = vpack.c.b16 %v1537, %v1536
      %v1541 = vpack.c.b16 %v1539, %v1538
      %1544 = vmatpush.bf16.msra.mxu0 0
      %1545 = vmatpush.bf16.msra.mxu0 0
      %1546 = vmatpush.bf16.msra.mxu0 0
      %1547 = vmatpush.bf16.msra.mxu0 0
      %1548 = vmatpush.bf16.msra.mxu0 0
      %1549 = vmatpush.bf16.msra.mxu0 0
      %1550 = vmatpush.bf16.msra.mxu0 %v1541
      %1551 = vmatpush.bf16.msra.mxu0 %v1540
      %1552 = vmatmul.bf16.gmra.mxu0 %v1178
      %v1553 = vpop.f32.mrf.mxu0
      %v1554 = vadd.f32 %v1530, %v1553
      %v1555 = vpop.f32.mrf.mxu0
      %1556 = vdwg.mxu0
      %s1557 = scalar_lea.vmem %s11, 32
      %v1558 = vld [vmem:[%s1557] sm:$0xf]
      %v1559 = vld [vmem:[%s1557 + $0x4] sm:$0xf]
      %v1560 = vld [vmem:[%s1557 + $0x8] sm:$0xf]
      %v1561 = vld [vmem:[%s1557 + $0xc] sm:$0xf]
      %s1562 = scalar_lea.vmem %s13, 2
      %v1563 = vld [vmem:[%s1562] sm:$0x1]
      %v1565 = vperm.slane %v1563, 0
      %v1571 = vunpack.c.l.b16 %v1558
      %v1572 = vunpack.c.l.b16 %v1559
      %v1573 = vunpack.c.l.b16 %v1560
      %v1574 = vunpack.c.l.b16 %v1561
      %v1575 = vpack.c.b16 %v1572, %v1571
      %v1576 = vpack.c.b16 %v1574, %v1573
      %1579 = vmatpush.bf16.msra.mxu0 0
      %1580 = vmatpush.bf16.msra.mxu0 0
      %1581 = vmatpush.bf16.msra.mxu0 0
      %1582 = vmatpush.bf16.msra.mxu0 0
      %1583 = vmatpush.bf16.msra.mxu0 0
      %1584 = vmatpush.bf16.msra.mxu0 0
      %1585 = vmatpush.bf16.msra.mxu0 %v1576
      %1586 = vmatpush.bf16.msra.mxu0 %v1575
      %1587 = vmatmul.bf16.gmra.mxu0 %v1178
      %v1588 = vpop.f32.mrf.mxu0
      %v1589 = vadd.f32 %v1565, %v1588
      %v1590 = vpop.f32.mrf.mxu0
      %1591 = vdwg.mxu0
      %s1592 = scalar_lea.vmem %s15, 32
      %v1593 = vld [vmem:[%s1592] sm:$0xf]
      %v1594 = vld [vmem:[%s1592 + $0x4] sm:$0xf]
      %v1595 = vld [vmem:[%s1592 + $0x8] sm:$0xf]
      %v1596 = vld [vmem:[%s1592 + $0xc] sm:$0xf]
      %s1597 = scalar_lea.vmem %s17, 2
      %v1598 = vld [vmem:[%s1597] sm:$0x1]
      %v1600 = vperm.slane %v1598, 0
      %v1606 = vunpack.c.l.b16 %v1593
      %v1607 = vunpack.c.l.b16 %v1594
      %v1608 = vunpack.c.l.b16 %v1595
      %v1609 = vunpack.c.l.b16 %v1596
      %v1610 = vpack.c.b16 %v1607, %v1606
      %v1611 = vpack.c.b16 %v1609, %v1608
      %1614 = vmatpush.bf16.msra.mxu0 0
      %1615 = vmatpush.bf16.msra.mxu0 0
      %1616 = vmatpush.bf16.msra.mxu0 0
      %1617 = vmatpush.bf16.msra.mxu0 0
      %1618 = vmatpush.bf16.msra.mxu0 0
      %1619 = vmatpush.bf16.msra.mxu0 0
      %1620 = vmatpush.bf16.msra.mxu0 %v1611
      %1621 = vmatpush.bf16.msra.mxu0 %v1610
      %1622 = vmatmul.bf16.gmra.mxu0 %v1178
      %v1623 = vpop.f32.mrf.mxu0
      %v1624 = vadd.f32 %v1600, %v1623
      %v1625 = vpop.f32.mrf.mxu0
      %1626 = vdwg.mxu0
      %v1627 = vpack.c.bf16 %v1554, %v1554
      %v1628 = vpack.c.bf16 %v1589, %v1589
      %v1630 = vsel %vm1261, %v1627, 0
      %v1633 = vsel %vm1261, %v1628, 0
      %1635 = vmatpush.bf16.xpose.msra.mxu0 0
      %1636 = vmatpush.bf16.xpose.msra.mxu0 0
      %1637 = vmatpush.bf16.xpose.msra.mxu0 0
      %1638 = vmatpush.bf16.xpose.msra.mxu0 0
      %1639 = vmatpush.bf16.xpose.msra.mxu0 0
      %1640 = vmatpush.bf16.xpose.msra.mxu0 0
      %1641 = vmatpush.bf16.xpose.msra.mxu0 0
      %1642 = vmatpush.bf16.xpose.msra.mxu0 %v1633
      %1643 = vmatmul.bf16.gmra.mxu0 %v1630
      %v1644 = vpop.f32.mrf.mxu0
      %v1645 = vadd.f32 0.0, %v1644
      %v1646 = vpop.f32.mrf.mxu0
      %1647 = vdwg.mxu0
      %v1648 = vmul.f32 %v1645, 0.35355338
      %v1649 = vsel %vm1261, %v1648, -inf
      %1650 = vmax.xlane.f32.xlu0 %v1649
      %v1651 = vpop.xlane.xlu0 %1650
      %v1652 = vsub.f32 %v1648, %v1651
      %v1653 = vmul.f32 %v1652, 1.442695
      %v1654 = vpow.pop %v1653
      %v1655 = vsel %vm1261, %v1654, 0.0
      %1656 = vadd.xlane.f32.xlu0 %v1655
      %v1657 = vpop.xlane.xlu0 %1656
      %v1658 = vrcp.pop %v1657
      %v1659 = vmul.f32 %v1654, %v1658
      %v1660 = vpack.c.bf16 %v1659, %v1659
      %v1661 = vpack.c.bf16 %v1624, %v1624
      %v1663 = vsel %vm1261, %v1660, 0
      %v1666 = vsel %vm1298, %v1661, 0
      %1668 = vmatpush.bf16.msra.mxu0 0
      %1669 = vmatpush.bf16.msra.mxu0 0
      %1670 = vmatpush.bf16.msra.mxu0 0
      %1671 = vmatpush.bf16.msra.mxu0 0
      %1672 = vmatpush.bf16.msra.mxu0 0
      %1673 = vmatpush.bf16.msra.mxu0 0
      %1674 = vmatpush.bf16.msra.mxu0 0
      %1675 = vmatpush.bf16.msra.mxu0 %v1666
      %1676 = vmatmul.bf16.gmra.mxu0 %v1663
      %v1677 = vpop.f32.mrf.mxu0
      %v1678 = vadd.f32 0.0, %v1677
      %v1679 = vpop.f32.mrf.mxu0
      %1680 = vdwg.mxu0
      %v1681 = vpack.c.bf16 %v1678, %v1678
      %s1682 = scalar_lea.vmem %s19, 8
      %v1683 = vld [vmem:[%s1682] sm:$0xf]
      %v1685 = vsel %vm1261, %v1681, 0
      %v1688 = vsel %vm1298, %v1683, 0
      %1690 = vmatpush.bf16.msra.mxu0 0
      %1691 = vmatpush.bf16.msra.mxu0 0
      %1692 = vmatpush.bf16.msra.mxu0 0
      %1693 = vmatpush.bf16.msra.mxu0 0
      %1694 = vmatpush.bf16.msra.mxu0 0
      %1695 = vmatpush.bf16.msra.mxu0 0
      %1696 = vmatpush.bf16.msra.mxu0 0
      %1697 = vmatpush.bf16.msra.mxu0 %v1688
      %1698 = vmatmul.bf16.gmra.mxu0 %v1685
      %v1699 = vpop.f32.mrf.mxu0
      %v1700 = vadd.f32 0.0, %v1699
      %v1701 = vpop.f32.mrf.mxu0
      %1702 = vdwg.mxu0
      %v1703 = vadd.f32 %v1521, %v1700
      %s1704 = scalar_lea.vmem %s7, 48
      %v1705 = vld [vmem:[%s1704] sm:$0xf]
      %v1706 = vld [vmem:[%s1704 + $0x4] sm:$0xf]
      %v1707 = vld [vmem:[%s1704 + $0x8] sm:$0xf]
      %v1708 = vld [vmem:[%s1704 + $0xc] sm:$0xf]
      %s1709 = scalar_lea.vmem %s9, 3
      %v1710 = vld [vmem:[%s1709] sm:$0x1]
      %v1712 = vperm.slane %v1710, 0
      %v1718 = vunpack.c.l.b16 %v1705
      %v1719 = vunpack.c.l.b16 %v1706
      %v1720 = vunpack.c.l.b16 %v1707
      %v1721 = vunpack.c.l.b16 %v1708
      %v1722 = vpack.c.b16 %v1719, %v1718
      %v1723 = vpack.c.b16 %v1721, %v1720
      %1726 = vmatpush.bf16.msra.mxu0 0
      %1727 = vmatpush.bf16.msra.mxu0 0
      %1728 = vmatpush.bf16.msra.mxu0 0
      %1729 = vmatpush.bf16.msra.mxu0 0
      %1730 = vmatpush.bf16.msra.mxu0 0
      %1731 = vmatpush.bf16.msra.mxu0 0
      %1732 = vmatpush.bf16.msra.mxu0 %v1723
      %1733 = vmatpush.bf16.msra.mxu0 %v1722
      %1734 = vmatmul.bf16.gmra.mxu0 %v1178
      %v1735 = vpop.f32.mrf.mxu0
      %v1736 = vadd.f32 %v1712, %v1735
      %v1737 = vpop.f32.mrf.mxu0
      %1738 = vdwg.mxu0
      %s1739 = scalar_lea.vmem %s11, 48
      %v1740 = vld [vmem:[%s1739] sm:$0xf]
      %v1741 = vld [vmem:[%s1739 + $0x4] sm:$0xf]
      %v1742 = vld [vmem:[%s1739 + $0x8] sm:$0xf]
      %v1743 = vld [vmem:[%s1739 + $0xc] sm:$0xf]
      %s1744 = scalar_lea.vmem %s13, 3
      %v1745 = vld [vmem:[%s1744] sm:$0x1]
      %v1747 = vperm.slane %v1745, 0
      %v1753 = vunpack.c.l.b16 %v1740
      %v1754 = vunpack.c.l.b16 %v1741
      %v1755 = vunpack.c.l.b16 %v1742
      %v1756 = vunpack.c.l.b16 %v1743
      %v1757 = vpack.c.b16 %v1754, %v1753
      %v1758 = vpack.c.b16 %v1756, %v1755
      %1761 = vmatpush.bf16.msra.mxu0 0
      %1762 = vmatpush.bf16.msra.mxu0 0
      %1763 = vmatpush.bf16.msra.mxu0 0
      %1764 = vmatpush.bf16.msra.mxu0 0
      %1765 = vmatpush.bf16.msra.mxu0 0
      %1766 = vmatpush.bf16.msra.mxu0 0
      %1767 = vmatpush.bf16.msra.mxu0 %v1758
      %1768 = vmatpush.bf16.msra.mxu0 %v1757
      %1769 = vmatmul.bf16.gmra.mxu0 %v1178
      %v1770 = vpop.f32.mrf.mxu0
      %v1771 = vadd.f32 %v1747, %v1770
      %v1772 = vpop.f32.mrf.mxu0
      %1773 = vdwg.mxu0
      %s1774 = scalar_lea.vmem %s15, 48
      %v1775 = vld [vmem:[%s1774] sm:$0xf]
      %v1776 = vld [vmem:[%s1774 + $0x4] sm:$0xf]
      %v1777 = vld [vmem:[%s1774 + $0x8] sm:$0xf]
      %v1778 = vld [vmem:[%s1774 + $0xc] sm:$0xf]
      %s1779 = scalar_lea.vmem %s17, 3
      %v1780 = vld [vmem:[%s1779] sm:$0x1]
      %v1782 = vperm.slane %v1780, 0
      %v1788 = vunpack.c.l.b16 %v1775
      %v1789 = vunpack.c.l.b16 %v1776
      %v1790 = vunpack.c.l.b16 %v1777
      %v1791 = vunpack.c.l.b16 %v1778
      %v1792 = vpack.c.b16 %v1789, %v1788
      %v1793 = vpack.c.b16 %v1791, %v1790
      %1796 = vmatpush.bf16.msra.mxu0 0
      %1797 = vmatpush.bf16.msra.mxu0 0
      %1798 = vmatpush.bf16.msra.mxu0 0
      %1799 = vmatpush.bf16.msra.mxu0 0
      %1800 = vmatpush.bf16.msra.mxu0 0
      %1801 = vmatpush.bf16.msra.mxu0 0
      %1802 = vmatpush.bf16.msra.mxu0 %v1793
      %1803 = vmatpush.bf16.msra.mxu0 %v1792
      %1804 = vmatmul.bf16.gmra.mxu0 %v1178
      %v1805 = vpop.f32.mrf.mxu0
      %v1806 = vadd.f32 %v1782, %v1805
      %v1807 = vpop.f32.mrf.mxu0
      %1808 = vdwg.mxu0
      %v1809 = vpack.c.bf16 %v1736, %v1736
      %v1810 = vpack.c.bf16 %v1771, %v1771
      %v1812 = vsel %vm1261, %v1809, 0
      %v1815 = vsel %vm1261, %v1810, 0
      %1817 = vmatpush.bf16.xpose.msra.mxu0 0
      %1818 = vmatpush.bf16.xpose.msra.mxu0 0
      %1819 = vmatpush.bf16.xpose.msra.mxu0 0
      %1820 = vmatpush.bf16.xpose.msra.mxu0 0
      %1821 = vmatpush.bf16.xpose.msra.mxu0 0
      %1822 = vmatpush.bf16.xpose.msra.mxu0 0
      %1823 = vmatpush.bf16.xpose.msra.mxu0 0
      %1824 = vmatpush.bf16.xpose.msra.mxu0 %v1815
      %1825 = vmatmul.bf16.gmra.mxu0 %v1812
      %v1826 = vpop.f32.mrf.mxu0
      %v1827 = vadd.f32 0.0, %v1826
      %v1828 = vpop.f32.mrf.mxu0
      %1829 = vdwg.mxu0
      %v1830 = vmul.f32 %v1827, 0.35355338
      %v1831 = vsel %vm1261, %v1830, -inf
      %1832 = vmax.xlane.f32.xlu0 %v1831
      %v1833 = vpop.xlane.xlu0 %1832
      %v1834 = vsub.f32 %v1830, %v1833
      %v1835 = vmul.f32 %v1834, 1.442695
      %v1836 = vpow.pop %v1835
      %v1837 = vsel %vm1261, %v1836, 0.0
      %1838 = vadd.xlane.f32.xlu0 %v1837
      %v1839 = vpop.xlane.xlu0 %1838
      %v1840 = vrcp.pop %v1839
      %v1841 = vmul.f32 %v1836, %v1840
      %v1842 = vpack.c.bf16 %v1841, %v1841
      %v1843 = vpack.c.bf16 %v1806, %v1806
      %v1845 = vsel %vm1261, %v1842, 0
      %v1848 = vsel %vm1298, %v1843, 0
      %1850 = vmatpush.bf16.msra.mxu0 0
      %1851 = vmatpush.bf16.msra.mxu0 0
      %1852 = vmatpush.bf16.msra.mxu0 0
      %1853 = vmatpush.bf16.msra.mxu0 0
      %1854 = vmatpush.bf16.msra.mxu0 0
      %1855 = vmatpush.bf16.msra.mxu0 0
      %1856 = vmatpush.bf16.msra.mxu0 0
      %1857 = vmatpush.bf16.msra.mxu0 %v1848
      %1858 = vmatmul.bf16.gmra.mxu0 %v1845
      %v1859 = vpop.f32.mrf.mxu0
      %v1860 = vadd.f32 0.0, %v1859
      %v1861 = vpop.f32.mrf.mxu0
      %1862 = vdwg.mxu0
      %v1863 = vpack.c.bf16 %v1860, %v1860
      %s1864 = scalar_lea.vmem %s19, 12
      %v1865 = vld [vmem:[%s1864] sm:$0xf]
      %v1867 = vsel %vm1261, %v1863, 0
      %v1870 = vsel %vm1298, %v1865, 0
      %1872 = vmatpush.bf16.msra.mxu0 0
      %1873 = vmatpush.bf16.msra.mxu0 0
      %1874 = vmatpush.bf16.msra.mxu0 0
      %1875 = vmatpush.bf16.msra.mxu0 0
      %1876 = vmatpush.bf16.msra.mxu0 0
      %1877 = vmatpush.bf16.msra.mxu0 0
      %1878 = vmatpush.bf16.msra.mxu0 0
      %1879 = vmatpush.bf16.msra.mxu0 %v1870
      %1880 = vmatmul.bf16.gmra.mxu0 %v1867
      %v1881 = vpop.f32.mrf.mxu0
      %v1882 = vadd.f32 0.0, %v1881
      %v1883 = vpop.f32.mrf.mxu0
      %1884 = vdwg.mxu0
      %v1885 = vadd.f32 %v1703, %v1882
      %v1886 = vadd.f32 %v1151, %v1885
      %v1887 = vld [vmem:[%s23] sm:$0x1]
      %v1888 = vld [vmem:[%s25] sm:$0x1]
      %v1889 = vsel %vm1176, %v1886, 0.0
      %1890 = vadd.xlane.f32.xlu0 %v1889
      %v1891 = vpop.xlane.xlu0 %1890
      %v1892 = vrcp.pop 32.0
      %v1893 = vmul.f32 32.0, %v1892
      %v1894 = vsub.f32 1.0, %v1893
      %v1895 = vmul.f32 %v1892, %v1894
      %v1896 = vadd.f32 %v1892, %v1895
      %vm1897 = vweird.f32 %v1892
      %v1898 = vsel %vm1897, %v1892, %v1896
      %v1899 = vmul.f32 %v1891, %v1898
      %v1900 = vsub.f32 %v1886, %v1899
      %v1901 = vmul.f32 %v1900, %v1900
      %v1902 = vsel %vm1176, %v1901, 0.0
      %1903 = vadd.xlane.f32.xlu0 %v1902
      %v1904 = vpop.xlane.xlu0 %1903
      %v1905 = vmul.f32 %v1904, %v1898
      %v1906 = vadd.f32 %v1905, 1e-05
      %v1907 = vrsqrt.pop %v1906
      %v1908 = vmul.f32 %v1907, %v1906
      %v1909 = vmul.f32 %v1908, %v1907
      %v1910 = vmul.f32 0.5, %v1909
      %v1911 = vsub.f32 1.5, %v1910
      %v1912 = vmul.f32 %v1907, %v1911
      %vm1913 = vweird.f32 %v1906
      %vm1914 = vweird.f32 %v1907
      %vm1915 = vmor %vm1913, %vm1914
      %v1916 = vsel %vm1915, %v1907, %v1912
      %v1917 = vmul.f32 %v1900, %v1916
      %v1919 = vperm.slane %v1887, 0
      %v1921 = vmul.f32 %v1917, %v1919
      %v1923 = vperm.slane %v1888, 0
      %v1925 = vadd.f32 %v1921, %v1923
      %v1926 = vpack.c.bf16 %v1925, %v1925
      %v1927 = vld [vmem:[%s27] sm:$0xf]
      %v1928 = vld [vmem:[%s27 + $0x4] sm:$0xf]
      %v1929 = vld [vmem:[%s27 + $0x8] sm:$0xf]
      %v1930 = vld [vmem:[%s27 + $0xc] sm:$0xf]
      %v1931 = vld [vmem:[%s29] sm:$0x1]
      %v1933 = vperm.slane %v1931, 0
      %v1939 = vunpack.c.l.b16 %v1927
      %v1940 = vunpack.c.l.b16 %v1928
      %v1941 = vunpack.c.l.b16 %v1929
      %v1942 = vunpack.c.l.b16 %v1930
      %v1943 = vpack.c.b16 %v1940, %v1939
      %v1944 = vpack.c.b16 %v1942, %v1941
      %v1948 = vsel %vm1176, %v1926, 0
      %1950 = vmatpush.bf16.msra.mxu0 0
      %1951 = vmatpush.bf16.msra.mxu0 0
      %1952 = vmatpush.bf16.msra.mxu0 0
      %1953 = vmatpush.bf16.msra.mxu0 0
      %1954 = vmatpush.bf16.msra.mxu0 0
      %1955 = vmatpush.bf16.msra.mxu0 0
      %1956 = vmatpush.bf16.msra.mxu0 %v1944
      %1957 = vmatpush.bf16.msra.mxu0 %v1943
      %1958 = vmatmul.bf16.gmra.mxu0 %v1948
      %v1959 = vpop.f32.mrf.mxu0
      %v1960 = vadd.f32 %v1933, %v1959
      %v1961 = vpop.f32.mrf.mxu0
      %1962 = vdwg.mxu0
      %v1963 = vmax.f32 %v1960, 0.0
      %v1964 = vpack.c.bf16 %v1963, %v1963
      %v1965 = vld [vmem:[%s31] sm:$0xf]
      %v1966 = vld [vmem:[%s31 + $0x4] sm:$0xf]
      %v1967 = vld [vmem:[%s31 + $0x8] sm:$0xf]
      %v1968 = vld [vmem:[%s31 + $0xc] sm:$0xf]
      %v1969 = vld [vmem:[%s31 + $0x10] sm:$0xf]
      %v1970 = vld [vmem:[%s31 + $0x14] sm:$0xf]
      %v1971 = vld [vmem:[%s31 + $0x18] sm:$0xf]
      %v1972 = vld [vmem:[%s31 + $0x1c] sm:$0xf]
      %v1973 = vld [vmem:[%s31 + $0x20] sm:$0xf]
      %v1974 = vld [vmem:[%s31 + $0x24] sm:$0xf]
      %v1975 = vld [vmem:[%s31 + $0x28] sm:$0xf]
      %v1976 = vld [vmem:[%s31 + $0x2c] sm:$0xf]
      %v1977 = vld [vmem:[%s31 + $0x30] sm:$0xf]
      %v1978 = vld [vmem:[%s31 + $0x34] sm:$0xf]
      %v1979 = vld [vmem:[%s31 + $0x38] sm:$0xf]
      %v1980 = vld [vmem:[%s31 + $0x3c] sm:$0xf]
      %v1981 = vld [vmem:[%s33] sm:$0x1]
      %v1983 = vperm.slane %v1981, 0
      %v2001 = vunpack.c.l.b16 %v1965
      %v2002 = vunpack.c.l.b16 %v1966
      %v2003 = vunpack.c.l.b16 %v1967
      %v2004 = vunpack.c.l.b16 %v1968
      %v2005 = vunpack.c.l.b16 %v1969
      %v2006 = vunpack.c.l.b16 %v1970
      %v2007 = vunpack.c.l.b16 %v1971
      %v2008 = vunpack.c.l.b16 %v1972
      %v2009 = vunpack.c.l.b16 %v1973
      %v2010 = vunpack.c.l.b16 %v1974
      %v2011 = vunpack.c.l.b16 %v1975
      %v2012 = vunpack.c.l.b16 %v1976
      %v2013 = vunpack.c.l.b16 %v1977
      %v2014 = vunpack.c.l.b16 %v1978
      %v2015 = vunpack.c.l.b16 %v1979
      %v2016 = vunpack.c.l.b16 %v1980
      %v2017 = vpack.c.b16 %v2002, %v2001
      %v2018 = vpack.c.b16 %v2004, %v2003
      %v2019 = vpack.c.b16 %v2006, %v2005
      %v2020 = vpack.c.b16 %v2008, %v2007
      %v2021 = vpack.c.b16 %v2010, %v2009
      %v2022 = vpack.c.b16 %v2012, %v2011
      %v2023 = vpack.c.b16 %v2014, %v2013
      %v2024 = vpack.c.b16 %v2016, %v2015
      %2033 = vmatpush.bf16.msra.mxu0 %v2024
      %2034 = vmatpush.bf16.msra.mxu0 %v2023
      %2035 = vmatpush.bf16.msra.mxu0 %v2022
      %2036 = vmatpush.bf16.msra.mxu0 %v2021
      %2037 = vmatpush.bf16.msra.mxu0 %v2020
      %2038 = vmatpush.bf16.msra.mxu0 %v2019
      %2039 = vmatpush.bf16.msra.mxu0 %v2018
      %2040 = vmatpush.bf16.msra.mxu0 %v2017
      %2041 = vmatmul.bf16.gmra.mxu0 %v1964
      %v2042 = vpop.f32.mrf.mxu0
      %v2043 = vadd.f32 %v1983, %v2042
      %v2044 = vpop.f32.mrf.mxu0
      %2045 = vdwg.mxu0
      %v2046 = vadd.f32 %v1925, %v2043
      %v2047 = vld [vmem:[%s35] sm:$0x1]
      %v2048 = vld [vmem:[%s37] sm:$0x1]
      %v2049 = vsel %vm1176, %v2046, 0.0
      %2050 = vadd.xlane.f32.xlu0 %v2049
      %v2051 = vpop.xlane.xlu0 %2050
      %v2052 = vmul.f32 %v2051, %v1898
      %v2053 = vsub.f32 %v2046, %v2052
      %v2054 = vmul.f32 %v2053, %v2053
      %v2055 = vsel %vm1176, %v2054, 0.0
      %2056 = vadd.xlane.f32.xlu0 %v2055
      %v2057 = vpop.xlane.xlu0 %2056
      %v2058 = vmul.f32 %v2057, %v1898
      %v2059 = vadd.f32 %v2058, 1e-05
      %v2060 = vrsqrt.pop %v2059
      %v2061 = vmul.f32 %v2060, %v2059
      %v2062 = vmul.f32 %v2061, %v2060
      %v2063 = vmul.f32 0.5, %v2062
      %v2064 = vsub.f32 1.5, %v2063
      %v2065 = vmul.f32 %v2060, %v2064
      %vm2066 = vweird.f32 %v2059
      %vm2067 = vweird.f32 %v2060
      %vm2068 = vmor %vm2066, %vm2067
      %v2069 = vsel %vm2068, %v2060, %v2065
      %v2070 = vmul.f32 %v2053, %v2069
      %v2072 = vperm.slane %v2047, 0
      %v2074 = vmul.f32 %v2070, %v2072
      %v2076 = vperm.slane %v2048, 0
      %v2078 = vadd.f32 %v2074, %v2076
      %v2079 = vpack.c.bf16 %v2078, %v2078
      %v2080 = vld [vmem:[%s53] sm:$0x1]
      %v2081 = vld [vmem:[%s39] sm:$0xf]
      %v2082 = vld [vmem:[%s39 + $0x4] sm:$0xf]
      %v2083 = vld [vmem:[%s39 + $0x8] sm:$0xf]
      %v2084 = vld [vmem:[%s39 + $0xc] sm:$0xf]
      %v2085 = vld [vmem:[%s41] sm:$0x1]
      %v2087 = vperm.slane %v2085, 0
      %v2093 = vunpack.c.l.b16 %v2081
      %v2094 = vunpack.c.l.b16 %v2082
      %v2095 = vunpack.c.l.b16 %v2083
      %v2096 = vunpack.c.l.b16 %v2084
      %v2097 = vpack.c.b16 %v2094, %v2093
      %v2098 = vpack.c.b16 %v2096, %v2095
      %v2102 = vsel %vm1176, %v2079, 0
      %2104 = vmatpush.bf16.msra.mxu0 0
      %2105 = vmatpush.bf16.msra.mxu0 0
      %2106 = vmatpush.bf16.msra.mxu0 0
      %2107 = vmatpush.bf16.msra.mxu0 0
      %2108 = vmatpush.bf16.msra.mxu0 0
      %2109 = vmatpush.bf16.msra.mxu0 0
      %2110 = vmatpush.bf16.msra.mxu0 %v2098
      %2111 = vmatpush.bf16.msra.mxu0 %v2097
      %2112 = vmatmul.bf16.gmra.mxu0 %v2102
      %v2113 = vpop.f32.mrf.mxu0
      %v2114 = vadd.f32 %v2087, %v2113
      %v2115 = vpop.f32.mrf.mxu0
      %2116 = vdwg.mxu0
      %v2117 = vld [vmem:[%s43] sm:$0xf]
      %v2118 = vld [vmem:[%s43 + $0x4] sm:$0xf]
      %v2119 = vld [vmem:[%s43 + $0x8] sm:$0xf]
      %v2120 = vld [vmem:[%s43 + $0xc] sm:$0xf]
      %v2121 = vld [vmem:[%s45] sm:$0x1]
      %v2123 = vperm.slane %v2121, 0
      %v2129 = vunpack.c.l.b16 %v2117
      %v2130 = vunpack.c.l.b16 %v2118
      %v2131 = vunpack.c.l.b16 %v2119
      %v2132 = vunpack.c.l.b16 %v2120
      %v2133 = vpack.c.b16 %v2130, %v2129
      %v2134 = vpack.c.b16 %v2132, %v2131
      %2137 = vmatpush.bf16.msra.mxu0 0
      %2138 = vmatpush.bf16.msra.mxu0 0
      %2139 = vmatpush.bf16.msra.mxu0 0
      %2140 = vmatpush.bf16.msra.mxu0 0
      %2141 = vmatpush.bf16.msra.mxu0 0
      %2142 = vmatpush.bf16.msra.mxu0 0
      %2143 = vmatpush.bf16.msra.mxu0 %v2134
      %2144 = vmatpush.bf16.msra.mxu0 %v2133
      %2145 = vmatmul.bf16.gmra.mxu0 %v2102
      %v2146 = vpop.f32.mrf.mxu0
      %v2147 = vadd.f32 %v2123, %v2146
      %v2148 = vpop.f32.mrf.mxu0
      %2149 = vdwg.mxu0
      %v2150 = vld [vmem:[%s47] sm:$0xf]
      %v2151 = vld [vmem:[%s47 + $0x4] sm:$0xf]
      %v2152 = vld [vmem:[%s47 + $0x8] sm:$0xf]
      %v2153 = vld [vmem:[%s47 + $0xc] sm:$0xf]
      %v2154 = vld [vmem:[%s49] sm:$0x1]
      %v2156 = vperm.slane %v2154, 0
      %v2162 = vunpack.c.l.b16 %v2150
      %v2163 = vunpack.c.l.b16 %v2151
      %v2164 = vunpack.c.l.b16 %v2152
      %v2165 = vunpack.c.l.b16 %v2153
      %v2166 = vpack.c.b16 %v2163, %v2162
      %v2167 = vpack.c.b16 %v2165, %v2164
      %2170 = vmatpush.bf16.msra.mxu0 0
      %2171 = vmatpush.bf16.msra.mxu0 0
      %2172 = vmatpush.bf16.msra.mxu0 0
      %2173 = vmatpush.bf16.msra.mxu0 0
      %2174 = vmatpush.bf16.msra.mxu0 0
      %2175 = vmatpush.bf16.msra.mxu0 0
      %2176 = vmatpush.bf16.msra.mxu0 %v2167
      %2177 = vmatpush.bf16.msra.mxu0 %v2166
      %2178 = vmatmul.bf16.gmra.mxu0 %v2102
      %v2179 = vpop.f32.mrf.mxu0
      %v2180 = vadd.f32 %v2156, %v2179
      %v2181 = vpop.f32.mrf.mxu0
      %2182 = vdwg.mxu0
      %v2183 = vpack.c.bf16 %v2114, %v2114
      %v2184 = vpack.c.bf16 %v2147, %v2147
      %v2186 = vsel %vm1261, %v2183, 0
      %v2189 = vsel %vm1261, %v2184, 0
      %2191 = vmatpush.bf16.xpose.msra.mxu0 0
      %2192 = vmatpush.bf16.xpose.msra.mxu0 0
      %2193 = vmatpush.bf16.xpose.msra.mxu0 0
      %2194 = vmatpush.bf16.xpose.msra.mxu0 0
      %2195 = vmatpush.bf16.xpose.msra.mxu0 0
      %2196 = vmatpush.bf16.xpose.msra.mxu0 0
      %2197 = vmatpush.bf16.xpose.msra.mxu0 0
      %2198 = vmatpush.bf16.xpose.msra.mxu0 %v2189
      %2199 = vmatmul.bf16.gmra.mxu0 %v2186
      %v2200 = vpop.f32.mrf.mxu0
      %v2201 = vadd.f32 0.0, %v2200
      %v2202 = vpop.f32.mrf.mxu0
      %2203 = vdwg.mxu0
      %v2204 = vmul.f32 %v2201, 0.35355338
      %v2205 = vsel %vm1261, %v2204, -inf
      %2206 = vmax.xlane.f32.xlu0 %v2205
      %v2207 = vpop.xlane.xlu0 %2206
      %v2208 = vsub.f32 %v2204, %v2207
      %v2209 = vmul.f32 %v2208, 1.442695
      %v2210 = vpow.pop %v2209
      %v2211 = vsel %vm1261, %v2210, 0.0
      %2212 = vadd.xlane.f32.xlu0 %v2211
      %v2213 = vpop.xlane.xlu0 %2212
      %v2214 = vrcp.pop %v2213
      %v2215 = vmul.f32 %v2210, %v2214
      %v2216 = vpack.c.bf16 %v2215, %v2215
      %v2217 = vpack.c.bf16 %v2180, %v2180
      %v2219 = vsel %vm1261, %v2216, 0
      %v2222 = vsel %vm1298, %v2217, 0
      %2224 = vmatpush.bf16.msra.mxu0 0
      %2225 = vmatpush.bf16.msra.mxu0 0
      %2226 = vmatpush.bf16.msra.mxu0 0
      %2227 = vmatpush.bf16.msra.mxu0 0
      %2228 = vmatpush.bf16.msra.mxu0 0
      %2229 = vmatpush.bf16.msra.mxu0 0
      %2230 = vmatpush.bf16.msra.mxu0 0
      %2231 = vmatpush.bf16.msra.mxu0 %v2222
      %2232 = vmatmul.bf16.gmra.mxu0 %v2219
      %v2233 = vpop.f32.mrf.mxu0
      %v2234 = vadd.f32 0.0, %v2233
      %v2235 = vpop.f32.mrf.mxu0
      %2236 = vdwg.mxu0
      %v2237 = vpack.c.bf16 %v2234, %v2234
      %v2238 = vld [vmem:[%s51] sm:$0xf]
      %v2240 = vsel %vm1261, %v2237, 0
      %v2243 = vsel %vm1298, %v2238, 0
      %2245 = vmatpush.bf16.msra.mxu0 0
      %2246 = vmatpush.bf16.msra.mxu0 0
      %2247 = vmatpush.bf16.msra.mxu0 0
      %2248 = vmatpush.bf16.msra.mxu0 0
      %2249 = vmatpush.bf16.msra.mxu0 0
      %2250 = vmatpush.bf16.msra.mxu0 0
      %2251 = vmatpush.bf16.msra.mxu0 0
      %2252 = vmatpush.bf16.msra.mxu0 %v2243
      %2253 = vmatmul.bf16.gmra.mxu0 %v2240
      %v2254 = vpop.f32.mrf.mxu0
      %v2255 = vadd.f32 0.0, %v2254
      %v2256 = vpop.f32.mrf.mxu0
      %2257 = vdwg.mxu0
      %v2259 = vperm.slane %v2080, 0
      %v2261 = vadd.f32 %v2259, %v2255
      %s2262 = scalar_lea.vmem %s39, 16
      %v2263 = vld [vmem:[%s2262] sm:$0xf]
      %v2264 = vld [vmem:[%s2262 + $0x4] sm:$0xf]
      %v2265 = vld [vmem:[%s2262 + $0x8] sm:$0xf]
      %v2266 = vld [vmem:[%s2262 + $0xc] sm:$0xf]
      %s2267 = scalar_lea.vmem %s41, 1
      %v2268 = vld [vmem:[%s2267] sm:$0x1]
      %v2270 = vperm.slane %v2268, 0
      %v2276 = vunpack.c.l.b16 %v2263
      %v2277 = vunpack.c.l.b16 %v2264
      %v2278 = vunpack.c.l.b16 %v2265
      %v2279 = vunpack.c.l.b16 %v2266
      %v2280 = vpack.c.b16 %v2277, %v2276
      %v2281 = vpack.c.b16 %v2279, %v2278
      %2284 = vmatpush.bf16.msra.mxu0 0
      %2285 = vmatpush.bf16.msra.mxu0 0
      %2286 = vmatpush.bf16.msra.mxu0 0
      %2287 = vmatpush.bf16.msra.mxu0 0
      %2288 = vmatpush.bf16.msra.mxu0 0
      %2289 = vmatpush.bf16.msra.mxu0 0
      %2290 = vmatpush.bf16.msra.mxu0 %v2281
      %2291 = vmatpush.bf16.msra.mxu0 %v2280
      %2292 = vmatmul.bf16.gmra.mxu0 %v2102
      %v2293 = vpop.f32.mrf.mxu0
      %v2294 = vadd.f32 %v2270, %v2293
      %v2295 = vpop.f32.mrf.mxu0
      %2296 = vdwg.mxu0
      %s2297 = scalar_lea.vmem %s43, 16
      %v2298 = vld [vmem:[%s2297] sm:$0xf]
      %v2299 = vld [vmem:[%s2297 + $0x4] sm:$0xf]
      %v2300 = vld [vmem:[%s2297 + $0x8] sm:$0xf]
      %v2301 = vld [vmem:[%s2297 + $0xc] sm:$0xf]
      %s2302 = scalar_lea.vmem %s45, 1
      %v2303 = vld [vmem:[%s2302] sm:$0x1]
      %v2305 = vperm.slane %v2303, 0
      %v2311 = vunpack.c.l.b16 %v2298
      %v2312 = vunpack.c.l.b16 %v2299
      %v2313 = vunpack.c.l.b16 %v2300
      %v2314 = vunpack.c.l.b16 %v2301
      %v2315 = vpack.c.b16 %v2312, %v2311
      %v2316 = vpack.c.b16 %v2314, %v2313
      %2319 = vmatpush.bf16.msra.mxu0 0
      %2320 = vmatpush.bf16.msra.mxu0 0
      %2321 = vmatpush.bf16.msra.mxu0 0
      %2322 = vmatpush.bf16.msra.mxu0 0
      %2323 = vmatpush.bf16.msra.mxu0 0
      %2324 = vmatpush.bf16.msra.mxu0 0
      %2325 = vmatpush.bf16.msra.mxu0 %v2316
      %2326 = vmatpush.bf16.msra.mxu0 %v2315
      %2327 = vmatmul.bf16.gmra.mxu0 %v2102
      %v2328 = vpop.f32.mrf.mxu0
      %v2329 = vadd.f32 %v2305, %v2328
      %v2330 = vpop.f32.mrf.mxu0
      %2331 = vdwg.mxu0
      %s2332 = scalar_lea.vmem %s47, 16
      %v2333 = vld [vmem:[%s2332] sm:$0xf]
      %v2334 = vld [vmem:[%s2332 + $0x4] sm:$0xf]
      %v2335 = vld [vmem:[%s2332 + $0x8] sm:$0xf]
      %v2336 = vld [vmem:[%s2332 + $0xc] sm:$0xf]
      %s2337 = scalar_lea.vmem %s49, 1
      %v2338 = vld [vmem:[%s2337] sm:$0x1]
      %v2340 = vperm.slane %v2338, 0
      %v2346 = vunpack.c.l.b16 %v2333
      %v2347 = vunpack.c.l.b16 %v2334
      %v2348 = vunpack.c.l.b16 %v2335
      %v2349 = vunpack.c.l.b16 %v2336
      %v2350 = vpack.c.b16 %v2347, %v2346
      %v2351 = vpack.c.b16 %v2349, %v2348
      %2354 = vmatpush.bf16.msra.mxu0 0
      %2355 = vmatpush.bf16.msra.mxu0 0
      %2356 = vmatpush.bf16.msra.mxu0 0
      %2357 = vmatpush.bf16.msra.mxu0 0
      %2358 = vmatpush.bf16.msra.mxu0 0
      %2359 = vmatpush.bf16.msra.mxu0 0
      %2360 = vmatpush.bf16.msra.mxu0 %v2351
      %2361 = vmatpush.bf16.msra.mxu0 %v2350
      %2362 = vmatmul.bf16.gmra.mxu0 %v2102
      %v2363 = vpop.f32.mrf.mxu0
      %v2364 = vadd.f32 %v2340, %v2363
      %v2365 = vpop.f32.mrf.mxu0
      %2366 = vdwg.mxu0
      %v2367 = vpack.c.bf16 %v2294, %v2294
      %v2368 = vpack.c.bf16 %v2329, %v2329
      %v2370 = vsel %vm1261, %v2367, 0
      %v2373 = vsel %vm1261, %v2368, 0
      %2375 = vmatpush.bf16.xpose.msra.mxu0 0
      %2376 = vmatpush.bf16.xpose.msra.mxu0 0
      %2377 = vmatpush.bf16.xpose.msra.mxu0 0
      %2378 = vmatpush.bf16.xpose.msra.mxu0 0
      %2379 = vmatpush.bf16.xpose.msra.mxu0 0
      %2380 = vmatpush.bf16.xpose.msra.mxu0 0
      %2381 = vmatpush.bf16.xpose.msra.mxu0 0
      %2382 = vmatpush.bf16.xpose.msra.mxu0 %v2373
      %2383 = vmatmul.bf16.gmra.mxu0 %v2370
      %v2384 = vpop.f32.mrf.mxu0
      %v2385 = vadd.f32 0.0, %v2384
      %v2386 = vpop.f32.mrf.mxu0
      %2387 = vdwg.mxu0
      %v2388 = vmul.f32 %v2385, 0.35355338
      %v2389 = vsel %vm1261, %v2388, -inf
      %2390 = vmax.xlane.f32.xlu0 %v2389
      %v2391 = vpop.xlane.xlu0 %2390
      %v2392 = vsub.f32 %v2388, %v2391
      %v2393 = vmul.f32 %v2392, 1.442695
      %v2394 = vpow.pop %v2393
      %v2395 = vsel %vm1261, %v2394, 0.0
      %2396 = vadd.xlane.f32.xlu0 %v2395
      %v2397 = vpop.xlane.xlu0 %2396
      %v2398 = vrcp.pop %v2397
      %v2399 = vmul.f32 %v2394, %v2398
      %v2400 = vpack.c.bf16 %v2399, %v2399
      %v2401 = vpack.c.bf16 %v2364, %v2364
      %v2403 = vsel %vm1261, %v2400, 0
      %v2406 = vsel %vm1298, %v2401, 0
      %2408 = vmatpush.bf16.msra.mxu0 0
      %2409 = vmatpush.bf16.msra.mxu0 0
      %2410 = vmatpush.bf16.msra.mxu0 0
      %2411 = vmatpush.bf16.msra.mxu0 0
      %2412 = vmatpush.bf16.msra.mxu0 0
      %2413 = vmatpush.bf16.msra.mxu0 0
      %2414 = vmatpush.bf16.msra.mxu0 0
      %2415 = vmatpush.bf16.msra.mxu0 %v2406
      %2416 = vmatmul.bf16.gmra.mxu0 %v2403
      %v2417 = vpop.f32.mrf.mxu0
      %v2418 = vadd.f32 0.0, %v2417
      %v2419 = vpop.f32.mrf.mxu0
      %2420 = vdwg.mxu0
      %v2421 = vpack.c.bf16 %v2418, %v2418
      %s2422 = scalar_lea.vmem %s51, 4
      %v2423 = vld [vmem:[%s2422] sm:$0xf]
      %v2425 = vsel %vm1261, %v2421, 0
      %v2428 = vsel %vm1298, %v2423, 0
      %2430 = vmatpush.bf16.msra.mxu0 0
      %2431 = vmatpush.bf16.msra.mxu0 0
      %2432 = vmatpush.bf16.msra.mxu0 0
      %2433 = vmatpush.bf16.msra.mxu0 0
      %2434 = vmatpush.bf16.msra.mxu0 0
      %2435 = vmatpush.bf16.msra.mxu0 0
      %2436 = vmatpush.bf16.msra.mxu0 0
      %2437 = vmatpush.bf16.msra.mxu0 %v2428
      %2438 = vmatmul.bf16.gmra.mxu0 %v2425
      %v2439 = vpop.f32.mrf.mxu0
      %v2440 = vadd.f32 0.0, %v2439
      %v2441 = vpop.f32.mrf.mxu0
      %2442 = vdwg.mxu0
      %v2443 = vadd.f32 %v2261, %v2440
      %s2444 = scalar_lea.vmem %s39, 32
      %v2445 = vld [vmem:[%s2444] sm:$0xf]
      %v2446 = vld [vmem:[%s2444 + $0x4] sm:$0xf]
      %v2447 = vld [vmem:[%s2444 + $0x8] sm:$0xf]
      %v2448 = vld [vmem:[%s2444 + $0xc] sm:$0xf]
      %s2449 = scalar_lea.vmem %s41, 2
      %v2450 = vld [vmem:[%s2449] sm:$0x1]
      %v2452 = vperm.slane %v2450, 0
      %v2458 = vunpack.c.l.b16 %v2445
      %v2459 = vunpack.c.l.b16 %v2446
      %v2460 = vunpack.c.l.b16 %v2447
      %v2461 = vunpack.c.l.b16 %v2448
      %v2462 = vpack.c.b16 %v2459, %v2458
      %v2463 = vpack.c.b16 %v2461, %v2460
      %2466 = vmatpush.bf16.msra.mxu0 0
      %2467 = vmatpush.bf16.msra.mxu0 0
      %2468 = vmatpush.bf16.msra.mxu0 0
      %2469 = vmatpush.bf16.msra.mxu0 0
      %2470 = vmatpush.bf16.msra.mxu0 0
      %2471 = vmatpush.bf16.msra.mxu0 0
      %2472 = vmatpush.bf16.msra.mxu0 %v2463
      %2473 = vmatpush.bf16.msra.mxu0 %v2462
      %2474 = vmatmul.bf16.gmra.mxu0 %v2102
      %v2475 = vpop.f32.mrf.mxu0
      %v2476 = vadd.f32 %v2452, %v2475
      %v2477 = vpop.f32.mrf.mxu0
      %2478 = vdwg.mxu0
      %s2479 = scalar_lea.vmem %s43, 32
      %v2480 = vld [vmem:[%s2479] sm:$0xf]
      %v2481 = vld [vmem:[%s2479 + $0x4] sm:$0xf]
      %v2482 = vld [vmem:[%s2479 + $0x8] sm:$0xf]
      %v2483 = vld [vmem:[%s2479 + $0xc] sm:$0xf]
      %s2484 = scalar_lea.vmem %s45, 2
      %v2485 = vld [vmem:[%s2484] sm:$0x1]
      %v2487 = vperm.slane %v2485, 0
      %v2493 = vunpack.c.l.b16 %v2480
      %v2494 = vunpack.c.l.b16 %v2481
      %v2495 = vunpack.c.l.b16 %v2482
      %v2496 = vunpack.c.l.b16 %v2483
      %v2497 = vpack.c.b16 %v2494, %v2493
      %v2498 = vpack.c.b16 %v2496, %v2495
      %2501 = vmatpush.bf16.msra.mxu0 0
      %2502 = vmatpush.bf16.msra.mxu0 0
      %2503 = vmatpush.bf16.msra.mxu0 0
      %2504 = vmatpush.bf16.msra.mxu0 0
      %2505 = vmatpush.bf16.msra.mxu0 0
      %2506 = vmatpush.bf16.msra.mxu0 0
      %2507 = vmatpush.bf16.msra.mxu0 %v2498
      %2508 = vmatpush.bf16.msra.mxu0 %v2497
      %2509 = vmatmul.bf16.gmra.mxu0 %v2102
      %v2510 = vpop.f32.mrf.mxu0
      %v2511 = vadd.f32 %v2487, %v2510
      %v2512 = vpop.f32.mrf.mxu0
      %2513 = vdwg.mxu0
      %s2514 = scalar_lea.vmem %s47, 32
      %v2515 = vld [vmem:[%s2514] sm:$0xf]
      %v2516 = vld [vmem:[%s2514 + $0x4] sm:$0xf]
      %v2517 = vld [vmem:[%s2514 + $0x8] sm:$0xf]
      %v2518 = vld [vmem:[%s2514 + $0xc] sm:$0xf]
      %s2519 = scalar_lea.vmem %s49, 2
      %v2520 = vld [vmem:[%s2519] sm:$0x1]
      %v2522 = vperm.slane %v2520, 0
      %v2528 = vunpack.c.l.b16 %v2515
      %v2529 = vunpack.c.l.b16 %v2516
      %v2530 = vunpack.c.l.b16 %v2517
      %v2531 = vunpack.c.l.b16 %v2518
      %v2532 = vpack.c.b16 %v2529, %v2528
      %v2533 = vpack.c.b16 %v2531, %v2530
      %2536 = vmatpush.bf16.msra.mxu0 0
      %2537 = vmatpush.bf16.msra.mxu0 0
      %2538 = vmatpush.bf16.msra.mxu0 0
      %2539 = vmatpush.bf16.msra.mxu0 0
      %2540 = vmatpush.bf16.msra.mxu0 0
      %2541 = vmatpush.bf16.msra.mxu0 0
      %2542 = vmatpush.bf16.msra.mxu0 %v2533
      %2543 = vmatpush.bf16.msra.mxu0 %v2532
      %2544 = vmatmul.bf16.gmra.mxu0 %v2102
      %v2545 = vpop.f32.mrf.mxu0
      %v2546 = vadd.f32 %v2522, %v2545
      %v2547 = vpop.f32.mrf.mxu0
      %2548 = vdwg.mxu0
      %v2549 = vpack.c.bf16 %v2476, %v2476
      %v2550 = vpack.c.bf16 %v2511, %v2511
      %v2552 = vsel %vm1261, %v2549, 0
      %v2555 = vsel %vm1261, %v2550, 0
      %2557 = vmatpush.bf16.xpose.msra.mxu0 0
      %2558 = vmatpush.bf16.xpose.msra.mxu0 0
      %2559 = vmatpush.bf16.xpose.msra.mxu0 0
      %2560 = vmatpush.bf16.xpose.msra.mxu0 0
      %2561 = vmatpush.bf16.xpose.msra.mxu0 0
      %2562 = vmatpush.bf16.xpose.msra.mxu0 0
      %2563 = vmatpush.bf16.xpose.msra.mxu0 0
      %2564 = vmatpush.bf16.xpose.msra.mxu0 %v2555
      %2565 = vmatmul.bf16.gmra.mxu0 %v2552
      %v2566 = vpop.f32.mrf.mxu0
      %v2567 = vadd.f32 0.0, %v2566
      %v2568 = vpop.f32.mrf.mxu0
      %2569 = vdwg.mxu0
      %v2570 = vmul.f32 %v2567, 0.35355338
      %v2571 = vsel %vm1261, %v2570, -inf
      %2572 = vmax.xlane.f32.xlu0 %v2571
      %v2573 = vpop.xlane.xlu0 %2572
      %v2574 = vsub.f32 %v2570, %v2573
      %v2575 = vmul.f32 %v2574, 1.442695
      %v2576 = vpow.pop %v2575
      %v2577 = vsel %vm1261, %v2576, 0.0
      %2578 = vadd.xlane.f32.xlu0 %v2577
      %v2579 = vpop.xlane.xlu0 %2578
      %v2580 = vrcp.pop %v2579
      %v2581 = vmul.f32 %v2576, %v2580
      %v2582 = vpack.c.bf16 %v2581, %v2581
      %v2583 = vpack.c.bf16 %v2546, %v2546
      %v2585 = vsel %vm1261, %v2582, 0
      %v2588 = vsel %vm1298, %v2583, 0
      %2590 = vmatpush.bf16.msra.mxu0 0
      %2591 = vmatpush.bf16.msra.mxu0 0
      %2592 = vmatpush.bf16.msra.mxu0 0
      %2593 = vmatpush.bf16.msra.mxu0 0
      %2594 = vmatpush.bf16.msra.mxu0 0
      %2595 = vmatpush.bf16.msra.mxu0 0
      %2596 = vmatpush.bf16.msra.mxu0 0
      %2597 = vmatpush.bf16.msra.mxu0 %v2588
      %2598 = vmatmul.bf16.gmra.mxu0 %v2585
      %v2599 = vpop.f32.mrf.mxu0
      %v2600 = vadd.f32 0.0, %v2599
      %v2601 = vpop.f32.mrf.mxu0
      %2602 = vdwg.mxu0
      %v2603 = vpack.c.bf16 %v2600, %v2600
      %s2604 = scalar_lea.vmem %s51, 8
      %v2605 = vld [vmem:[%s2604] sm:$0xf]
      %v2607 = vsel %vm1261, %v2603, 0
      %v2610 = vsel %vm1298, %v2605, 0
      %2612 = vmatpush.bf16.msra.mxu0 0
      %2613 = vmatpush.bf16.msra.mxu0 0
      %2614 = vmatpush.bf16.msra.mxu0 0
      %2615 = vmatpush.bf16.msra.mxu0 0
      %2616 = vmatpush.bf16.msra.mxu0 0
      %2617 = vmatpush.bf16.msra.mxu0 0
      %2618 = vmatpush.bf16.msra.mxu0 0
      %2619 = vmatpush.bf16.msra.mxu0 %v2610
      %2620 = vmatmul.bf16.gmra.mxu0 %v2607
      %v2621 = vpop.f32.mrf.mxu0
      %v2622 = vadd.f32 0.0, %v2621
      %v2623 = vpop.f32.mrf.mxu0
      %2624 = vdwg.mxu0
      %v2625 = vadd.f32 %v2443, %v2622
      %s2626 = scalar_lea.vmem %s39, 48
      %v2627 = vld [vmem:[%s2626] sm:$0xf]
      %v2628 = vld [vmem:[%s2626 + $0x4] sm:$0xf]
      %v2629 = vld [vmem:[%s2626 + $0x8] sm:$0xf]
      %v2630 = vld [vmem:[%s2626 + $0xc] sm:$0xf]
      %s2631 = scalar_lea.vmem %s41, 3
      %v2632 = vld [vmem:[%s2631] sm:$0x1]
      %v2634 = vperm.slane %v2632, 0
      %v2640 = vunpack.c.l.b16 %v2627
      %v2641 = vunpack.c.l.b16 %v2628
      %v2642 = vunpack.c.l.b16 %v2629
      %v2643 = vunpack.c.l.b16 %v2630
      %v2644 = vpack.c.b16 %v2641, %v2640
      %v2645 = vpack.c.b16 %v2643, %v2642
      %2648 = vmatpush.bf16.msra.mxu0 0
      %2649 = vmatpush.bf16.msra.mxu0 0
      %2650 = vmatpush.bf16.msra.mxu0 0
      %2651 = vmatpush.bf16.msra.mxu0 0
      %2652 = vmatpush.bf16.msra.mxu0 0
      %2653 = vmatpush.bf16.msra.mxu0 0
      %2654 = vmatpush.bf16.msra.mxu0 %v2645
      %2655 = vmatpush.bf16.msra.mxu0 %v2644
      %2656 = vmatmul.bf16.gmra.mxu0 %v2102
      %v2657 = vpop.f32.mrf.mxu0
      %v2658 = vadd.f32 %v2634, %v2657
      %v2659 = vpop.f32.mrf.mxu0
      %2660 = vdwg.mxu0
      %s2661 = scalar_lea.vmem %s43, 48
      %v2662 = vld [vmem:[%s2661] sm:$0xf]
      %v2663 = vld [vmem:[%s2661 + $0x4] sm:$0xf]
      %v2664 = vld [vmem:[%s2661 + $0x8] sm:$0xf]
      %v2665 = vld [vmem:[%s2661 + $0xc] sm:$0xf]
      %s2666 = scalar_lea.vmem %s45, 3
      %v2667 = vld [vmem:[%s2666] sm:$0x1]
      %v2669 = vperm.slane %v2667, 0
      %v2675 = vunpack.c.l.b16 %v2662
      %v2676 = vunpack.c.l.b16 %v2663
      %v2677 = vunpack.c.l.b16 %v2664
      %v2678 = vunpack.c.l.b16 %v2665
      %v2679 = vpack.c.b16 %v2676, %v2675
      %v2680 = vpack.c.b16 %v2678, %v2677
      %2683 = vmatpush.bf16.msra.mxu0 0
      %2684 = vmatpush.bf16.msra.mxu0 0
      %2685 = vmatpush.bf16.msra.mxu0 0
      %2686 = vmatpush.bf16.msra.mxu0 0
      %2687 = vmatpush.bf16.msra.mxu0 0
      %2688 = vmatpush.bf16.msra.mxu0 0
      %2689 = vmatpush.bf16.msra.mxu0 %v2680
      %2690 = vmatpush.bf16.msra.mxu0 %v2679
      %2691 = vmatmul.bf16.gmra.mxu0 %v2102
      %v2692 = vpop.f32.mrf.mxu0
      %v2693 = vadd.f32 %v2669, %v2692
      %v2694 = vpop.f32.mrf.mxu0
      %2695 = vdwg.mxu0
      %s2696 = scalar_lea.vmem %s47, 48
      %v2697 = vld [vmem:[%s2696] sm:$0xf]
      %v2698 = vld [vmem:[%s2696 + $0x4] sm:$0xf]
      %v2699 = vld [vmem:[%s2696 + $0x8] sm:$0xf]
      %v2700 = vld [vmem:[%s2696 + $0xc] sm:$0xf]
      %s2701 = scalar_lea.vmem %s49, 3
      %v2702 = vld [vmem:[%s2701] sm:$0x1]
      %v2704 = vperm.slane %v2702, 0
      %v2710 = vunpack.c.l.b16 %v2697
      %v2711 = vunpack.c.l.b16 %v2698
      %v2712 = vunpack.c.l.b16 %v2699
      %v2713 = vunpack.c.l.b16 %v2700
      %v2714 = vpack.c.b16 %v2711, %v2710
      %v2715 = vpack.c.b16 %v2713, %v2712
      %2718 = vmatpush.bf16.msra.mxu0 0
      %2719 = vmatpush.bf16.msra.mxu0 0
      %2720 = vmatpush.bf16.msra.mxu0 0
      %2721 = vmatpush.bf16.msra.mxu0 0
      %2722 = vmatpush.bf16.msra.mxu0 0
      %2723 = vmatpush.bf16.msra.mxu0 0
      %2724 = vmatpush.bf16.msra.mxu0 %v2715
      %2725 = vmatpush.bf16.msra.mxu0 %v2714
      %2726 = vmatmul.bf16.gmra.mxu0 %v2102
      %v2727 = vpop.f32.mrf.mxu0
      %v2728 = vadd.f32 %v2704, %v2727
      %v2729 = vpop.f32.mrf.mxu0
      %2730 = vdwg.mxu0
      %v2731 = vpack.c.bf16 %v2658, %v2658
      %v2732 = vpack.c.bf16 %v2693, %v2693
      %v2734 = vsel %vm1261, %v2731, 0
      %v2737 = vsel %vm1261, %v2732, 0
      %2739 = vmatpush.bf16.xpose.msra.mxu0 0
      %2740 = vmatpush.bf16.xpose.msra.mxu0 0
      %2741 = vmatpush.bf16.xpose.msra.mxu0 0
      %2742 = vmatpush.bf16.xpose.msra.mxu0 0
      %2743 = vmatpush.bf16.xpose.msra.mxu0 0
      %2744 = vmatpush.bf16.xpose.msra.mxu0 0
      %2745 = vmatpush.bf16.xpose.msra.mxu0 0
      %2746 = vmatpush.bf16.xpose.msra.mxu0 %v2737
      %2747 = vmatmul.bf16.gmra.mxu0 %v2734
      %v2748 = vpop.f32.mrf.mxu0
      %v2749 = vadd.f32 0.0, %v2748
      %v2750 = vpop.f32.mrf.mxu0
      %2751 = vdwg.mxu0
      %v2752 = vmul.f32 %v2749, 0.35355338
      %v2753 = vsel %vm1261, %v2752, -inf
      %2754 = vmax.xlane.f32.xlu0 %v2753
      %v2755 = vpop.xlane.xlu0 %2754
      %v2756 = vsub.f32 %v2752, %v2755
      %v2757 = vmul.f32 %v2756, 1.442695
      %v2758 = vpow.pop %v2757
      %v2759 = vsel %vm1261, %v2758, 0.0
      %2760 = vadd.xlane.f32.xlu0 %v2759
      %v2761 = vpop.xlane.xlu0 %2760
      %v2762 = vrcp.pop %v2761
      %v2763 = vmul.f32 %v2758, %v2762
      %v2764 = vpack.c.bf16 %v2763, %v2763
      %v2765 = vpack.c.bf16 %v2728, %v2728
      %v2767 = vsel %vm1261, %v2764, 0
      %v2770 = vsel %vm1298, %v2765, 0
      %2772 = vmatpush.bf16.msra.mxu0 0
      %2773 = vmatpush.bf16.msra.mxu0 0
      %2774 = vmatpush.bf16.msra.mxu0 0
      %2775 = vmatpush.bf16.msra.mxu0 0
      %2776 = vmatpush.bf16.msra.mxu0 0
      %2777 = vmatpush.bf16.msra.mxu0 0
      %2778 = vmatpush.bf16.msra.mxu0 0
      %2779 = vmatpush.bf16.msra.mxu0 %v2770
      %2780 = vmatmul.bf16.gmra.mxu0 %v2767
      %v2781 = vpop.f32.mrf.mxu0
      %v2782 = vadd.f32 0.0, %v2781
      %v2783 = vpop.f32.mrf.mxu0
      %2784 = vdwg.mxu0
      %v2785 = vpack.c.bf16 %v2782, %v2782
      %s2786 = scalar_lea.vmem %s51, 12
      %v2787 = vld [vmem:[%s2786] sm:$0xf]
      %v2789 = vsel %vm1261, %v2785, 0
      %v2792 = vsel %vm1298, %v2787, 0
      %2794 = vmatpush.bf16.msra.mxu0 0
      %2795 = vmatpush.bf16.msra.mxu0 0
      %2796 = vmatpush.bf16.msra.mxu0 0
      %2797 = vmatpush.bf16.msra.mxu0 0
      %2798 = vmatpush.bf16.msra.mxu0 0
      %2799 = vmatpush.bf16.msra.mxu0 0
      %2800 = vmatpush.bf16.msra.mxu0 0
      %2801 = vmatpush.bf16.msra.mxu0 %v2792
      %2802 = vmatmul.bf16.gmra.mxu0 %v2789
      %v2803 = vpop.f32.mrf.mxu0
      %v2804 = vadd.f32 0.0, %v2803
      %v2805 = vpop.f32.mrf.mxu0
      %2806 = vdwg.mxu0
      %v2807 = vadd.f32 %v2625, %v2804
      %v2808 = vadd.f32 %v2078, %v2807
      %v2809 = vld [vmem:[%s55] sm:$0x1]
      %v2810 = vld [vmem:[%s57] sm:$0x1]
      %v2811 = vsel %vm1176, %v2808, 0.0
      %2812 = vadd.xlane.f32.xlu0 %v2811
      %v2813 = vpop.xlane.xlu0 %2812
      %v2814 = vmul.f32 %v2813, %v1898
      %v2815 = vsub.f32 %v2808, %v2814
      %v2816 = vmul.f32 %v2815, %v2815
      %v2817 = vsel %vm1176, %v2816, 0.0
      %2818 = vadd.xlane.f32.xlu0 %v2817
      %v2819 = vpop.xlane.xlu0 %2818
      %v2820 = vmul.f32 %v2819, %v1898
      %v2821 = vadd.f32 %v2820, 1e-05
      %v2822 = vrsqrt.pop %v2821
      %v2823 = vmul.f32 %v2822, %v2821
      %v2824 = vmul.f32 %v2823, %v2822
      %v2825 = vmul.f32 0.5, %v2824
      %v2826 = vsub.f32 1.5, %v2825
      %v2827 = vmul.f32 %v2822, %v2826
      %vm2828 = vweird.f32 %v2821
      %vm2829 = vweird.f32 %v2822
      %vm2830 = vmor %vm2828, %vm2829
      %v2831 = vsel %vm2830, %v2822, %v2827
      %v2832 = vmul.f32 %v2815, %v2831
      %v2834 = vperm.slane %v2809, 0
      %v2836 = vmul.f32 %v2832, %v2834
      %v2838 = vperm.slane %v2810, 0
      %v2840 = vadd.f32 %v2836, %v2838
      %v2841 = vpack.c.bf16 %v2840, %v2840
      %v2842 = vld [vmem:[%s59] sm:$0xf]
      %v2843 = vld [vmem:[%s59 + $0x4] sm:$0xf]
      %v2844 = vld [vmem:[%s59 + $0x8] sm:$0xf]
      %v2845 = vld [vmem:[%s59 + $0xc] sm:$0xf]
      %v2846 = vld [vmem:[%s61] sm:$0x1]
      %v2848 = vperm.slane %v2846, 0
      %v2854 = vunpack.c.l.b16 %v2842
      %v2855 = vunpack.c.l.b16 %v2843
      %v2856 = vunpack.c.l.b16 %v2844
      %v2857 = vunpack.c.l.b16 %v2845
      %v2858 = vpack.c.b16 %v2855, %v2854
      %v2859 = vpack.c.b16 %v2857, %v2856
      %v2863 = vsel %vm1176, %v2841, 0
      %2865 = vmatpush.bf16.msra.mxu0 0
      %2866 = vmatpush.bf16.msra.mxu0 0
      %2867 = vmatpush.bf16.msra.mxu0 0
      %2868 = vmatpush.bf16.msra.mxu0 0
      %2869 = vmatpush.bf16.msra.mxu0 0
      %2870 = vmatpush.bf16.msra.mxu0 0
      %2871 = vmatpush.bf16.msra.mxu0 %v2859
      %2872 = vmatpush.bf16.msra.mxu0 %v2858
      %2873 = vmatmul.bf16.gmra.mxu0 %v2863
      %v2874 = vpop.f32.mrf.mxu0
      %v2875 = vadd.f32 %v2848, %v2874
      %v2876 = vpop.f32.mrf.mxu0
      %2877 = vdwg.mxu0
      %v2878 = vmax.f32 %v2875, 0.0
      %v2879 = vpack.c.bf16 %v2878, %v2878
      %v2880 = vld [vmem:[%s63] sm:$0xf]
      %v2881 = vld [vmem:[%s63 + $0x4] sm:$0xf]
      %v2882 = vld [vmem:[%s63 + $0x8] sm:$0xf]
      %v2883 = vld [vmem:[%s63 + $0xc] sm:$0xf]
      %v2884 = vld [vmem:[%s63 + $0x10] sm:$0xf]
      %v2885 = vld [vmem:[%s63 + $0x14] sm:$0xf]
      %v2886 = vld [vmem:[%s63 + $0x18] sm:$0xf]
      %v2887 = vld [vmem:[%s63 + $0x1c] sm:$0xf]
      %v2888 = vld [vmem:[%s63 + $0x20] sm:$0xf]
      %v2889 = vld [vmem:[%s63 + $0x24] sm:$0xf]
      %v2890 = vld [vmem:[%s63 + $0x28] sm:$0xf]
      %v2891 = vld [vmem:[%s63 + $0x2c] sm:$0xf]
      %v2892 = vld [vmem:[%s63 + $0x30] sm:$0xf]
      %v2893 = vld [vmem:[%s63 + $0x34] sm:$0xf]
      %v2894 = vld [vmem:[%s63 + $0x38] sm:$0xf]
      %v2895 = vld [vmem:[%s63 + $0x3c] sm:$0xf]
      %v2896 = vld [vmem:[%s65] sm:$0x1]
      %v2898 = vperm.slane %v2896, 0
      %v2916 = vunpack.c.l.b16 %v2880
      %v2917 = vunpack.c.l.b16 %v2881
      %v2918 = vunpack.c.l.b16 %v2882
      %v2919 = vunpack.c.l.b16 %v2883
      %v2920 = vunpack.c.l.b16 %v2884
      %v2921 = vunpack.c.l.b16 %v2885
      %v2922 = vunpack.c.l.b16 %v2886
      %v2923 = vunpack.c.l.b16 %v2887
      %v2924 = vunpack.c.l.b16 %v2888
      %v2925 = vunpack.c.l.b16 %v2889
      %v2926 = vunpack.c.l.b16 %v2890
      %v2927 = vunpack.c.l.b16 %v2891
      %v2928 = vunpack.c.l.b16 %v2892
      %v2929 = vunpack.c.l.b16 %v2893
      %v2930 = vunpack.c.l.b16 %v2894
      %v2931 = vunpack.c.l.b16 %v2895
      %v2932 = vpack.c.b16 %v2917, %v2916
      %v2933 = vpack.c.b16 %v2919, %v2918
      %v2934 = vpack.c.b16 %v2921, %v2920
      %v2935 = vpack.c.b16 %v2923, %v2922
      %v2936 = vpack.c.b16 %v2925, %v2924
      %v2937 = vpack.c.b16 %v2927, %v2926
      %v2938 = vpack.c.b16 %v2929, %v2928
      %v2939 = vpack.c.b16 %v2931, %v2930
      %2948 = vmatpush.bf16.msra.mxu0 %v2939
      %2949 = vmatpush.bf16.msra.mxu0 %v2938
      %2950 = vmatpush.bf16.msra.mxu0 %v2937
      %2951 = vmatpush.bf16.msra.mxu0 %v2936
      %2952 = vmatpush.bf16.msra.mxu0 %v2935
      %2953 = vmatpush.bf16.msra.mxu0 %v2934
      %2954 = vmatpush.bf16.msra.mxu0 %v2933
      %2955 = vmatpush.bf16.msra.mxu0 %v2932
      %2956 = vmatmul.bf16.gmra.mxu0 %v2879
      %v2957 = vpop.f32.mrf.mxu0
      %v2958 = vadd.f32 %v2898, %v2957
      %v2959 = vpop.f32.mrf.mxu0
      %2960 = vdwg.mxu0
      %v2961 = vadd.f32 %v2840, %v2958
      %v2962 = vld [vmem:[%s67] sm:$0x1]
      %v2963 = vld [vmem:[%s69] sm:$0x1]
      %v2964 = vsel %vm1176, %v2961, 0.0
      %2965 = vadd.xlane.f32.xlu0 %v2964
      %v2966 = vpop.xlane.xlu0 %2965
      %v2967 = vmul.f32 %v2966, %v1898
      %v2968 = vsub.f32 %v2961, %v2967
      %v2969 = vmul.f32 %v2968, %v2968
      %v2970 = vsel %vm1176, %v2969, 0.0
      %2971 = vadd.xlane.f32.xlu0 %v2970
      %v2972 = vpop.xlane.xlu0 %2971
      %v2973 = vmul.f32 %v2972, %v1898
      %v2974 = vadd.f32 %v2973, 1e-05
      %v2975 = vrsqrt.pop %v2974
      %v2976 = vmul.f32 %v2975, %v2974
      %v2977 = vmul.f32 %v2976, %v2975
      %v2978 = vmul.f32 0.5, %v2977
      %v2979 = vsub.f32 1.5, %v2978
      %v2980 = vmul.f32 %v2975, %v2979
      %vm2981 = vweird.f32 %v2974
      %vm2982 = vweird.f32 %v2975
      %vm2983 = vmor %vm2981, %vm2982
      %v2984 = vsel %vm2983, %v2975, %v2980
      %v2985 = vmul.f32 %v2968, %v2984
      %v2987 = vperm.slane %v2962, 0
      %v2989 = vmul.f32 %v2985, %v2987
      %v2991 = vperm.slane %v2963, 0
      %v2993 = vadd.f32 %v2989, %v2991
      %v2994 = vpack.c.bf16 %v2993, %v2993
      %v2995 = vld [vmem:[%s71] sm:$0xf]
      %v2996 = vld [vmem:[%s71 + $0x4] sm:$0xf]
      %v2997 = vld [vmem:[%s71 + $0x8] sm:$0xf]
      %v2998 = vld [vmem:[%s71 + $0xc] sm:$0xf]
      %v2999 = vld [vmem:[%s73] sm:$0x1]
      %v3001 = vperm.slane %v2999, 0
      %v3007 = vunpack.c.l.b16 %v2995
      %v3008 = vunpack.c.l.b16 %v2996
      %v3009 = vunpack.c.l.b16 %v2997
      %v3010 = vunpack.c.l.b16 %v2998
      %v3011 = vpack.c.b16 %v3008, %v3007
      %v3012 = vpack.c.b16 %v3010, %v3009
      %v3016 = vsel %vm1176, %v2994, 0
      %3018 = vmatpush.bf16.msra.mxu0 0
      %3019 = vmatpush.bf16.msra.mxu0 0
      %3020 = vmatpush.bf16.msra.mxu0 0
      %3021 = vmatpush.bf16.msra.mxu0 0
      %3022 = vmatpush.bf16.msra.mxu0 0
      %3023 = vmatpush.bf16.msra.mxu0 0
      %3024 = vmatpush.bf16.msra.mxu0 %v3012
      %3025 = vmatpush.bf16.msra.mxu0 %v3011
      %3026 = vmatmul.bf16.gmra.mxu0 %v3016
      %v3027 = vpop.f32.mrf.mxu0
      %v3028 = vadd.f32 %v3001, %v3027
      %v3029 = vpop.f32.mrf.mxu0
      %3030 = vdwg.mxu0
      %3031 = vst.msk [vmem:[%s1121] sm:$0xff] %vm1137, %v3028
      %p3032 = scmp.lt.s32.totalorder %s86, 1
      %s3033 = scalar_select %p3032, %s86, 1
      %s3034 = smul.addr %s3033, 8
      %s3035 = scalar_lea.vmem %s75, %s3034
      // Predicated region
      $region169: #{transformer_forward.1} parent=167 // pred_check
        %p3036 = pneg %p886
      $region170: #{transformer_forward.1} parent=167 // pred_check_branch
        %3038 = sbr.rel (%p3036) target = $region172
      $region171: #{transformer_forward.1} parent=167 // pred_region
        _
      $region172: #{transformer_forward.1} parent=167 // pred_fallthru
        _
    $region168: #{transformer_forward.1} parent=5 // pred_fallthru
      _
    %p3039 = scmp.le.s32.totalorder 2, %s81
    // Predicated region
    $region173: #{transformer_forward.1} parent=5 // pred_check
      %p3040 = pneg %p3039
    $region174: #{transformer_forward.1} parent=5 // pred_check_branch
      %3042 = sbr.rel (%p3040) target = $region176
    $region175: #{transformer_forward.1} parent=5 // pred_region
      %s3043 = ssub.s32 %s81, 2
      // Predicated region
      $region177: #{transformer_forward.1} parent=175 // pred_check
        %p3044 = pneg %p892
      $region178: #{transformer_forward.1} parent=175 // pred_check_branch
        %3046 = sbr.rel (%p3044) target = $region180
      $region179: #{transformer_forward.1} parent=175 // pred_region
        %p3047 = scmp.lt.s32.totalorder %s87, 1
        %s3048 = scalar_select %p3047, %s87, 1
        %s3049 = smul.addr %s3048, 8
        %s3050 = scalar_lea.vmem %s75, %s3049
      $region180: #{transformer_forward.1} parent=175 // pred_fallthru
        _
    $region176: #{transformer_forward.1} parent=5 // pred_fallthru
      _
  $region6: #{transformer_forward.1} parent=0 // loop_footer
    %s85 = sadd.s32 1, %s81
  $region7: #{transformer_forward.1} parent=0 // loop_footer_branch
    %80 = sbr.rel target = $region3
  $region8: #{transformer_forward.1} parent=0 // loop_exit
    _

</llo_original>
